<compile_context>
chip_gen: v7x
topology: tpu7x:2x2x1
jax: 0.10.0
libtpu: 0.0.40
codegen_flags: <defaults>
</compile_context>

<pallas_src>
from functools import partial

import jax
import jax.numpy as jnp
from jax.experimental import pallas as pl
from jax.experimental.pallas import tpu as pltpu


def _round_up(x, m):
    return ((x + m - 1) // m) * m


def _pick_q_tile(sq):
    # Large M tiles fill the 256-wide MXU on v6e/v7x; fall back to the full
    # (small) Sq when it is not tileable.
    for t in (256, 128):
        if sq % t == 0:
            return t
    return sq


# ----------------------------- kernel --------------------------------------- #

def _fused_mha_kernel(q_ref, k_ref, v_ref,
                      wqkv_ref, bqkv_ref, wp_ref, bp_ref,
                      y_ref, attn_ref,
                      k_scr, v_scr, x_scr,
                      *, n_heads, dfp, sk):
    """Grid point = (batch b, q-tile i): fused QKV projection, per-head
    attention with direct slice writes, and output projection."""
    qi = pl.program_id(1)

    # ---- K/V projection: once per batch element, kept resident in VMEM ----
    @pl.when(qi == 0)
    def _project_kv():
        xk = k_ref[0].astype(jnp.bfloat16)                      # (Sk, d_model)
        xv = v_ref[0].astype(jnp.bfloat16)
        k = jnp.dot(xk, wqkv_ref[1],
                    preferred_element_type=jnp.float32) + bqkv_ref[1:2]
        v = jnp.dot(xv, wqkv_ref[2],
                    preferred_element_type=jnp.float32) + bqkv_ref[2:3]
        k_scr[...] = k.astype(k_scr.dtype)                      # (Sk, H*dfp) bf16
        v_scr[...] = v.astype(v_scr.dtype)

    # ---- Q projection for this q-tile (1/sqrt(df) folded into the weights) --
    xq = q_ref[0].astype(jnp.bfloat16)                          # (TSQ, d_model)
    q = (jnp.dot(xq, wqkv_ref[0], preferred_element_type=jnp.float32)
         + bqkv_ref[0:1]).astype(jnp.bfloat16)                  # (TSQ, H*dfp)

    # ---- per-head attention: results go straight into scratch / output refs.
    # dfp is a multiple of 128, so every slice below is a lane-aligned view.
    # (Small, fixed head counts: unrolled Python loop keeps LLO visibility;
    #  the live set per iteration is bounded because nothing is accumulated.)
    for h in range(n_heads):
        lo = h * dfp
        hi = lo + dfp
        qh = q[:, lo:hi]                                        # (TSQ, dfp) bf16
        kh = k_scr[:, lo:hi]                                    # (Sk, dfp)  bf16
        vh = v_scr[:, lo:hi]                                    # (Sk, dfp)  bf16

        # logits = qh @ kh^T, contracting last dim of both (no K transpose)
        logits = jax.lax.dot_general(
            qh, kh, dimension_numbers=(((1,), (1,)), ((), ())),
            preferred_element_type=jnp.float32)                 # (TSQ, Sk) f32

        # numerically-stable softmax, all in f32 (v5e VPU/EUP have no bf16)
        m = jnp.max(logits, axis=-1, keepdims=True)
        e = jnp.exp(logits - m)
        denom = jnp.sum(e, axis=-1, keepdims=True)
        w = e * pl.reciprocal(denom, approx=True)
        # TODO(synk): dropout on w is identity (eval-mode semantics); no RNG.

        # Direct slice writes — no concatenation, no extra full-size copies.
        attn_ref[0, :, h * sk:(h + 1) * sk] = w.astype(attn_ref.dtype)
        x_scr[:, lo:hi] = jnp.dot(
            w.astype(jnp.bfloat16), vh,
            preferred_element_type=jnp.float32).astype(x_scr.dtype)

    # ---- output projection (padded rows of wp are zero, so exact) ----
    y = jnp.dot(x_scr[...], wp_ref[...],
                preferred_element_type=jnp.float32) + bp_ref[...]
    y_ref[0] = y.astype(y_ref.dtype)


# ----------------------------- wrapper -------------------------------------- #

def multihead_attention_xl(queries, keys_in, values, params, *, attn_dtype=None):
    """Forward pass of MultiheadAttentionXL (first call: memory is None)."""
    B, Sq, d_model = queries.shape
    Sk = keys_in.shape[1]
    n_heads = params["n_heads"]

    wqkv = params["wqkv"]     # (3, d_model, H*dfp)   bf16, padded, scale folded
    bqkv = params["bqkv"]     # (3, H*dfp)            f32,  padded, scale folded
    wp_t = params["wp_t"]     # (H*dfp, d_model)      bf16, zero rows at padding
    bp = params["bp"]         # (1, d_model)          f32
    dfp = wqkv.shape[2] // n_heads

    if attn_dtype is None:
        # TODO(synk): callers that only need `y` should pass attn_dtype=bf16 or
        # use a variant without the attn output — it dominates HBM traffic.
        attn_dtype = queries.dtype

    tsq = _pick_q_tile(Sq)
    n_qt = Sq // tsq

    kernel = partial(_fused_mha_kernel, n_heads=n_heads, dfp=dfp, sk=Sk)

    # VMEM budget: resident weights (single-buffered) + double-buffered I/O
    # tiles + bf16 K/V/x scratch.  Derived per-shape so v7x (64 MiB) is safe.
    itemsize = queries.dtype.itemsize
    blk_bytes = (tsq * d_model * itemsize                      # q tile
                 + 2 * Sk * d_model * itemsize                 # k, v blocks
                 + tsq * d_model * itemsize                    # y tile
                 + tsq * n_heads * Sk * jnp.dtype(attn_dtype).itemsize)
    scratch_bytes = (2 * Sk + tsq) * n_heads * dfp * 2         # bf16 scratch
    weight_bytes = sum(a.size * a.dtype.itemsize for a in (wqkv, bqkv, wp_t, bp))
    est = weight_bytes + 2 * blk_bytes + scratch_bytes
    vmem_limit = int(min(max(3 * est, 32 * 2 ** 20), 64 * 2 ** 20))

    out_shape = (
        jax.ShapeDtypeStruct((B, Sq, d_model), queries.dtype),
        jax.ShapeDtypeStruct((B, Sq, n_heads * Sk), attn_dtype),
    )

    def _run(single_buffer_weights):
        # Constant-index weight blocks: request single buffering (no point in
        # double-buffering blocks whose index never changes).
        wkw = ({"pipeline_mode": pl.Buffered(1)} if single_buffer_weights else {})
        grid_spec = pltpu.PrefetchScalarGridSpec(
            num_scalar_prefetch=0,
            grid=(B, n_qt),                      # B outer, Sq-tile inner
            in_specs=[
                pl.BlockSpec((1, tsq, d_model), lambda b, i: (b, i, 0)),
                pl.BlockSpec((1, Sk, d_model), lambda b, i: (b, 0, 0)),
                pl.BlockSpec((1, Sk, d_model), lambda b, i: (b, 0, 0)),
                pl.BlockSpec(wqkv.shape, lambda b, i: (0, 0, 0), **wkw),
                pl.BlockSpec(bqkv.shape, lambda b, i: (0, 0), **wkw),
                pl.BlockSpec(wp_t.shape, lambda b, i: (0, 0), **wkw),
                pl.BlockSpec(bp.shape, lambda b, i: (0, 0), **wkw),
            ],
            out_specs=(
                pl.BlockSpec((1, tsq, d_model), lambda b, i: (b, i, 0)),
                pl.BlockSpec((1, tsq, n_heads * Sk), lambda b, i: (b, i, 0)),
            ),
            scratch_shapes=[
                pltpu.VMEM((Sk, n_heads * dfp), jnp.bfloat16),   # K (projected)
                pltpu.VMEM((Sk, n_heads * dfp), jnp.bfloat16),   # V (projected)
                pltpu.VMEM((tsq, n_heads * dfp), jnp.bfloat16),  # concat head out
            ],
        )
        out = pl.pallas_call(
            kernel,
            out_shape=out_shape,
            grid_spec=grid_spec,
            compiler_params=pltpu.CompilerParams(
                # B parallel (megacore); Sq-tile axis carries the K/V scratch
                # across iterations, so it must stay "arbitrary".
                dimension_semantics=("parallel", "arbitrary"),
                vmem_limit_bytes=vmem_limit),
        )(queries, keys_in, values, wqkv, bqkv, wp_t, bp)
        return jax.block_until_ready(out)

    try:
        return _run(True)
    except Exception:
        # pipeline_mode=pl.Buffered not accepted by this jax/Mosaic version —
        # fall back to default (double-buffered) weight blocks.
        return _run(False)


# ----------------------------- parameter packing ----------------------------- #

def pack_params(wq, bq, wk, bk, wv, bv, wp, bp, *, n_heads, d_feature, d_model):
    """Pack torch-layout per-head weights into kernel-ready, lane-aligned,
    bf16 layouts with the softmax scale folded into the Q projection."""
    dfp = _round_up(d_feature, 128)          # lane-tile aligned per-head width
    scale = 1.0 / (d_feature ** 0.5)

    def _pack_w(w, s=1.0):
        # (H, df, d_model) -> (d_model, H*dfp), zero-padded columns per head
        w = jnp.transpose(w, (2, 0, 1)) * s                     # (d_model, H, df)
        w = jnp.pad(w, ((0, 0), (0, 0), (0, dfp - d_feature)))
        return w.reshape(d_model, n_heads * dfp)

    def _pack_b(b, s=1.0):
        b = jnp.pad(b * s, ((0, 0), (0, dfp - d_feature)))      # (H, dfp)
        return b.reshape(n_heads * dfp)

    wqkv = jnp.stack([_pack_w(wq, scale), _pack_w(wk), _pack_w(wv)], axis=0)
    bqkv = jnp.stack([_pack_b(bq, scale), _pack_b(bk), _pack_b(bv)], axis=0)

    # projection: y = x_concat @ wp.T + bp ; insert zero rows at padded features
    wp_t = wp.T.reshape(n_heads, d_feature, d_model)
    wp_t = jnp.pad(wp_t, ((0, 0), (0, dfp - d_feature), (0, 0)))
    wp_t = wp_t.reshape(n_heads * dfp, d_model)

    return {
        "n_heads": n_heads,
        "wqkv": wqkv.astype(jnp.bfloat16),
        "bqkv": bqkv.astype(jnp.float32),
        "wp_t": wp_t.astype(jnp.bfloat16),
        "bp": bp.reshape(1, d_model).astype(jnp.float32),
    }


# ----------------------------- reference (pure JAX) -------------------------- #

def reference_forward(queries, keys_in, values, wq, bq, wk, bk, wv, bv, wp, bp):
    d_feature = wq.shape[1]
    Q = jnp.einsum('bsd,hfd->bhsf', queries, wq) + bq[None, :, None, :]
    K = jnp.einsum('bsd,hfd->bhsf', keys_in, wk) + bk[None, :, None, :]
    V = jnp.einsum('bsd,hfd->bhsf', values, wv) + bv[None, :, None, :]
    logits = jnp.einsum('bhqf,bhkf->bhqk', Q, K) / jnp.sqrt(jnp.float32(d_feature))
    w = jax.nn.softmax(logits, axis=-1)
    out = jnp.einsum('bhqk,bhkf->bhqf', w, V)
    B, n_heads, Sq, _ = out.shape
    Sk = w.shape[-1]
    x = jnp.transpose(out, (0, 2, 1, 3)).reshape(B, Sq, n_heads * d_feature)
    attn = jnp.transpose(w, (0, 2, 1, 3)).reshape(B, Sq, n_heads * Sk)
    y = x @ wp.T + bp
    return y, attn


# ----------------------------- main ------------------------------------------ #

if __name__ == "__main__":
    B, Sq, Sk = 2, 8, 8
    n_heads, d_feature = 4, 8
    d_model = n_heads * d_feature          # 32

    # deterministic inputs
    kq, kk, kv = jax.random.split(jax.random.PRNGKey(0), 3)
    queries = jax.random.normal(kq, (B, Sq, d_model), jnp.float32)
    keys_in = jax.random.normal(kk, (B, Sk, d_model), jnp.float32)
    values = jax.random.normal(kv, (B, Sk, d_model), jnp.float32)

    # deterministic parameters (torch Linear layout: W (out, in), b (out,))
    pk = jax.random.split(jax.random.PRNGKey(1), 8)
    wq = 0.1 * jax.random.normal(pk[0], (n_heads, d_feature, d_model), jnp.float32)
    bq = 0.1 * jax.random.normal(pk[1], (n_heads, d_feature), jnp.float32)
    wk = 0.1 * jax.random.normal(pk[2], (n_heads, d_feature, d_model), jnp.float32)
    bk = 0.1 * jax.random.normal(pk[3], (n_heads, d_feature), jnp.float32)
    wv = 0.1 * jax.random.normal(pk[4], (n_heads, d_feature, d_model), jnp.float32)
    bv = 0.1 * jax.random.normal(pk[5], (n_heads, d_feature), jnp.float32)
    wp = 0.1 * jax.random.normal(pk[6], (d_model, d_model), jnp.float32)
    bp = 0.1 * jax.random.normal(pk[7], (d_model,), jnp.float32)

    params = pack_params(wq, bq, wk, bk, wv, bv, wp, bp,
                         n_heads=n_heads, d_feature=d_feature, d_model=d_model)

    y, attn = multihead_attention_xl(queries, keys_in, values, params)
    y = jax.block_until_ready(y)
    attn = jax.block_until_ready(attn)

    y_ref, attn_ref = reference_forward(queries, keys_in, values,
                                        wq, bq, wk, bk, wv, bv, wp, bp)

    assert y.shape == (B, Sq, d_model)
    assert attn.shape == (B, Sq, n_heads * Sk)
    # Tolerance reflects bf16 MXU operands + approx reciprocal (f32 reference).
    assert jnp.allclose(y, y_ref, atol=3e-2, rtol=3e-2)
    assert jnp.allclose(attn, attn_ref, atol=3e-2, rtol=3e-2)

    print("KERNEL_OK")
</pallas_src>

<mosaic_0001>
module attributes {stable_mosaic.version = 11 : i64} {
  func.func @_fused_mha_kernel(%arg0: i32, %arg1: i32, %arg2: memref<1x8x32xf32, #tpu.memory_space<vmem>>, %arg3: memref<1x8x32xf32, #tpu.memory_space<vmem>>, %arg4: memref<1x8x32xf32, #tpu.memory_space<vmem>>, %arg5: memref<3x32x512xbf16, #tpu.memory_space<vmem>>, %arg6: memref<3x512xf32, #tpu.memory_space<vmem>>, %arg7: memref<512x32xbf16, #tpu.memory_space<vmem>>, %arg8: memref<1x32xf32, #tpu.memory_space<vmem>>, %arg9: memref<1x8x32xf32, #tpu.memory_space<vmem>>, %arg10: memref<1x8x32xf32, #tpu.memory_space<vmem>>, %arg11: memref<8x512xbf16, #tpu.memory_space<vmem>>, %arg12: memref<8x512xbf16, #tpu.memory_space<vmem>>, %arg13: memref<8x512xbf16, #tpu.memory_space<vmem>>) attributes {dimension_semantics = [#tpu.dimension_semantics<parallel>, #tpu.dimension_semantics<arbitrary>], iteration_bounds = array<i64: 2, 1>, scalar_prefetch = 0 : i64, scratch_operands = 3 : i64, tpu.core_type = #tpu.core_type<tc>, window_params = [{transform_indices = @transform_0, window_bounds = array<i64: 1, 8, 32>}, {transform_indices = @transform_1, window_bounds = array<i64: 1, 8, 32>}, {transform_indices = @transform_2, window_bounds = array<i64: 1, 8, 32>}, {pipeline_mode = #tpu.pipeline_mode<synchronous>, transform_indices = @transform_3, window_bounds = array<i64: 3, 32, 512>}, {pipeline_mode = #tpu.pipeline_mode<synchronous>, transform_indices = @transform_4, window_bounds = array<i64: 3, 512>}, {pipeline_mode = #tpu.pipeline_mode<synchronous>, transform_indices = @transform_5, window_bounds = array<i64: 512, 32>}, {pipeline_mode = #tpu.pipeline_mode<synchronous>, transform_indices = @transform_6, window_bounds = array<i64: 1, 32>}, {transform_indices = @transform_7, window_bounds = array<i64: 1, 8, 32>}, {transform_indices = @transform_8, window_bounds = array<i64: 1, 8, 32>}]} {
    %c0_i32 = arith.constant 0 : i32
    %0 = arith.cmpi eq, %arg1, %c0_i32 : i32
    %1 = arith.extui %0 : i1 to i32
    %c0_i32_0 = arith.constant 0 : i32
    %2 = arith.cmpi ne, %1, %c0_i32_0 : i32
    scf.if %2 {
      %c0_64 = arith.constant 0 : index
      %c0_65 = arith.constant 0 : index
      %c0_66 = arith.constant 0 : index
      %106 = vector.load %arg3[%c0_64, %c0_65, %c0_66] : memref<1x8x32xf32, #tpu.memory_space<vmem>>, vector<1x8x32xf32>
      %107 = vector.shape_cast %106 : vector<1x8x32xf32> to vector<8x32xf32>
      %108 = arith.truncf %107 : vector<8x32xf32> to vector<8x32xbf16>
      %c0_67 = arith.constant 0 : index
      %c0_68 = arith.constant 0 : index
      %c0_69 = arith.constant 0 : index
      %109 = vector.load %arg4[%c0_67, %c0_68, %c0_69] : memref<1x8x32xf32, #tpu.memory_space<vmem>>, vector<1x8x32xf32>
      %110 = vector.shape_cast %109 : vector<1x8x32xf32> to vector<8x32xf32>
      %111 = arith.truncf %110 : vector<8x32xf32> to vector<8x32xbf16>
      %c1 = arith.constant 1 : index
      %c0_70 = arith.constant 0 : index
      %c0_71 = arith.constant 0 : index
      %112 = vector.load %arg5[%c1, %c0_70, %c0_71] : memref<3x32x512xbf16, #tpu.memory_space<vmem>>, vector<1x32x512xbf16>
      %113 = vector.shape_cast %112 : vector<1x32x512xbf16> to vector<32x512xbf16>
      %cst_72 = arith.constant dense<0.000000e+00> : vector<8x512xf32>
      %114 = tpu.matmul %108, %113, %cst_72 {dimension_numbers = #tpu.dot_dimension_numbers<[1], [0], [0], [1], [0, 0, 1, 1], [], []>} : vector<8x32xbf16>, vector<32x512xbf16>, vector<8x512xf32> -> vector<8x512xf32>
      %c1_73 = arith.constant 1 : index
      %c0_74 = arith.constant 0 : index
      %115 = vector.load %arg6[%c1_73, %c0_74] : memref<3x512xf32, #tpu.memory_space<vmem>>, vector<1x512xf32>
      %116 = vector.broadcast %115 : vector<1x512xf32> to vector<8x512xf32>
      %117 = arith.addf %114, %116 : vector<8x512xf32>
      %c2 = arith.constant 2 : index
      %c0_75 = arith.constant 0 : index
      %c0_76 = arith.constant 0 : index
      %118 = vector.load %arg5[%c2, %c0_75, %c0_76] : memref<3x32x512xbf16, #tpu.memory_space<vmem>>, vector<1x32x512xbf16>
      %119 = vector.shape_cast %118 : vector<1x32x512xbf16> to vector<32x512xbf16>
      %cst_77 = arith.constant dense<0.000000e+00> : vector<8x512xf32>
      %120 = tpu.matmul %111, %119, %cst_77 {dimension_numbers = #tpu.dot_dimension_numbers<[1], [0], [0], [1], [0, 0, 1, 1], [], []>} : vector<8x32xbf16>, vector<32x512xbf16>, vector<8x512xf32> -> vector<8x512xf32>
      %c2_78 = arith.constant 2 : index
      %c0_79 = arith.constant 0 : index
      %121 = vector.load %arg6[%c2_78, %c0_79] : memref<3x512xf32, #tpu.memory_space<vmem>>, vector<1x512xf32>
      %122 = vector.broadcast %121 : vector<1x512xf32> to vector<8x512xf32>
      %123 = arith.addf %120, %122 : vector<8x512xf32>
      %124 = arith.truncf %117 : vector<8x512xf32> to vector<8x512xbf16>
      %c0_80 = arith.constant 0 : index
      %c0_81 = arith.constant 0 : index
      %125 = vector.load %arg11[%c0_80, %c0_81] : memref<8x512xbf16, #tpu.memory_space<vmem>>, vector<8x512xbf16>
      tpu.vector_store %arg11[%c0_80, %c0_81], %124 {strides = array<i32>} : memref<8x512xbf16, #tpu.memory_space<vmem>>, vector<8x512xbf16>,
      %126 = arith.truncf %123 : vector<8x512xf32> to vector<8x512xbf16>
      %c0_82 = arith.constant 0 : index
      %c0_83 = arith.constant 0 : index
      %127 = vector.load %arg12[%c0_82, %c0_83] : memref<8x512xbf16, #tpu.memory_space<vmem>>, vector<8x512xbf16>
      tpu.vector_store %arg12[%c0_82, %c0_83], %126 {strides = array<i32>} : memref<8x512xbf16, #tpu.memory_space<vmem>>, vector<8x512xbf16>,
    } else {
    }
    %c0 = arith.constant 0 : index
    %c0_1 = arith.constant 0 : index
    %c0_2 = arith.constant 0 : index
    %3 = vector.load %arg2[%c0, %c0_1, %c0_2] : memref<1x8x32xf32, #tpu.memory_space<vmem>>, vector<1x8x32xf32>
    %4 = vector.shape_cast %3 : vector<1x8x32xf32> to vector<8x32xf32>
    %5 = arith.truncf %4 : vector<8x32xf32> to vector<8x32xbf16>
    %c0_3 = arith.constant 0 : index
    %c0_4 = arith.constant 0 : index
    %c0_5 = arith.constant 0 : index
    %6 = vector.load %arg5[%c0_3, %c0_4, %c0_5] : memref<3x32x512xbf16, #tpu.memory_space<vmem>>, vector<1x32x512xbf16>
    %7 = vector.shape_cast %6 : vector<1x32x512xbf16> to vector<32x512xbf16>
    %cst = arith.constant dense<0.000000e+00> : vector<8x512xf32>
    %8 = tpu.matmul %5, %7, %cst {dimension_numbers = #tpu.dot_dimension_numbers<[1], [0], [0], [1], [0, 0, 1, 1], [], []>} : vector<8x32xbf16>, vector<32x512xbf16>, vector<8x512xf32> -> vector<8x512xf32>
    %c0_6 = arith.constant 0 : index
    %c0_7 = arith.constant 0 : index
    %9 = vector.load %arg6[%c0_6, %c0_7] : memref<3x512xf32, #tpu.memory_space<vmem>>, vector<1x512xf32>
    %10 = vector.broadcast %9 : vector<1x512xf32> to vector<8x512xf32>
    %11 = arith.addf %8, %10 : vector<8x512xf32>
    %12 = arith.truncf %11 : vector<8x512xf32> to vector<8x512xbf16>
    %13 = vector.extract_strided_slice %12 {offsets = [0, 0], sizes = [8, 128], strides = [1, 1]} : vector<8x512xbf16> to vector<8x128xbf16>
    %c0_8 = arith.constant 0 : index
    %c0_9 = arith.constant 0 : index
    %14 = vector.load %arg11[%c0_8, %c0_9] : memref<8x512xbf16, #tpu.memory_space<vmem>>, vector<8x128xbf16>
    %c0_10 = arith.constant 0 : index
    %c0_11 = arith.constant 0 : index
    %15 = vector.load %arg12[%c0_10, %c0_11] : memref<8x512xbf16, #tpu.memory_space<vmem>>, vector<8x128xbf16>
    %cst_12 = arith.constant dense<0.000000e+00> : vector<8x8xf32>
    %16 = tpu.matmul %13, %14, %cst_12 {dimension_numbers = #tpu.dot_dimension_numbers<[1], [1], [0], [0], [0, 0, 1, 0], [], []>} : vector<8x128xbf16>, vector<8x128xbf16>, vector<8x8xf32> -> vector<8x8xf32>
    %cst_13 = arith.constant dense<0xFF800000> : vector<8xf32>
    %17 = vector.multi_reduction <maximumf>, %16, %cst_13 [1] : vector<8x8xf32> to vector<8xf32>
    %18 = vector.shape_cast %17 : vector<8xf32> to vector<8x1xf32>
    %19 = vector.broadcast %18 : vector<8x1xf32> to vector<8x8xf32>
    %20 = arith.subf %16, %19 : vector<8x8xf32>
    %21 = math.exp %20 : vector<8x8xf32>
    %cst_14 = arith.constant dense<0.000000e+00> : vector<8xf32>
    %22 = vector.multi_reduction <add>, %21, %cst_14 [1] : vector<8x8xf32> to vector<8xf32>
    %23 = vector.shape_cast %22 : vector<8xf32> to vector<8x1xf32>
    %24 = tpu.reciprocal %23 {approx = true} : vector<8x1xf32> -> vector<8x1xf32>
    %25 = vector.broadcast %24 : vector<8x1xf32> to vector<8x8xf32>
    %26 = arith.mulf %21, %25 : vector<8x8xf32>
    %c0_15 = arith.constant 0 : index
    %c0_16 = arith.constant 0 : index
    %c0_17 = arith.constant 0 : index
    %27 = vector.load %arg10[%c0_15, %c0_16, %c0_17] : memref<1x8x32xf32, #tpu.memory_space<vmem>>, vector<1x8x8xf32>
    %28 = vector.shape_cast %27 : vector<1x8x8xf32> to vector<8x8xf32>
    %29 = vector.shape_cast %26 : vector<8x8xf32> to vector<1x8x8xf32>
    tpu.vector_store %arg10[%c0_15, %c0_16, %c0_17], %29 {strides = array<i32>} : memref<1x8x32xf32, #tpu.memory_space<vmem>>, vector<1x8x8xf32>,
    %30 = arith.truncf %26 : vector<8x8xf32> to vector<8x8xbf16>
    %cst_18 = arith.constant dense<0.000000e+00> : vector<8x128xf32>
    %31 = tpu.matmul %30, %15, %cst_18 {dimension_numbers = #tpu.dot_dimension_numbers<[1], [0], [0], [1], [0, 0, 1, 1], [], []>} : vector<8x8xbf16>, vector<8x128xbf16>, vector<8x128xf32> -> vector<8x128xf32>
    %32 = arith.truncf %31 : vector<8x128xf32> to vector<8x128xbf16>
    %c0_19 = arith.constant 0 : index
    %c0_20 = arith.constant 0 : index
    %33 = vector.load %arg13[%c0_19, %c0_20] : memref<8x512xbf16, #tpu.memory_space<vmem>>, vector<8x128xbf16>
    tpu.vector_store %arg13[%c0_19, %c0_20], %32 {strides = array<i32>} : memref<8x512xbf16, #tpu.memory_space<vmem>>, vector<8x128xbf16>,
    %34 = vector.extract_strided_slice %12 {offsets = [0, 128], sizes = [8, 128], strides = [1, 1]} : vector<8x512xbf16> to vector<8x128xbf16>
    %c0_21 = arith.constant 0 : index
    %c128 = arith.constant 128 : index
    %35 = vector.load %arg11[%c0_21, %c128] : memref<8x512xbf16, #tpu.memory_space<vmem>>, vector<8x128xbf16>
    %c0_22 = arith.constant 0 : index
    %c128_23 = arith.constant 128 : index
    %36 = vector.load %arg12[%c0_22, %c128_23] : memref<8x512xbf16, #tpu.memory_space<vmem>>, vector<8x128xbf16>
    %cst_24 = arith.constant dense<0.000000e+00> : vector<8x8xf32>
    %37 = tpu.matmul %34, %35, %cst_24 {dimension_numbers = #tpu.dot_dimension_numbers<[1], [1], [0], [0], [0, 0, 1, 0], [], []>} : vector<8x128xbf16>, vector<8x128xbf16>, vector<8x8xf32> -> vector<8x8xf32>
    %cst_25 = arith.constant dense<0xFF800000> : vector<8xf32>
    %38 = vector.multi_reduction <maximumf>, %37, %cst_25 [1] : vector<8x8xf32> to vector<8xf32>
    %39 = vector.shape_cast %38 : vector<8xf32> to vector<8x1xf32>
    %40 = vector.broadcast %39 : vector<8x1xf32> to vector<8x8xf32>
    %41 = arith.subf %37, %40 : vector<8x8xf32>
    %42 = math.exp %41 : vector<8x8xf32>
    %cst_26 = arith.constant dense<0.000000e+00> : vector<8xf32>
    %43 = vector.multi_reduction <add>, %42, %cst_26 [1] : vector<8x8xf32> to vector<8xf32>
    %44 = vector.shape_cast %43 : vector<8xf32> to vector<8x1xf32>
    %45 = tpu.reciprocal %44 {approx = true} : vector<8x1xf32> -> vector<8x1xf32>
    %46 = vector.broadcast %45 : vector<8x1xf32> to vector<8x8xf32>
    %47 = arith.mulf %42, %46 : vector<8x8xf32>
    %c0_27 = arith.constant 0 : index
    %c0_28 = arith.constant 0 : index
    %c8 = arith.constant 8 : index
    %48 = vector.load %arg10[%c0_27, %c0_28, %c8] : memref<1x8x32xf32, #tpu.memory_space<vmem>>, vector<1x8x8xf32>
    %49 = vector.shape_cast %48 : vector<1x8x8xf32> to vector<8x8xf32>
    %50 = vector.shape_cast %47 : vector<8x8xf32> to vector<1x8x8xf32>
    tpu.vector_store %arg10[%c0_27, %c0_28, %c8], %50 {strides = array<i32>} : memref<1x8x32xf32, #tpu.memory_space<vmem>>, vector<1x8x8xf32>,
    %51 = arith.truncf %47 : vector<8x8xf32> to vector<8x8xbf16>
    %cst_29 = arith.constant dense<0.000000e+00> : vector<8x128xf32>
    %52 = tpu.matmul %51, %36, %cst_29 {dimension_numbers = #tpu.dot_dimension_numbers<[1], [0], [0], [1], [0, 0, 1, 1], [], []>} : vector<8x8xbf16>, vector<8x128xbf16>, vector<8x128xf32> -> vector<8x128xf32>
    %53 = arith.truncf %52 : vector<8x128xf32> to vector<8x128xbf16>
    %c0_30 = arith.constant 0 : index
    %c128_31 = arith.constant 128 : index
    %54 = vector.load %arg13[%c0_30, %c128_31] : memref<8x512xbf16, #tpu.memory_space<vmem>>, vector<8x128xbf16>
    tpu.vector_store %arg13[%c0_30, %c128_31], %53 {strides = array<i32>} : memref<8x512xbf16, #tpu.memory_space<vmem>>, vector<8x128xbf16>,
    %55 = vector.extract_strided_slice %12 {offsets = [0, 256], sizes = [8, 128], strides = [1, 1]} : vector<8x512xbf16> to vector<8x128xbf16>
    %c0_32 = arith.constant 0 : index
    %c256 = arith.constant 256 : index
    %56 = vector.load %arg11[%c0_32, %c256] : memref<8x512xbf16, #tpu.memory_space<vmem>>, vector<8x128xbf16>
    %c0_33 = arith.constant 0 : index
    %c256_34 = arith.constant 256 : index
    %57 = vector.load %arg12[%c0_33, %c256_34] : memref<8x512xbf16, #tpu.memory_space<vmem>>, vector<8x128xbf16>
    %cst_35 = arith.constant dense<0.000000e+00> : vector<8x8xf32>
    %58 = tpu.matmul %55, %56, %cst_35 {dimension_numbers = #tpu.dot_dimension_numbers<[1], [1], [0], [0], [0, 0, 1, 0], [], []>} : vector<8x128xbf16>, vector<8x128xbf16>, vector<8x8xf32> -> vector<8x8xf32>
    %cst_36 = arith.constant dense<0xFF800000> : vector<8xf32>
    %59 = vector.multi_reduction <maximumf>, %58, %cst_36 [1] : vector<8x8xf32> to vector<8xf32>
    %60 = vector.shape_cast %59 : vector<8xf32> to vector<8x1xf32>
    %61 = vector.broadcast %60 : vector<8x1xf32> to vector<8x8xf32>
    %62 = arith.subf %58, %61 : vector<8x8xf32>
    %63 = math.exp %62 : vector<8x8xf32>
    %cst_37 = arith.constant dense<0.000000e+00> : vector<8xf32>
    %64 = vector.multi_reduction <add>, %63, %cst_37 [1] : vector<8x8xf32> to vector<8xf32>
    %65 = vector.shape_cast %64 : vector<8xf32> to vector<8x1xf32>
    %66 = tpu.reciprocal %65 {approx = true} : vector<8x1xf32> -> vector<8x1xf32>
    %67 = vector.broadcast %66 : vector<8x1xf32> to vector<8x8xf32>
    %68 = arith.mulf %63, %67 : vector<8x8xf32>
    %c0_38 = arith.constant 0 : index
    %c0_39 = arith.constant 0 : index
    %c16 = arith.constant 16 : index
    %69 = vector.load %arg10[%c0_38, %c0_39, %c16] : memref<1x8x32xf32, #tpu.memory_space<vmem>>, vector<1x8x8xf32>
    %70 = vector.shape_cast %69 : vector<1x8x8xf32> to vector<8x8xf32>
    %71 = vector.shape_cast %68 : vector<8x8xf32> to vector<1x8x8xf32>
    tpu.vector_store %arg10[%c0_38, %c0_39, %c16], %71 {strides = array<i32>} : memref<1x8x32xf32, #tpu.memory_space<vmem>>, vector<1x8x8xf32>,
    %72 = arith.truncf %68 : vector<8x8xf32> to vector<8x8xbf16>
    %cst_40 = arith.constant dense<0.000000e+00> : vector<8x128xf32>
    %73 = tpu.matmul %72, %57, %cst_40 {dimension_numbers = #tpu.dot_dimension_numbers<[1], [0], [0], [1], [0, 0, 1, 1], [], []>} : vector<8x8xbf16>, vector<8x128xbf16>, vector<8x128xf32> -> vector<8x128xf32>
    %74 = arith.truncf %73 : vector<8x128xf32> to vector<8x128xbf16>
    %c0_41 = arith.constant 0 : index
    %c256_42 = arith.constant 256 : index
    %75 = vector.load %arg13[%c0_41, %c256_42] : memref<8x512xbf16, #tpu.memory_space<vmem>>, vector<8x128xbf16>
    tpu.vector_store %arg13[%c0_41, %c256_42], %74 {strides = array<i32>} : memref<8x512xbf16, #tpu.memory_space<vmem>>, vector<8x128xbf16>,
    %76 = vector.extract_strided_slice %12 {offsets = [0, 384], sizes = [8, 128], strides = [1, 1]} : vector<8x512xbf16> to vector<8x128xbf16>
    %c0_43 = arith.constant 0 : index
    %c384 = arith.constant 384 : index
    %77 = vector.load %arg11[%c0_43, %c384] : memref<8x512xbf16, #tpu.memory_space<vmem>>, vector<8x128xbf16>
    %c0_44 = arith.constant 0 : index
    %c384_45 = arith.constant 384 : index
    %78 = vector.load %arg12[%c0_44, %c384_45] : memref<8x512xbf16, #tpu.memory_space<vmem>>, vector<8x128xbf16>
    %cst_46 = arith.constant dense<0.000000e+00> : vector<8x8xf32>
    %79 = tpu.matmul %76, %77, %cst_46 {dimension_numbers = #tpu.dot_dimension_numbers<[1], [1], [0], [0], [0, 0, 1, 0], [], []>} : vector<8x128xbf16>, vector<8x128xbf16>, vector<8x8xf32> -> vector<8x8xf32>
    %cst_47 = arith.constant dense<0xFF800000> : vector<8xf32>
    %80 = vector.multi_reduction <maximumf>, %79, %cst_47 [1] : vector<8x8xf32> to vector<8xf32>
    %81 = vector.shape_cast %80 : vector<8xf32> to vector<8x1xf32>
    %82 = vector.broadcast %81 : vector<8x1xf32> to vector<8x8xf32>
    %83 = arith.subf %79, %82 : vector<8x8xf32>
    %84 = math.exp %83 : vector<8x8xf32>
    %cst_48 = arith.constant dense<0.000000e+00> : vector<8xf32>
    %85 = vector.multi_reduction <add>, %84, %cst_48 [1] : vector<8x8xf32> to vector<8xf32>
    %86 = vector.shape_cast %85 : vector<8xf32> to vector<8x1xf32>
    %87 = tpu.reciprocal %86 {approx = true} : vector<8x1xf32> -> vector<8x1xf32>
    %88 = vector.broadcast %87 : vector<8x1xf32> to vector<8x8xf32>
    %89 = arith.mulf %84, %88 : vector<8x8xf32>
    %c0_49 = arith.constant 0 : index
    %c0_50 = arith.constant 0 : index
    %c24 = arith.constant 24 : index
    %90 = vector.load %arg10[%c0_49, %c0_50, %c24] : memref<1x8x32xf32, #tpu.memory_space<vmem>>, vector<1x8x8xf32>
    %91 = vector.shape_cast %90 : vector<1x8x8xf32> to vector<8x8xf32>
    %92 = vector.shape_cast %89 : vector<8x8xf32> to vector<1x8x8xf32>
    tpu.vector_store %arg10[%c0_49, %c0_50, %c24], %92 {strides = array<i32>} : memref<1x8x32xf32, #tpu.memory_space<vmem>>, vector<1x8x8xf32>,
    %93 = arith.truncf %89 : vector<8x8xf32> to vector<8x8xbf16>
    %cst_51 = arith.constant dense<0.000000e+00> : vector<8x128xf32>
    %94 = tpu.matmul %93, %78, %cst_51 {dimension_numbers = #tpu.dot_dimension_numbers<[1], [0], [0], [1], [0, 0, 1, 1], [], []>} : vector<8x8xbf16>, vector<8x128xbf16>, vector<8x128xf32> -> vector<8x128xf32>
    %95 = arith.truncf %94 : vector<8x128xf32> to vector<8x128xbf16>
    %c0_52 = arith.constant 0 : index
    %c384_53 = arith.constant 384 : index
    %96 = vector.load %arg13[%c0_52, %c384_53] : memref<8x512xbf16, #tpu.memory_space<vmem>>, vector<8x128xbf16>
    tpu.vector_store %arg13[%c0_52, %c384_53], %95 {strides = array<i32>} : memref<8x512xbf16, #tpu.memory_space<vmem>>, vector<8x128xbf16>,
    %c0_54 = arith.constant 0 : index
    %c0_55 = arith.constant 0 : index
    %97 = vector.load %arg13[%c0_54, %c0_55] : memref<8x512xbf16, #tpu.memory_space<vmem>>, vector<8x512xbf16>
    %c0_56 = arith.constant 0 : index
    %c0_57 = arith.constant 0 : index
    %98 = vector.load %arg7[%c0_56, %c0_57] : memref<512x32xbf16, #tpu.memory_space<vmem>>, vector<512x32xbf16>
    %cst_58 = arith.constant dense<0.000000e+00> : vector<8x32xf32>
    %99 = tpu.matmul %97, %98, %cst_58 {dimension_numbers = #tpu.dot_dimension_numbers<[1], [0], [0], [1], [0, 0, 1, 1], [], []>} : vector<8x512xbf16>, vector<512x32xbf16>, vector<8x32xf32> -> vector<8x32xf32>
    %c0_59 = arith.constant 0 : index
    %c0_60 = arith.constant 0 : index
    %100 = vector.load %arg8[%c0_59, %c0_60] : memref<1x32xf32, #tpu.memory_space<vmem>>, vector<1x32xf32>
    %101 = vector.broadcast %100 : vector<1x32xf32> to vector<8x32xf32>
    %102 = arith.addf %99, %101 : vector<8x32xf32>
    %c0_61 = arith.constant 0 : index
    %c0_62 = arith.constant 0 : index
    %c0_63 = arith.constant 0 : index
    %103 = vector.load %arg9[%c0_61, %c0_62, %c0_63] : memref<1x8x32xf32, #tpu.memory_space<vmem>>, vector<1x8x32xf32>
    %104 = vector.shape_cast %103 : vector<1x8x32xf32> to vector<8x32xf32>
    %105 = vector.shape_cast %102 : vector<8x32xf32> to vector<1x8x32xf32>
    tpu.vector_store %arg9[%c0_61, %c0_62, %c0_63], %105 {strides = array<i32>} : memref<1x8x32xf32, #tpu.memory_space<vmem>>, vector<1x8x32xf32>,
    return
  }
  func.func @transform_0(%arg0: i32, %arg1: i32) -> (i32, i32, i32) {
    %c0_i32 = arith.constant 0 : i32
    %c0_i32_0 = arith.constant 0 : i32
    return %arg0, %arg1, %c0_i32 : i32, i32, i32
  }
  func.func @transform_1(%arg0: i32, %arg1: i32) -> (i32, i32, i32) {
    %c0_i32 = arith.constant 0 : i32
    %c0_i32_0 = arith.constant 0 : i32
    %c0_i32_1 = arith.constant 0 : i32
    return %arg0, %c0_i32, %c0_i32_0 : i32, i32, i32
  }
  func.func @transform_2(%arg0: i32, %arg1: i32) -> (i32, i32, i32) {
    %c0_i32 = arith.constant 0 : i32
    %c0_i32_0 = arith.constant 0 : i32
    %c0_i32_1 = arith.constant 0 : i32
    return %arg0, %c0_i32, %c0_i32_0 : i32, i32, i32
  }
  func.func @transform_3(%arg0: i32, %arg1: i32) -> (i32, i32, i32) {
    %c0_i32 = arith.constant 0 : i32
    %c0_i32_0 = arith.constant 0 : i32
    %c0_i32_1 = arith.constant 0 : i32
    %c0_i32_2 = arith.constant 0 : i32
    return %c0_i32, %c0_i32_0, %c0_i32_1 : i32, i32, i32
  }
  func.func @transform_4(%arg0: i32, %arg1: i32) -> (i32, i32) {
    %c0_i32 = arith.constant 0 : i32
    %c0_i32_0 = arith.constant 0 : i32
    %c0_i32_1 = arith.constant 0 : i32
    return %c0_i32, %c0_i32_0 : i32, i32
  }
  func.func @transform_5(%arg0: i32, %arg1: i32) -> (i32, i32) {
    %c0_i32 = arith.constant 0 : i32
    %c0_i32_0 = arith.constant 0 : i32
    %c0_i32_1 = arith.constant 0 : i32
    return %c0_i32, %c0_i32_0 : i32, i32
  }
  func.func @transform_6(%arg0: i32, %arg1: i32) -> (i32, i32) {
    %c0_i32 = arith.constant 0 : i32
    %c0_i32_0 = arith.constant 0 : i32
    %c0_i32_1 = arith.constant 0 : i32
    return %c0_i32, %c0_i32_0 : i32, i32
  }
  func.func @transform_7(%arg0: i32, %arg1: i32) -> (i32, i32, i32) {
    %c0_i32 = arith.constant 0 : i32
    %c0_i32_0 = arith.constant 0 : i32
    return %arg0, %arg1, %c0_i32 : i32, i32, i32
  }
  func.func @transform_8(%arg0: i32, %arg1: i32) -> (i32, i32, i32) {
    %c0_i32 = arith.constant 0 : i32
    %c0_i32_0 = arith.constant 0 : i32
    return %arg0, %arg1, %c0_i32 : i32, i32, i32
  }
}

module attributes {stable_mosaic.version = 11 : i64} {
  func.func @_fused_mha_kernel(%arg0: i32, %arg1: i32, %arg2: memref<1x8x32xf32, #tpu.memory_space<vmem>>, %arg3: memref<1x8x32xf32, #tpu.memory_space<vmem>>, %arg4: memref<1x8x32xf32, #tpu.memory_space<vmem>>, %arg5: memref<3x32x512xbf16, #tpu.memory_space<vmem>>, %arg6: memref<3x512xf32, #tpu.memory_space<vmem>>, %arg7: memref<512x32xbf16, #tpu.memory_space<vmem>>, %arg8: memref<1x32xf32, #tpu.memory_space<vmem>>, %arg9: memref<1x8x32xf32, #tpu.memory_space<vmem>>, %arg10: memref<1x8x32xf32, #tpu.memory_space<vmem>>, %arg11: memref<8x512xbf16, #tpu.memory_space<vmem>>, %arg12: memref<8x512xbf16, #tpu.memory_space<vmem>>, %arg13: memref<8x512xbf16, #tpu.memory_space<vmem>>) attributes {dimension_semantics = [#tpu.dimension_semantics<parallel>, #tpu.dimension_semantics<arbitrary>], iteration_bounds = array<i64: 2, 1>, scalar_prefetch = 0 : i64, scratch_operands = 3 : i64, tpu.core_type = #tpu.core_type<tc>, window_params = [{transform_indices = @transform_0, window_bounds = array<i64: 1, 8, 32>}, {transform_indices = @transform_1, window_bounds = array<i64: 1, 8, 32>}, {transform_indices = @transform_2, window_bounds = array<i64: 1, 8, 32>}, {pipeline_mode = #tpu.pipeline_mode<synchronous>, transform_indices = @transform_3, window_bounds = array<i64: 3, 32, 512>}, {pipeline_mode = #tpu.pipeline_mode<synchronous>, transform_indices = @transform_4, window_bounds = array<i64: 3, 512>}, {pipeline_mode = #tpu.pipeline_mode<synchronous>, transform_indices = @transform_5, window_bounds = array<i64: 512, 32>}, {pipeline_mode = #tpu.pipeline_mode<synchronous>, transform_indices = @transform_6, window_bounds = array<i64: 1, 32>}, {transform_indices = @transform_7, window_bounds = array<i64: 1, 8, 32>}, {transform_indices = @transform_8, window_bounds = array<i64: 1, 8, 32>}]} {
    %c0_i32 = arith.constant 0 : i32
    %0 = arith.cmpi eq, %arg1, %c0_i32 : i32
    %1 = arith.extui %0 : i1 to i32
    %c0_i32_0 = arith.constant 0 : i32
    %2 = arith.cmpi ne, %1, %c0_i32_0 : i32
    scf.if %2 {
      %c0_64 = arith.constant 0 : index
      %c0_65 = arith.constant 0 : index
      %c0_66 = arith.constant 0 : index
      %106 = vector.load %arg3[%c0_64, %c0_65, %c0_66] : memref<1x8x32xf32, #tpu.memory_space<vmem>>, vector<1x8x32xf32>
      %107 = vector.shape_cast %106 : vector<1x8x32xf32> to vector<8x32xf32>
      %108 = arith.truncf %107 : vector<8x32xf32> to vector<8x32xbf16>
      %c0_67 = arith.constant 0 : index
      %c0_68 = arith.constant 0 : index
      %c0_69 = arith.constant 0 : index
      %109 = vector.load %arg4[%c0_67, %c0_68, %c0_69] : memref<1x8x32xf32, #tpu.memory_space<vmem>>, vector<1x8x32xf32>
      %110 = vector.shape_cast %109 : vector<1x8x32xf32> to vector<8x32xf32>
      %111 = arith.truncf %110 : vector<8x32xf32> to vector<8x32xbf16>
      %c1 = arith.constant 1 : index
      %c0_70 = arith.constant 0 : index
      %c0_71 = arith.constant 0 : index
      %112 = vector.load %arg5[%c1, %c0_70, %c0_71] : memref<3x32x512xbf16, #tpu.memory_space<vmem>>, vector<1x32x512xbf16>
      %113 = vector.shape_cast %112 : vector<1x32x512xbf16> to vector<32x512xbf16>
      %cst_72 = arith.constant dense<0.000000e+00> : vector<8x512xf32>
      %114 = tpu.matmul %108, %113, %cst_72 {dimension_numbers = #tpu.dot_dimension_numbers<[1], [0], [0], [1], [0, 0, 1, 1], [], []>} : vector<8x32xbf16>, vector<32x512xbf16>, vector<8x512xf32> -> vector<8x512xf32>
      %c1_73 = arith.constant 1 : index
      %c0_74 = arith.constant 0 : index
      %115 = vector.load %arg6[%c1_73, %c0_74] : memref<3x512xf32, #tpu.memory_space<vmem>>, vector<1x512xf32>
      %116 = vector.broadcast %115 : vector<1x512xf32> to vector<8x512xf32>
      %117 = arith.addf %114, %116 : vector<8x512xf32>
      %c2 = arith.constant 2 : index
      %c0_75 = arith.constant 0 : index
      %c0_76 = arith.constant 0 : index
      %118 = vector.load %arg5[%c2, %c0_75, %c0_76] : memref<3x32x512xbf16, #tpu.memory_space<vmem>>, vector<1x32x512xbf16>
      %119 = vector.shape_cast %118 : vector<1x32x512xbf16> to vector<32x512xbf16>
      %cst_77 = arith.constant dense<0.000000e+00> : vector<8x512xf32>
      %120 = tpu.matmul %111, %119, %cst_77 {dimension_numbers = #tpu.dot_dimension_numbers<[1], [0], [0], [1], [0, 0, 1, 1], [], []>} : vector<8x32xbf16>, vector<32x512xbf16>, vector<8x512xf32> -> vector<8x512xf32>
      %c2_78 = arith.constant 2 : index
      %c0_79 = arith.constant 0 : index
      %121 = vector.load %arg6[%c2_78, %c0_79] : memref<3x512xf32, #tpu.memory_space<vmem>>, vector<1x512xf32>
      %122 = vector.broadcast %121 : vector<1x512xf32> to vector<8x512xf32>
      %123 = arith.addf %120, %122 : vector<8x512xf32>
      %124 = arith.truncf %117 : vector<8x512xf32> to vector<8x512xbf16>
      %c0_80 = arith.constant 0 : index
      %c0_81 = arith.constant 0 : index
      %125 = vector.load %arg11[%c0_80, %c0_81] : memref<8x512xbf16, #tpu.memory_space<vmem>>, vector<8x512xbf16>
      tpu.vector_store %arg11[%c0_80, %c0_81], %124 {strides = array<i32>} : memref<8x512xbf16, #tpu.memory_space<vmem>>, vector<8x512xbf16>,
      %126 = arith.truncf %123 : vector<8x512xf32> to vector<8x512xbf16>
      %c0_82 = arith.constant 0 : index
      %c0_83 = arith.constant 0 : index
      %127 = vector.load %arg12[%c0_82, %c0_83] : memref<8x512xbf16, #tpu.memory_space<vmem>>, vector<8x512xbf16>
      tpu.vector_store %arg12[%c0_82, %c0_83], %126 {strides = array<i32>} : memref<8x512xbf16, #tpu.memory_space<vmem>>, vector<8x512xbf16>,
    } else {
    }
    %c0 = arith.constant 0 : index
    %c0_1 = arith.constant 0 : index
    %c0_2 = arith.constant 0 : index
    %3 = vector.load %arg2[%c0, %c0_1, %c0_2] : memref<1x8x32xf32, #tpu.memory_space<vmem>>, vector<1x8x32xf32>
    %4 = vector.shape_cast %3 : vector<1x8x32xf32> to vector<8x32xf32>
    %5 = arith.truncf %4 : vector<8x32xf32> to vector<8x32xbf16>
    %c0_3 = arith.constant 0 : index
    %c0_4 = arith.constant 0 : index
    %c0_5 = arith.constant 0 : index
    %6 = vector.load %arg5[%c0_3, %c0_4, %c0_5] : memref<3x32x512xbf16, #tpu.memory_space<vmem>>, vector<1x32x512xbf16>
    %7 = vector.shape_cast %6 : vector<1x32x512xbf16> to vector<32x512xbf16>
    %cst = arith.constant dense<0.000000e+00> : vector<8x512xf32>
    %8 = tpu.matmul %5, %7, %cst {dimension_numbers = #tpu.dot_dimension_numbers<[1], [0], [0], [1], [0, 0, 1, 1], [], []>} : vector<8x32xbf16>, vector<32x512xbf16>, vector<8x512xf32> -> vector<8x512xf32>
    %c0_6 = arith.constant 0 : index
    %c0_7 = arith.constant 0 : index
    %9 = vector.load %arg6[%c0_6, %c0_7] : memref<3x512xf32, #tpu.memory_space<vmem>>, vector<1x512xf32>
    %10 = vector.broadcast %9 : vector<1x512xf32> to vector<8x512xf32>
    %11 = arith.addf %8, %10 : vector<8x512xf32>
    %12 = arith.truncf %11 : vector<8x512xf32> to vector<8x512xbf16>
    %13 = vector.extract_strided_slice %12 {offsets = [0, 0], sizes = [8, 128], strides = [1, 1]} : vector<8x512xbf16> to vector<8x128xbf16>
    %c0_8 = arith.constant 0 : index
    %c0_9 = arith.constant 0 : index
    %14 = vector.load %arg11[%c0_8, %c0_9] : memref<8x512xbf16, #tpu.memory_space<vmem>>, vector<8x128xbf16>
    %c0_10 = arith.constant 0 : index
    %c0_11 = arith.constant 0 : index
    %15 = vector.load %arg12[%c0_10, %c0_11] : memref<8x512xbf16, #tpu.memory_space<vmem>>, vector<8x128xbf16>
    %cst_12 = arith.constant dense<0.000000e+00> : vector<8x8xf32>
    %16 = tpu.matmul %13, %14, %cst_12 {dimension_numbers = #tpu.dot_dimension_numbers<[1], [1], [0], [0], [0, 0, 1, 0], [], []>} : vector<8x128xbf16>, vector<8x128xbf16>, vector<8x8xf32> -> vector<8x8xf32>
    %cst_13 = arith.constant dense<0xFF800000> : vector<8xf32>
    %17 = vector.multi_reduction <maximumf>, %16, %cst_13 [1] : vector<8x8xf32> to vector<8xf32>
    %18 = vector.shape_cast %17 : vector<8xf32> to vector<8x1xf32>
    %19 = vector.broadcast %18 : vector<8x1xf32> to vector<8x8xf32>
    %20 = arith.subf %16, %19 : vector<8x8xf32>
    %21 = math.exp %20 : vector<8x8xf32>
    %cst_14 = arith.constant dense<0.000000e+00> : vector<8xf32>
    %22 = vector.multi_reduction <add>, %21, %cst_14 [1] : vector<8x8xf32> to vector<8xf32>
    %23 = vector.shape_cast %22 : vector<8xf32> to vector<8x1xf32>
    %24 = tpu.reciprocal %23 {approx = true} : vector<8x1xf32> -> vector<8x1xf32>
    %25 = vector.broadcast %24 : vector<8x1xf32> to vector<8x8xf32>
    %26 = arith.mulf %21, %25 : vector<8x8xf32>
    %c0_15 = arith.constant 0 : index
    %c0_16 = arith.constant 0 : index
    %c0_17 = arith.constant 0 : index
    %27 = vector.load %arg10[%c0_15, %c0_16, %c0_17] : memref<1x8x32xf32, #tpu.memory_space<vmem>>, vector<1x8x8xf32>
    %28 = vector.shape_cast %27 : vector<1x8x8xf32> to vector<8x8xf32>
    %29 = vector.shape_cast %26 : vector<8x8xf32> to vector<1x8x8xf32>
    tpu.vector_store %arg10[%c0_15, %c0_16, %c0_17], %29 {strides = array<i32>} : memref<1x8x32xf32, #tpu.memory_space<vmem>>, vector<1x8x8xf32>,
    %30 = arith.truncf %26 : vector<8x8xf32> to vector<8x8xbf16>
    %cst_18 = arith.constant dense<0.000000e+00> : vector<8x128xf32>
    %31 = tpu.matmul %30, %15, %cst_18 {dimension_numbers = #tpu.dot_dimension_numbers<[1], [0], [0], [1], [0, 0, 1, 1], [], []>} : vector<8x8xbf16>, vector<8x128xbf16>, vector<8x128xf32> -> vector<8x128xf32>
    %32 = arith.truncf %31 : vector<8x128xf32> to vector<8x128xbf16>
    %c0_19 = arith.constant 0 : index
    %c0_20 = arith.constant 0 : index
    %33 = vector.load %arg13[%c0_19, %c0_20] : memref<8x512xbf16, #tpu.memory_space<vmem>>, vector<8x128xbf16>
    tpu.vector_store %arg13[%c0_19, %c0_20], %32 {strides = array<i32>} : memref<8x512xbf16, #tpu.memory_space<vmem>>, vector<8x128xbf16>,
    %34 = vector.extract_strided_slice %12 {offsets = [0, 128], sizes = [8, 128], strides = [1, 1]} : vector<8x512xbf16> to vector<8x128xbf16>
    %c0_21 = arith.constant 0 : index
    %c128 = arith.constant 128 : index
    %35 = vector.load %arg11[%c0_21, %c128] : memref<8x512xbf16, #tpu.memory_space<vmem>>, vector<8x128xbf16>
    %c0_22 = arith.constant 0 : index
    %c128_23 = arith.constant 128 : index
    %36 = vector.load %arg12[%c0_22, %c128_23] : memref<8x512xbf16, #tpu.memory_space<vmem>>, vector<8x128xbf16>
    %cst_24 = arith.constant dense<0.000000e+00> : vector<8x8xf32>
    %37 = tpu.matmul %34, %35, %cst_24 {dimension_numbers = #tpu.dot_dimension_numbers<[1], [1], [0], [0], [0, 0, 1, 0], [], []>} : vector<8x128xbf16>, vector<8x128xbf16>, vector<8x8xf32> -> vector<8x8xf32>
    %cst_25 = arith.constant dense<0xFF800000> : vector<8xf32>
    %38 = vector.multi_reduction <maximumf>, %37, %cst_25 [1] : vector<8x8xf32> to vector<8xf32>
    %39 = vector.shape_cast %38 : vector<8xf32> to vector<8x1xf32>
    %40 = vector.broadcast %39 : vector<8x1xf32> to vector<8x8xf32>
    %41 = arith.subf %37, %40 : vector<8x8xf32>
    %42 = math.exp %41 : vector<8x8xf32>
    %cst_26 = arith.constant dense<0.000000e+00> : vector<8xf32>
    %43 = vector.multi_reduction <add>, %42, %cst_26 [1] : vector<8x8xf32> to vector<8xf32>
    %44 = vector.shape_cast %43 : vector<8xf32> to vector<8x1xf32>
    %45 = tpu.reciprocal %44 {approx = true} : vector<8x1xf32> -> vector<8x1xf32>
    %46 = vector.broadcast %45 : vector<8x1xf32> to vector<8x8xf32>
    %47 = arith.mulf %42, %46 : vector<8x8xf32>
    %c0_27 = arith.constant 0 : index
    %c0_28 = arith.constant 0 : index
    %c8 = arith.constant 8 : index
    %48 = vector.load %arg10[%c0_27, %c0_28, %c8] : memref<1x8x32xf32, #tpu.memory_space<vmem>>, vector<1x8x8xf32>
    %49 = vector.shape_cast %48 : vector<1x8x8xf32> to vector<8x8xf32>
    %50 = vector.shape_cast %47 : vector<8x8xf32> to vector<1x8x8xf32>
    tpu.vector_store %arg10[%c0_27, %c0_28, %c8], %50 {strides = array<i32>} : memref<1x8x32xf32, #tpu.memory_space<vmem>>, vector<1x8x8xf32>,
    %51 = arith.truncf %47 : vector<8x8xf32> to vector<8x8xbf16>
    %cst_29 = arith.constant dense<0.000000e+00> : vector<8x128xf32>
    %52 = tpu.matmul %51, %36, %cst_29 {dimension_numbers = #tpu.dot_dimension_numbers<[1], [0], [0], [1], [0, 0, 1, 1], [], []>} : vector<8x8xbf16>, vector<8x128xbf16>, vector<8x128xf32> -> vector<8x128xf32>
    %53 = arith.truncf %52 : vector<8x128xf32> to vector<8x128xbf16>
    %c0_30 = arith.constant 0 : index
    %c128_31 = arith.constant 128 : index
    %54 = vector.load %arg13[%c0_30, %c128_31] : memref<8x512xbf16, #tpu.memory_space<vmem>>, vector<8x128xbf16>
    tpu.vector_store %arg13[%c0_30, %c128_31], %53 {strides = array<i32>} : memref<8x512xbf16, #tpu.memory_space<vmem>>, vector<8x128xbf16>,
    %55 = vector.extract_strided_slice %12 {offsets = [0, 256], sizes = [8, 128], strides = [1, 1]} : vector<8x512xbf16> to vector<8x128xbf16>
    %c0_32 = arith.constant 0 : index
    %c256 = arith.constant 256 : index
    %56 = vector.load %arg11[%c0_32, %c256] : memref<8x512xbf16, #tpu.memory_space<vmem>>, vector<8x128xbf16>
    %c0_33 = arith.constant 0 : index
    %c256_34 = arith.constant 256 : index
    %57 = vector.load %arg12[%c0_33, %c256_34] : memref<8x512xbf16, #tpu.memory_space<vmem>>, vector<8x128xbf16>
    %cst_35 = arith.constant dense<0.000000e+00> : vector<8x8xf32>
    %58 = tpu.matmul %55, %56, %cst_35 {dimension_numbers = #tpu.dot_dimension_numbers<[1], [1], [0], [0], [0, 0, 1, 0], [], []>} : vector<8x128xbf16>, vector<8x128xbf16>, vector<8x8xf32> -> vector<8x8xf32>
    %cst_36 = arith.constant dense<0xFF800000> : vector<8xf32>
    %59 = vector.multi_reduction <maximumf>, %58, %cst_36 [1] : vector<8x8xf32> to vector<8xf32>
    %60 = vector.shape_cast %59 : vector<8xf32> to vector<8x1xf32>
    %61 = vector.broadcast %60 : vector<8x1xf32> to vector<8x8xf32>
    %62 = arith.subf %58, %61 : vector<8x8xf32>
    %63 = math.exp %62 : vector<8x8xf32>
    %cst_37 = arith.constant dense<0.000000e+00> : vector<8xf32>
    %64 = vector.multi_reduction <add>, %63, %cst_37 [1] : vector<8x8xf32> to vector<8xf32>
    %65 = vector.shape_cast %64 : vector<8xf32> to vector<8x1xf32>
    %66 = tpu.reciprocal %65 {approx = true} : vector<8x1xf32> -> vector<8x1xf32>
    %67 = vector.broadcast %66 : vector<8x1xf32> to vector<8x8xf32>
    %68 = arith.mulf %63, %67 : vector<8x8xf32>
    %c0_38 = arith.constant 0 : index
    %c0_39 = arith.constant 0 : index
    %c16 = arith.constant 16 : index
    %69 = vector.load %arg10[%c0_38, %c0_39, %c16] : memref<1x8x32xf32, #tpu.memory_space<vmem>>, vector<1x8x8xf32>
    %70 = vector.shape_cast %69 : vector<1x8x8xf32> to vector<8x8xf32>
    %71 = vector.shape_cast %68 : vector<8x8xf32> to vector<1x8x8xf32>
    tpu.vector_store %arg10[%c0_38, %c0_39, %c16], %71 {strides = array<i32>} : memref<1x8x32xf32, #tpu.memory_space<vmem>>, vector<1x8x8xf32>,
    %72 = arith.truncf %68 : vector<8x8xf32> to vector<8x8xbf16>
    %cst_40 = arith.constant dense<0.000000e+00> : vector<8x128xf32>
    %73 = tpu.matmul %72, %57, %cst_40 {dimension_numbers = #tpu.dot_dimension_numbers<[1], [0], [0], [1], [0, 0, 1, 1], [], []>} : vector<8x8xbf16>, vector<8x128xbf16>, vector<8x128xf32> -> vector<8x128xf32>
    %74 = arith.truncf %73 : vector<8x128xf32> to vector<8x128xbf16>
    %c0_41 = arith.constant 0 : index
    %c256_42 = arith.constant 256 : index
    %75 = vector.load %arg13[%c0_41, %c256_42] : memref<8x512xbf16, #tpu.memory_space<vmem>>, vector<8x128xbf16>
    tpu.vector_store %arg13[%c0_41, %c256_42], %74 {strides = array<i32>} : memref<8x512xbf16, #tpu.memory_space<vmem>>, vector<8x128xbf16>,
    %76 = vector.extract_strided_slice %12 {offsets = [0, 384], sizes = [8, 128], strides = [1, 1]} : vector<8x512xbf16> to vector<8x128xbf16>
    %c0_43 = arith.constant 0 : index
    %c384 = arith.constant 384 : index
    %77 = vector.load %arg11[%c0_43, %c384] : memref<8x512xbf16, #tpu.memory_space<vmem>>, vector<8x128xbf16>
    %c0_44 = arith.constant 0 : index
    %c384_45 = arith.constant 384 : index
    %78 = vector.load %arg12[%c0_44, %c384_45] : memref<8x512xbf16, #tpu.memory_space<vmem>>, vector<8x128xbf16>
    %cst_46 = arith.constant dense<0.000000e+00> : vector<8x8xf32>
    %79 = tpu.matmul %76, %77, %cst_46 {dimension_numbers = #tpu.dot_dimension_numbers<[1], [1], [0], [0], [0, 0, 1, 0], [], []>} : vector<8x128xbf16>, vector<8x128xbf16>, vector<8x8xf32> -> vector<8x8xf32>
    %cst_47 = arith.constant dense<0xFF800000> : vector<8xf32>
    %80 = vector.multi_reduction <maximumf>, %79, %cst_47 [1] : vector<8x8xf32> to vector<8xf32>
    %81 = vector.shape_cast %80 : vector<8xf32> to vector<8x1xf32>
    %82 = vector.broadcast %81 : vector<8x1xf32> to vector<8x8xf32>
    %83 = arith.subf %79, %82 : vector<8x8xf32>
    %84 = math.exp %83 : vector<8x8xf32>
    %cst_48 = arith.constant dense<0.000000e+00> : vector<8xf32>
    %85 = vector.multi_reduction <add>, %84, %cst_48 [1] : vector<8x8xf32> to vector<8xf32>
    %86 = vector.shape_cast %85 : vector<8xf32> to vector<8x1xf32>
    %87 = tpu.reciprocal %86 {approx = true} : vector<8x1xf32> -> vector<8x1xf32>
    %88 = vector.broadcast %87 : vector<8x1xf32> to vector<8x8xf32>
    %89 = arith.mulf %84, %88 : vector<8x8xf32>
    %c0_49 = arith.constant 0 : index
    %c0_50 = arith.constant 0 : index
    %c24 = arith.constant 24 : index
    %90 = vector.load %arg10[%c0_49, %c0_50, %c24] : memref<1x8x32xf32, #tpu.memory_space<vmem>>, vector<1x8x8xf32>
    %91 = vector.shape_cast %90 : vector<1x8x8xf32> to vector<8x8xf32>
    %92 = vector.shape_cast %89 : vector<8x8xf32> to vector<1x8x8xf32>
    tpu.vector_store %arg10[%c0_49, %c0_50, %c24], %92 {strides = array<i32>} : memref<1x8x32xf32, #tpu.memory_space<vmem>>, vector<1x8x8xf32>,
    %93 = arith.truncf %89 : vector<8x8xf32> to vector<8x8xbf16>
    %cst_51 = arith.constant dense<0.000000e+00> : vector<8x128xf32>
    %94 = tpu.matmul %93, %78, %cst_51 {dimension_numbers = #tpu.dot_dimension_numbers<[1], [0], [0], [1], [0, 0, 1, 1], [], []>} : vector<8x8xbf16>, vector<8x128xbf16>, vector<8x128xf32> -> vector<8x128xf32>
    %95 = arith.truncf %94 : vector<8x128xf32> to vector<8x128xbf16>
    %c0_52 = arith.constant 0 : index
    %c384_53 = arith.constant 384 : index
    %96 = vector.load %arg13[%c0_52, %c384_53] : memref<8x512xbf16, #tpu.memory_space<vmem>>, vector<8x128xbf16>
    tpu.vector_store %arg13[%c0_52, %c384_53], %95 {strides = array<i32>} : memref<8x512xbf16, #tpu.memory_space<vmem>>, vector<8x128xbf16>,
    %c0_54 = arith.constant 0 : index
    %c0_55 = arith.constant 0 : index
    %97 = vector.load %arg13[%c0_54, %c0_55] : memref<8x512xbf16, #tpu.memory_space<vmem>>, vector<8x512xbf16>
    %c0_56 = arith.constant 0 : index
    %c0_57 = arith.constant 0 : index
    %98 = vector.load %arg7[%c0_56, %c0_57] : memref<512x32xbf16, #tpu.memory_space<vmem>>, vector<512x32xbf16>
    %cst_58 = arith.constant dense<0.000000e+00> : vector<8x32xf32>
    %99 = tpu.matmul %97, %98, %cst_58 {dimension_numbers = #tpu.dot_dimension_numbers<[1], [0], [0], [1], [0, 0, 1, 1], [], []>} : vector<8x512xbf16>, vector<512x32xbf16>, vector<8x32xf32> -> vector<8x32xf32>
    %c0_59 = arith.constant 0 : index
    %c0_60 = arith.constant 0 : index
    %100 = vector.load %arg8[%c0_59, %c0_60] : memref<1x32xf32, #tpu.memory_space<vmem>>, vector<1x32xf32>
    %101 = vector.broadcast %100 : vector<1x32xf32> to vector<8x32xf32>
    %102 = arith.addf %99, %101 : vector<8x32xf32>
    %c0_61 = arith.constant 0 : index
    %c0_62 = arith.constant 0 : index
    %c0_63 = arith.constant 0 : index
    %103 = vector.load %arg9[%c0_61, %c0_62, %c0_63] : memref<1x8x32xf32, #tpu.memory_space<vmem>>, vector<1x8x32xf32>
    %104 = vector.shape_cast %103 : vector<1x8x32xf32> to vector<8x32xf32>
    %105 = vector.shape_cast %102 : vector<8x32xf32> to vector<1x8x32xf32>
    tpu.vector_store %arg9[%c0_61, %c0_62, %c0_63], %105 {strides = array<i32>} : memref<1x8x32xf32, #tpu.memory_space<vmem>>, vector<1x8x32xf32>,
    return
  }
  func.func @transform_0(%arg0: i32, %arg1: i32) -> (i32, i32, i32) {
    %c0_i32 = arith.constant 0 : i32
    %c0_i32_0 = arith.constant 0 : i32
    return %arg0, %arg1, %c0_i32 : i32, i32, i32
  }
  func.func @transform_1(%arg0: i32, %arg1: i32) -> (i32, i32, i32) {
    %c0_i32 = arith.constant 0 : i32
    %c0_i32_0 = arith.constant 0 : i32
    %c0_i32_1 = arith.constant 0 : i32
    return %arg0, %c0_i32, %c0_i32_0 : i32, i32, i32
  }
  func.func @transform_2(%arg0: i32, %arg1: i32) -> (i32, i32, i32) {
    %c0_i32 = arith.constant 0 : i32
    %c0_i32_0 = arith.constant 0 : i32
    %c0_i32_1 = arith.constant 0 : i32
    return %arg0, %c0_i32, %c0_i32_0 : i32, i32, i32
  }
  func.func @transform_3(%arg0: i32, %arg1: i32) -> (i32, i32, i32) {
    %c0_i32 = arith.constant 0 : i32
    %c0_i32_0 = arith.constant 0 : i32
    %c0_i32_1 = arith.constant 0 : i32
    %c0_i32_2 = arith.constant 0 : i32
    return %c0_i32, %c0_i32_0, %c0_i32_1 : i32, i32, i32
  }
  func.func @transform_4(%arg0: i32, %arg1: i32) -> (i32, i32) {
    %c0_i32 = arith.constant 0 : i32
    %c0_i32_0 = arith.constant 0 : i32
    %c0_i32_1 = arith.constant 0 : i32
    return %c0_i32, %c0_i32_0 : i32, i32
  }
  func.func @transform_5(%arg0: i32, %arg1: i32) -> (i32, i32) {
    %c0_i32 = arith.constant 0 : i32
    %c0_i32_0 = arith.constant 0 : i32
    %c0_i32_1 = arith.constant 0 : i32
    return %c0_i32, %c0_i32_0 : i32, i32
  }
  func.func @transform_6(%arg0: i32, %arg1: i32) -> (i32, i32) {
    %c0_i32 = arith.constant 0 : i32
    %c0_i32_0 = arith.constant 0 : i32
    %c0_i32_1 = arith.constant 0 : i32
    return %c0_i32, %c0_i32_0 : i32, i32
  }
  func.func @transform_7(%arg0: i32, %arg1: i32) -> (i32, i32, i32) {
    %c0_i32 = arith.constant 0 : i32
    %c0_i32_0 = arith.constant 0 : i32
    return %arg0, %arg1, %c0_i32 : i32, i32, i32
  }
  func.func @transform_8(%arg0: i32, %arg1: i32) -> (i32, i32, i32) {
    %c0_i32 = arith.constant 0 : i32
    %c0_i32_0 = arith.constant 0 : i32
    return %arg0, %arg1, %c0_i32 : i32, i32, i32
  }
}

</mosaic_0001>

<llo_original>
// kernel: tpu_custom_call.1
$region0: #{tpu_custom_call.1}
  #allocation0 [shape = 'u32[]', space=smem, size = 0x4, offset = 0x4, fixed_abs, tag = 'smem constant byte address 0x4 - core index']
  #allocation1 [shape = 'u32[144,128]{1,0:T(1,128)}', space=vmem, size = 0x12000, scoped, tag = 'internal scratch']
  #allocation2 [shape = 'bf16[8,512]{1,0:T(8,128)(2,1)}', space=vmem, size = 0x2000, scoped, tag = 'scratch operand']
  #allocation3 [shape = 'bf16[8,512]{1,0:T(8,128)(2,1)}', space=vmem, size = 0x2000, scoped, tag = 'scratch operand']
  #allocation4 [shape = 'bf16[8,512]{1,0:T(8,128)(2,1)}', space=vmem, size = 0x2000, scoped, tag = 'scratch operand']
  %s0 = inlined_call_operand.vmem [shape: f32[2,8,32], index: 0, kind: input, shape index: {}]
  %s1 = inlined_call_operand.vmem [shape: f32[2,8,32], index: 1, kind: input, shape index: {}]
  %s2 = inlined_call_operand.vmem [shape: f32[2,8,32], index: 2, kind: input, shape index: {}]
  %s3 = inlined_call_operand.vmem [shape: bf16[3,32,512], index: 3, kind: input, shape index: {}]
  %s4 = inlined_call_operand.vmem [shape: f32[3,512], index: 4, kind: input, shape index: {}]
  %s5 = inlined_call_operand.vmem [shape: bf16[512,32], index: 5, kind: input, shape index: {}]
  %s6 = inlined_call_operand.vmem [shape: f32[1,32], index: 6, kind: input, shape index: {}]
  %s7 = inlined_call_operand.hbm [shape: f32[2,8,32], index: 7, kind: output, shape index: {0}]
  %s8 = inlined_call_operand.hbm [shape: f32[2,8,32], index: 8, kind: output, shape index: {1}]
  %9 = xla_tuple %s7, %s8
  %s10 = sld [smem:[#allocation0]]
  $region73: #{tpu_custom_call.1} parent=0
    _
  %s12 = ssub.s32 1, %s10
  %s13 = scalar_select 0, %s12, %s10
  $region1: #{tpu_custom_call.1} parent=0
    #allocation5 [shape = 'u8[8192]{0}', space=vmem, size = 0x2000, scoped, tag = 'output window, operand 0']
    #allocation6 [shape = 's32[2]{0}', space=sflag, size = 0x8, scoped, tag = 'scoped memory for tpu_custom_call.1']
    #allocation7 [shape = 'u8[8192]{0}', space=vmem, size = 0x2000, scoped, tag = 'output window, operand 1']
    #allocation8 [shape = 's32[2]{0}', space=sflag, size = 0x8, scoped, tag = 'scoped memory for tpu_custom_call.1']
    %14 = vsyncpa [#allocation6], 0
    %s15 = scalar_lea.sflag [#allocation6], 1
    %16 = vsyncpa %s15, 0
    %17 = vsyncpa [#allocation8], 0
    %s18 = scalar_lea.sflag [#allocation8], 1
    %19 = vsyncpa %s18, 0
    loop: start=0, step=1, limit=4
    $region2: #{tpu_custom_call.1} parent=1 // loop_pre_header
      _
    $region3: #{tpu_custom_call.1} parent=1 // loop_header
      %s21 = sphi 0, %s25
      %p22 = scmp.ge.s32.totalorder %s21, 4
      %s28 = sphi 0, %s40
      %s29 = sphi 0, %s36
      %s30 = sphi 0, %s28
      %s31 = sphi 0, %s29
      %s32 = sphi 0, %s30
      %s33 = sphi 0, %s31
      %s45 = sphi 0, %s47
      %s48 = sphi 0, %s45
      %s49 = sphi 0, %s48
      %s65 = sphi 0, %s49
      %s71 = sphi 0, %s73
      %s74 = sphi 0, %s71
      %s75 = sphi 0, %s74
      %s91 = sphi 0, %s75
      %s97 = sphi 0, %s99
      %s100 = sphi 0, %s97
      %s101 = sphi 0, %s100
      %s117 = sphi 0, %s101
      %s121 = sphi 0, %s121
      %s123 = sphi 0, %s121
      %s124 = sphi 0, %s123
      %s138 = sphi 0, %s124
      %s142 = sphi 0, %s142
      %s144 = sphi 0, %s142
      %s145 = sphi 0, %s144
      %s159 = sphi 0, %s145
      %s163 = sphi 0, %s163
      %s165 = sphi 0, %s163
      %s166 = sphi 0, %s165
      %s180 = sphi 0, %s166
      %s184 = sphi 0, %s184
      %s186 = sphi 0, %s184
      %s187 = sphi 0, %s186
      %s201 = sphi 0, %s187
      %s209 = sphi 0, %s211
      %s212 = sphi 0, %s209
      %s213 = sphi 0, %s212
      %s229 = sphi 0, %s213
      %s237 = sphi 0, %s239
      %s240 = sphi 0, %s237
      %s241 = sphi 0, %s240
      %s257 = sphi 0, %s241
    $region4: #{tpu_custom_call.1} parent=1 // loop_header_branch
      %24 = sbr.rel (%p22) target = $region8
    $region5: #{tpu_custom_call.1} parent=1 // loop_body
      %s26 = ssub.s32 %s21, 1
      %s27 = ssub.s32 %s21, 2
      %s34 = sadd.s32 1, %s29
      %p35 = scmp.ge.s32.totalorder %s34, 1
      %s36 = scalar_select %p35, 0, %s34
      %s37 = sadd.s32 1, %s28
      %s38 = scalar_select %p35, %s37, %s28
      %p39 = scmp.ge.s32.totalorder %s38, 2
      %s40 = scalar_select %p39, 0, %s38
      %s41 = ssub.s32 %s28, %s40
      %s42 = ssub.s32 %s29, %s36
      %s43 = sor.u32 %s41, %s42
      %p44 = scmp.eq.s32.totalorder %s43, 0
      %s46 = sadd.s32 %s45, 1
      %s47 = scalar_select %p44, %s45, %s46
      %p50 = pneg %p44
      %p51 = scmp.eq.s32.totalorder %s21, 1
      %p52 = por %p50, %p51
      %p53 = scmp.ne.s32.totalorder %s45, %s48
      %p54 = scmp.eq.s32.totalorder %s21, 0
      %p55 = por %p53, %p54
      %p56 = scmp.ne.s32.totalorder %s45, %s48
      %p57 = scmp.eq.s32.totalorder %s26, 1
      %p58 = por %p56, %p57
      %p59 = scmp.ne.s32.totalorder %s48, %s49
      %p60 = scmp.eq.s32.totalorder %s26, 0
      %p61 = por %p59, %p60
      %p62 = scmp.ne.s32.totalorder %s48, %s49
      %p63 = scmp.eq.s32.totalorder %s27, 1
      %p64 = por %p62, %p63
      %p66 = scmp.ne.s32.totalorder %s49, %s65
      %p67 = scmp.eq.s32.totalorder %s27, 0
      %p68 = por %p66, %p67
      %s69 = ssub.s32 %s28, %s40
      %p70 = scmp.eq.s32.totalorder %s69, 0
      %s72 = sadd.s32 %s71, 1
      %s73 = scalar_select %p70, %s71, %s72
      %p76 = pneg %p70
      %p77 = scmp.eq.s32.totalorder %s21, 1
      %p78 = por %p76, %p77
      %p79 = scmp.ne.s32.totalorder %s71, %s74
      %p80 = scmp.eq.s32.totalorder %s21, 0
      %p81 = por %p79, %p80
      %p82 = scmp.ne.s32.totalorder %s71, %s74
      %p83 = scmp.eq.s32.totalorder %s26, 1
      %p84 = por %p82, %p83
      %p85 = scmp.ne.s32.totalorder %s74, %s75
      %p86 = scmp.eq.s32.totalorder %s26, 0
      %p87 = por %p85, %p86
      %p88 = scmp.ne.s32.totalorder %s74, %s75
      %p89 = scmp.eq.s32.totalorder %s27, 1
      %p90 = por %p88, %p89
      %p92 = scmp.ne.s32.totalorder %s75, %s91
      %p93 = scmp.eq.s32.totalorder %s27, 0
      %p94 = por %p92, %p93
      %s95 = ssub.s32 %s28, %s40
      %p96 = scmp.eq.s32.totalorder %s95, 0
      %s98 = sadd.s32 %s97, 1
      %s99 = scalar_select %p96, %s97, %s98
      %p102 = pneg %p96
      %p103 = scmp.eq.s32.totalorder %s21, 1
      %p104 = por %p102, %p103
      %p105 = scmp.ne.s32.totalorder %s97, %s100
      %p106 = scmp.eq.s32.totalorder %s21, 0
      %p107 = por %p105, %p106
      %p108 = scmp.ne.s32.totalorder %s97, %s100
      %p109 = scmp.eq.s32.totalorder %s26, 1
      %p110 = por %p108, %p109
      %p111 = scmp.ne.s32.totalorder %s100, %s101
      %p112 = scmp.eq.s32.totalorder %s26, 0
      %p113 = por %p111, %p112
      %p114 = scmp.ne.s32.totalorder %s100, %s101
      %p115 = scmp.eq.s32.totalorder %s27, 1
      %p116 = por %p114, %p115
      %p118 = scmp.ne.s32.totalorder %s101, %s117
      %p119 = scmp.eq.s32.totalorder %s27, 0
      %p120 = por %p118, %p119
      %s122 = sadd.s32 %s121, 1
      %p125 = scmp.eq.s32.totalorder %s21, 1
      %p126 = scmp.ne.s32.totalorder %s121, %s123
      %p127 = scmp.eq.s32.totalorder %s21, 0
      %p128 = por %p126, %p127
      %p129 = scmp.ne.s32.totalorder %s121, %s123
      %p130 = scmp.eq.s32.totalorder %s26, 1
      %p131 = por %p129, %p130
      %p132 = scmp.ne.s32.totalorder %s123, %s124
      %p133 = scmp.eq.s32.totalorder %s26, 0
      %p134 = por %p132, %p133
      %p135 = scmp.ne.s32.totalorder %s123, %s124
      %p136 = scmp.eq.s32.totalorder %s27, 1
      %p137 = por %p135, %p136
      %p139 = scmp.ne.s32.totalorder %s124, %s138
      %p140 = scmp.eq.s32.totalorder %s27, 0
      %p141 = por %p139, %p140
      %s143 = sadd.s32 %s142, 1
      %p146 = scmp.eq.s32.totalorder %s21, 1
      %p147 = scmp.ne.s32.totalorder %s142, %s144
      %p148 = scmp.eq.s32.totalorder %s21, 0
      %p149 = por %p147, %p148
      %p150 = scmp.ne.s32.totalorder %s142, %s144
      %p151 = scmp.eq.s32.totalorder %s26, 1
      %p152 = por %p150, %p151
      %p153 = scmp.ne.s32.totalorder %s144, %s145
      %p154 = scmp.eq.s32.totalorder %s26, 0
      %p155 = por %p153, %p154
      %p156 = scmp.ne.s32.totalorder %s144, %s145
      %p157 = scmp.eq.s32.totalorder %s27, 1
      %p158 = por %p156, %p157
      %p160 = scmp.ne.s32.totalorder %s145, %s159
      %p161 = scmp.eq.s32.totalorder %s27, 0
      %p162 = por %p160, %p161
      %s164 = sadd.s32 %s163, 1
      %p167 = scmp.eq.s32.totalorder %s21, 1
      %p168 = scmp.ne.s32.totalorder %s163, %s165
      %p169 = scmp.eq.s32.totalorder %s21, 0
      %p170 = por %p168, %p169
      %p171 = scmp.ne.s32.totalorder %s163, %s165
      %p172 = scmp.eq.s32.totalorder %s26, 1
      %p173 = por %p171, %p172
      %p174 = scmp.ne.s32.totalorder %s165, %s166
      %p175 = scmp.eq.s32.totalorder %s26, 0
      %p176 = por %p174, %p175
      %p177 = scmp.ne.s32.totalorder %s165, %s166
      %p178 = scmp.eq.s32.totalorder %s27, 1
      %p179 = por %p177, %p178
      %p181 = scmp.ne.s32.totalorder %s166, %s180
      %p182 = scmp.eq.s32.totalorder %s27, 0
      %p183 = por %p181, %p182
      %s185 = sadd.s32 %s184, 1
      %p188 = scmp.eq.s32.totalorder %s21, 1
      %p189 = scmp.ne.s32.totalorder %s184, %s186
      %p190 = scmp.eq.s32.totalorder %s21, 0
      %p191 = por %p189, %p190
      %p192 = scmp.ne.s32.totalorder %s184, %s186
      %p193 = scmp.eq.s32.totalorder %s26, 1
      %p194 = por %p192, %p193
      %p195 = scmp.ne.s32.totalorder %s186, %s187
      %p196 = scmp.eq.s32.totalorder %s26, 0
      %p197 = por %p195, %p196
      %p198 = scmp.ne.s32.totalorder %s186, %s187
      %p199 = scmp.eq.s32.totalorder %s27, 1
      %p200 = por %p198, %p199
      %p202 = scmp.ne.s32.totalorder %s187, %s201
      %p203 = scmp.eq.s32.totalorder %s27, 0
      %p204 = por %p202, %p203
      %s205 = ssub.s32 %s28, %s40
      %s206 = ssub.s32 %s29, %s36
      %s207 = sor.u32 %s205, %s206
      %p208 = scmp.eq.s32.totalorder %s207, 0
      %s210 = sadd.s32 %s209, 1
      %s211 = scalar_select %p208, %s209, %s210
      %p214 = pneg %p208
      %p215 = scmp.eq.s32.totalorder %s21, 1
      %p216 = por %p214, %p215
      %p217 = scmp.ne.s32.totalorder %s209, %s212
      %p218 = scmp.eq.s32.totalorder %s21, 0
      %p219 = por %p217, %p218
      %p220 = scmp.ne.s32.totalorder %s209, %s212
      %p221 = scmp.eq.s32.totalorder %s26, 1
      %p222 = por %p220, %p221
      %p223 = scmp.ne.s32.totalorder %s212, %s213
      %p224 = scmp.eq.s32.totalorder %s26, 0
      %p225 = por %p223, %p224
      %p226 = scmp.ne.s32.totalorder %s212, %s213
      %p227 = scmp.eq.s32.totalorder %s27, 1
      %p228 = por %p226, %p227
      %p230 = scmp.ne.s32.totalorder %s213, %s229
      %p231 = scmp.eq.s32.totalorder %s27, 0
      %p232 = por %p230, %p231
      %s233 = ssub.s32 %s28, %s40
      %s234 = ssub.s32 %s29, %s36
      %s235 = sor.u32 %s233, %s234
      %p236 = scmp.eq.s32.totalorder %s235, 0
      %s238 = sadd.s32 %s237, 1
      %s239 = scalar_select %p236, %s237, %s238
      %p242 = pneg %p236
      %p243 = scmp.eq.s32.totalorder %s21, 1
      %p244 = por %p242, %p243
      %p245 = scmp.ne.s32.totalorder %s237, %s240
      %p246 = scmp.eq.s32.totalorder %s21, 0
      %p247 = por %p245, %p246
      %p248 = scmp.ne.s32.totalorder %s237, %s240
      %p249 = scmp.eq.s32.totalorder %s26, 1
      %p250 = por %p248, %p249
      %p251 = scmp.ne.s32.totalorder %s240, %s241
      %p252 = scmp.eq.s32.totalorder %s26, 0
      %p253 = por %p251, %p252
      %p254 = scmp.ne.s32.totalorder %s240, %s241
      %p255 = scmp.eq.s32.totalorder %s27, 1
      %p256 = por %p254, %p255
      %p258 = scmp.ne.s32.totalorder %s241, %s257
      %p259 = scmp.eq.s32.totalorder %s27, 0
      %p260 = por %p258, %p259
      %p261 = scmp.le.s32.totalorder 1, %s21
      %p262 = scmp.lt.s32.totalorder %s21, 3
      %p263 = pnand %p261, %p262
      %p264 = pneg %p263
      // Predicated region
      $region9: #{tpu_custom_call.1} parent=5 // pred_check
        _
      $region10: #{tpu_custom_call.1} parent=5 // pred_check_branch
        %266 = sbr.rel (%p263) target = $region12
      $region11: #{tpu_custom_call.1} parent=5 // pred_region
        %s267 = ssub.s32 %s21, 1
        // Predicated region
        $region13: #{tpu_custom_call.1} parent=11 // pred_check
          %p268 = pneg %p134
        $region14: #{tpu_custom_call.1} parent=11 // pred_check_branch
          %270 = sbr.rel (%p268) target = $region16
        $region15: #{tpu_custom_call.1} parent=11 // pred_region
          _
        $region16: #{tpu_custom_call.1} parent=11 // pred_fallthru
          _
        // Predicated region
        $region17: #{tpu_custom_call.1} parent=11 // pred_check
          %p271 = pneg %p155
        $region18: #{tpu_custom_call.1} parent=11 // pred_check_branch
          %273 = sbr.rel (%p271) target = $region20
        $region19: #{tpu_custom_call.1} parent=11 // pred_region
          _
        $region20: #{tpu_custom_call.1} parent=11 // pred_fallthru
          _
        // Predicated region
        $region21: #{tpu_custom_call.1} parent=11 // pred_check
          %p274 = pneg %p176
        $region22: #{tpu_custom_call.1} parent=11 // pred_check_branch
          %276 = sbr.rel (%p274) target = $region24
        $region23: #{tpu_custom_call.1} parent=11 // pred_region
          _
        $region24: #{tpu_custom_call.1} parent=11 // pred_fallthru
          _
        // Predicated region
        $region25: #{tpu_custom_call.1} parent=11 // pred_check
          %p277 = pneg %p197
        $region26: #{tpu_custom_call.1} parent=11 // pred_check_branch
          %279 = sbr.rel (%p277) target = $region28
        $region27: #{tpu_custom_call.1} parent=11 // pred_region
          _
        $region28: #{tpu_custom_call.1} parent=11 // pred_fallthru
          _
      $region12: #{tpu_custom_call.1} parent=5 // pred_fallthru
        _
      %p280 = scmp.lt.s32.totalorder %s21, 2
      // Predicated region
      $region29: #{tpu_custom_call.1} parent=5 // pred_check
        %p281 = pneg %p280
      $region30: #{tpu_custom_call.1} parent=5 // pred_check_branch
        %283 = sbr.rel (%p281) target = $region32
      $region31: #{tpu_custom_call.1} parent=5 // pred_region
        // Predicated region
        $region33: #{tpu_custom_call.1} parent=31 // pred_check
          %p284 = pneg %p55
        $region34: #{tpu_custom_call.1} parent=31 // pred_check_branch
          %286 = sbr.rel (%p284) target = $region36
        $region35: #{tpu_custom_call.1} parent=31 // pred_region
          %p287 = scmp.lt.s32.totalorder %s28, 1
          %s288 = scalar_select %p287, %s28, 1
          %p289 = scmp.lt.s32.totalorder %s29, 0
          %s290 = scalar_select %p289, %s29, 0
          %s291 = sadd.s32 %s290, %s288
          %s292 = smul.addr %s291, 8
          %s293 = scalar_lea.vmem %s0, %s292
        $region36: #{tpu_custom_call.1} parent=31 // pred_fallthru
          _
        // Predicated region
        $region37: #{tpu_custom_call.1} parent=31 // pred_check
          %p294 = pneg %p81
        $region38: #{tpu_custom_call.1} parent=31 // pred_check_branch
          %296 = sbr.rel (%p294) target = $region40
        $region39: #{tpu_custom_call.1} parent=31 // pred_region
          %p297 = scmp.lt.s32.totalorder %s28, 1
          %s298 = scalar_select %p297, %s28, 1
          %s299 = smul.addr %s298, 8
          %s300 = scalar_lea.vmem %s1, %s299
        $region40: #{tpu_custom_call.1} parent=31 // pred_fallthru
          _
        // Predicated region
        $region41: #{tpu_custom_call.1} parent=31 // pred_check
          %p301 = pneg %p107
        $region42: #{tpu_custom_call.1} parent=31 // pred_check_branch
          %303 = sbr.rel (%p301) target = $region44
        $region43: #{tpu_custom_call.1} parent=31 // pred_region
          %p304 = scmp.lt.s32.totalorder %s28, 1
          %s305 = scalar_select %p304, %s28, 1
          %s306 = smul.addr %s305, 8
          %s307 = scalar_lea.vmem %s2, %s306
        $region44: #{tpu_custom_call.1} parent=31 // pred_fallthru
          _
      $region32: #{tpu_custom_call.1} parent=5 // pred_fallthru
        _
      %p308 = scmp.le.s32.totalorder 1, %s21
      %p309 = scmp.lt.s32.totalorder %s21, 3
      %p310 = pnand %p308, %p309
      %p311 = pneg %p310
      // Predicated region
      $region45: #{tpu_custom_call.1} parent=5 // pred_check
        _
      $region46: #{tpu_custom_call.1} parent=5 // pred_check_branch
        %313 = sbr.rel (%p310) target = $region48
      $region47: #{tpu_custom_call.1} parent=5 // pred_region
        %s314 = ssub.s32 %s21, 1
        %p315 = scmp.lt.s32.totalorder %s30, 1
        %s316 = scalar_select %p315, %s30, 1
        %p317 = scmp.lt.s32.totalorder %s31, 0
        %s318 = scalar_select %p317, %s31, 0
        %s319 = sadd.s32 %s318, %s316
        %s320 = smul.addr %s319, 8
        %s321 = scalar_lea.vmem %s0, %s320
        %p322 = pneg %p61
        %p323 = pneg %p58
        %p324 = scmp.lt.s32.totalorder %s30, 1
        %s325 = scalar_select %p324, %s30, 1
        %s326 = smul.addr %s325, 8
        %s327 = scalar_lea.vmem %s1, %s326
        %p328 = pneg %p87
        %p329 = pneg %p84
        %p330 = scmp.lt.s32.totalorder %s30, 1
        %s331 = scalar_select %p330, %s30, 1
        %s332 = smul.addr %s331, 8
        %s333 = scalar_lea.vmem %s2, %s332
        %p334 = pneg %p113
        %p335 = pneg %p110
        %p336 = pneg %p134
        %p337 = pneg %p131
        %p338 = pneg %p155
        %p339 = pneg %p152
        %p340 = pneg %p176
        %p341 = pneg %p173
        %p342 = pneg %p197
        %p343 = pneg %p194
        %p344 = pneg %p225
        %p345 = pneg %p222
        %s346 = sand.u32 %s212, 1
        %s347 = scalar_lea.sflag [#allocation6], %s346
        %s348 = sand.u32 %s212, 1
        %s349 = smul.addr %s348, 8
        %s350 = scalar_lea.vmem [#allocation5], %s349
        %p351 = pneg %p253
        %p352 = pneg %p250
        %s353 = sand.u32 %s240, 1
        %s354 = scalar_lea.sflag [#allocation8], %s353
        %s355 = sand.u32 %s240, 1
        %s356 = smul.addr %s355, 8
        %s357 = scalar_lea.vmem [#allocation7], %s356
        %p358 = scmp.lt.s32.totalorder %s30, 1
        %s359 = scalar_select %p358, %s30, 1
        %p360 = scmp.lt.s32.totalorder %s31, 0
        %s361 = scalar_select %p360, %s31, 0
        %s362 = sadd.s32 %s361, %s359
        %s363 = smul.addr %s362, 8
        %s364 = scalar_lea.vmem %s0, %s363
        %p365 = scmp.lt.s32.totalorder %s30, 1
        %s366 = scalar_select %p365, %s30, 1
        %s367 = smul.addr %s366, 8
        %s368 = scalar_lea.vmem %s1, %s367
        %p369 = scmp.lt.s32.totalorder %s30, 1
        %s370 = scalar_select %p369, %s30, 1
        %s371 = smul.addr %s370, 8
        %s372 = scalar_lea.vmem %s2, %s371
        %p374 = scmp.eq.s32.totalorder %s31, 0
        // Predicated region
        $region49: #{tpu_custom_call.1} parent=47 // pred_check
          %p375 = pneg %p374
        $region50: #{tpu_custom_call.1} parent=47 // pred_check_branch
          %377 = sbr.rel (%p375) target = $region52
        $region51: #{tpu_custom_call.1} parent=47 // pred_region
          %v378 = vld [vmem:[%s368] sm:$0xff]
          %v379 = vpack.c.bf16 %v378, %v378
          %v380 = vld [vmem:[%s372] sm:$0xff]
          %v381 = vpack.c.bf16 %v380, %v380
          %s382 = scalar_lea.vmem %s3, 64
          %v383 = vld [vmem:[%s382] sm:$0xff]
          %v384 = vld [vmem:[%s382 + $0x8] sm:$0xff]
          %v385 = vld [vmem:[%s382 + $0x10] sm:$0xff]
          %v386 = vld [vmem:[%s382 + $0x18] sm:$0xff]
          %v387 = vld [vmem:[%s382 + $0x20] sm:$0xff]
          %v388 = vld [vmem:[%s382 + $0x28] sm:$0xff]
          %v389 = vld [vmem:[%s382 + $0x30] sm:$0xff]
          %v390 = vld [vmem:[%s382 + $0x38] sm:$0xff]
          %s391 = scalar_lea.vmem %s4, 1
          %v392 = vld [vmem:[%s391] ss:$4 sm:$0xf]
          %v394 = vlaneseq
          %v395 = vshrl.u32 %v394, 7
          %v396 = vsub.s32 0, %v395
          %v397 = vrot.slane %v392, %v396
          %v398 = vlaneseq
          %v399 = vshrl.u32 %v398, 7
          %v400 = vsub.s32 1, %v399
          %v401 = vrot.slane %v392, %v400
          %v402 = vlaneseq
          %v403 = vshrl.u32 %v402, 7
          %v404 = vsub.s32 2, %v403
          %v405 = vrot.slane %v392, %v404
          %v406 = vlaneseq
          %v407 = vshrl.u32 %v406, 7
          %v408 = vsub.s32 3, %v407
          %v409 = vrot.slane %v392, %v408
          %v422 = vunpack.c.l.b16 %v383
          %v423 = vunpack.c.h.b16 %v383
          %v424 = vunpack.c.l.b16 %v384
          %v425 = vunpack.c.h.b16 %v384
          %v426 = vunpack.c.l.b16 %v385
          %v427 = vunpack.c.h.b16 %v385
          %v428 = vunpack.c.l.b16 %v386
          %v429 = vunpack.c.h.b16 %v386
          %v430 = vunpack.c.l.b16 %v387
          %v431 = vunpack.c.h.b16 %v387
          %v432 = vunpack.c.l.b16 %v388
          %v433 = vunpack.c.h.b16 %v388
          %v434 = vunpack.c.l.b16 %v389
          %v435 = vunpack.c.h.b16 %v389
          %v436 = vunpack.c.l.b16 %v390
          %v437 = vunpack.c.h.b16 %v390
          %v438 = vpack.c.b16 %v426, %v422
          %v439 = vpack.c.b16 %v427, %v423
          %v440 = vpack.c.b16 %v428, %v424
          %v441 = vpack.c.b16 %v429, %v425
          %v442 = vpack.c.b16 %v434, %v430
          %v443 = vpack.c.b16 %v435, %v431
          %v444 = vpack.c.b16 %v436, %v432
          %v445 = vpack.c.b16 %v437, %v433
          %vm454 = vcmask 261120
          %v456 = vsel %vm454, %v379, 0
          %458 = vmatprep.subr.bf16.mxu0 %v439
          %459 = vmatpush1.bf16.msra.mxu0 %v438
          %460 = vmatprep.subr.bf16.mxu0 %v443
          %461 = vmatpush1.bf16.msra.mxu0 %v442
          %462 = vmatprep.subr.bf16.mxu0 0
          %463 = vmatpush1.bf16.msra.mxu0 0
          %464 = vmatprep.subr.bf16.mxu0 0
          %465 = vmatpush1.bf16.msra.mxu0 0
          %466 = vmatprep.subr.bf16.mxu0 0
          %467 = vmatpush1.bf16.msra.mxu0 0
          %468 = vmatprep.subr.bf16.mxu0 0
          %469 = vmatpush1.bf16.msra.mxu0 0
          %470 = vmatprep.subr.bf16.mxu0 0
          %471 = vmatpush1.bf16.msra.mxu0 0
          %472 = vmatprep.subr.bf16.mxu0 0
          %473 = vmatpush1.bf16.msra.mxu0 0
          %474 = vmatprep.subr.bf16.mxu0 0
          %475 = vmatpush1.bf16.msra.mxu0 0
          %476 = vmatprep.subr.bf16.mxu0 0
          %477 = vmatpush1.bf16.msra.mxu0 0
          %478 = vmatprep.subr.bf16.mxu0 0
          %479 = vmatpush1.bf16.msra.mxu0 0
          %480 = vmatprep.subr.bf16.mxu0 0
          %481 = vmatpush1.bf16.msra.mxu0 0
          %482 = vmatprep.subr.bf16.mxu0 0
          %483 = vmatpush1.bf16.msra.mxu0 0
          %484 = vmatprep.subr.bf16.mxu0 0
          %485 = vmatpush1.bf16.msra.mxu0 0
          %486 = vmatprep.subr.bf16.mxu0 0
          %487 = vmatpush1.bf16.msra.mxu0 0
          %488 = vmatprep.subr.bf16.mxu0 0
          %489 = vmatpush1.bf16.msra.mxu0 0
          %490 = vmatprep.mubr.bf16.mxu0 0
          %491 = vmatmul.mubr.bf16.gmra.mrb[0].mxu0 %v456
          %v492 = vpop.f32.mrb[0].mxu0
          %v493 = vadd.f32 %v397, %v492
          %v494 = vpop.f32.mrb[0].mxu0
          %v495 = vadd.f32 %v401, %v494
          %v496 = vpop.f32.mrb[0].mxu0
          %v497 = vpop.f32.mrb[0].mxu0
          %498 = vdwg.mxu0
          %499 = vmatprep.subr.bf16.mxu0 %v441
          %500 = vmatpush1.bf16.msra.mxu0 %v440
          %501 = vmatprep.subr.bf16.mxu0 %v445
          %502 = vmatpush1.bf16.msra.mxu0 %v444
          %503 = vmatprep.subr.bf16.mxu0 0
          %504 = vmatpush1.bf16.msra.mxu0 0
          %505 = vmatprep.subr.bf16.mxu0 0
          %506 = vmatpush1.bf16.msra.mxu0 0
          %507 = vmatprep.subr.bf16.mxu0 0
          %508 = vmatpush1.bf16.msra.mxu0 0
          %509 = vmatprep.subr.bf16.mxu0 0
          %510 = vmatpush1.bf16.msra.mxu0 0
          %511 = vmatprep.subr.bf16.mxu0 0
          %512 = vmatpush1.bf16.msra.mxu0 0
          %513 = vmatprep.subr.bf16.mxu0 0
          %514 = vmatpush1.bf16.msra.mxu0 0
          %515 = vmatprep.subr.bf16.mxu0 0
          %516 = vmatpush1.bf16.msra.mxu0 0
          %517 = vmatprep.subr.bf16.mxu0 0
          %518 = vmatpush1.bf16.msra.mxu0 0
          %519 = vmatprep.subr.bf16.mxu0 0
          %520 = vmatpush1.bf16.msra.mxu0 0
          %521 = vmatprep.subr.bf16.mxu0 0
          %522 = vmatpush1.bf16.msra.mxu0 0
          %523 = vmatprep.subr.bf16.mxu0 0
          %524 = vmatpush1.bf16.msra.mxu0 0
          %525 = vmatprep.subr.bf16.mxu0 0
          %526 = vmatpush1.bf16.msra.mxu0 0
          %527 = vmatprep.subr.bf16.mxu0 0
          %528 = vmatpush1.bf16.msra.mxu0 0
          %529 = vmatprep.subr.bf16.mxu0 0
          %530 = vmatpush1.bf16.msra.mxu0 0
          %531 = vmatprep.mubr.bf16.mxu0 0
          %532 = vmatmul.mubr.bf16.gmra.mrb[0].mxu0 %v456
          %v533 = vpop.f32.mrb[0].mxu0
          %v534 = vadd.f32 %v405, %v533
          %v535 = vpop.f32.mrb[0].mxu0
          %v536 = vadd.f32 %v409, %v535
          %v537 = vpop.f32.mrb[0].mxu0
          %v538 = vpop.f32.mrb[0].mxu0
          %539 = vdwg.mxu0
          %s540 = scalar_lea.vmem %s3, 128
          %v541 = vld [vmem:[%s540] sm:$0xff]
          %v542 = vld [vmem:[%s540 + $0x8] sm:$0xff]
          %v543 = vld [vmem:[%s540 + $0x10] sm:$0xff]
          %v544 = vld [vmem:[%s540 + $0x18] sm:$0xff]
          %v545 = vld [vmem:[%s540 + $0x20] sm:$0xff]
          %v546 = vld [vmem:[%s540 + $0x28] sm:$0xff]
          %v547 = vld [vmem:[%s540 + $0x30] sm:$0xff]
          %v548 = vld [vmem:[%s540 + $0x38] sm:$0xff]
          %s549 = scalar_lea.vmem %s4, 2
          %v550 = vld [vmem:[%s549] ss:$4 sm:$0xf]
          %v552 = vlaneseq
          %v553 = vshrl.u32 %v552, 7
          %v554 = vsub.s32 0, %v553
          %v555 = vrot.slane %v550, %v554
          %v556 = vlaneseq
          %v557 = vshrl.u32 %v556, 7
          %v558 = vsub.s32 1, %v557
          %v559 = vrot.slane %v550, %v558
          %v560 = vlaneseq
          %v561 = vshrl.u32 %v560, 7
          %v562 = vsub.s32 2, %v561
          %v563 = vrot.slane %v550, %v562
          %v564 = vlaneseq
          %v565 = vshrl.u32 %v564, 7
          %v566 = vsub.s32 3, %v565
          %v567 = vrot.slane %v550, %v566
          %v580 = vunpack.c.l.b16 %v541
          %v581 = vunpack.c.h.b16 %v541
          %v582 = vunpack.c.l.b16 %v542
          %v583 = vunpack.c.h.b16 %v542
          %v584 = vunpack.c.l.b16 %v543
          %v585 = vunpack.c.h.b16 %v543
          %v586 = vunpack.c.l.b16 %v544
          %v587 = vunpack.c.h.b16 %v544
          %v588 = vunpack.c.l.b16 %v545
          %v589 = vunpack.c.h.b16 %v545
          %v590 = vunpack.c.l.b16 %v546
          %v591 = vunpack.c.h.b16 %v546
          %v592 = vunpack.c.l.b16 %v547
          %v593 = vunpack.c.h.b16 %v547
          %v594 = vunpack.c.l.b16 %v548
          %v595 = vunpack.c.h.b16 %v548
          %v596 = vpack.c.b16 %v584, %v580
          %v597 = vpack.c.b16 %v585, %v581
          %v598 = vpack.c.b16 %v586, %v582
          %v599 = vpack.c.b16 %v587, %v583
          %v600 = vpack.c.b16 %v592, %v588
          %v601 = vpack.c.b16 %v593, %v589
          %v602 = vpack.c.b16 %v594, %v590
          %v603 = vpack.c.b16 %v595, %v591
          %v613 = vsel %vm454, %v381, 0
          %615 = vmatprep.subr.bf16.mxu0 %v597
          %616 = vmatpush1.bf16.msra.mxu0 %v596
          %617 = vmatprep.subr.bf16.mxu0 %v601
          %618 = vmatpush1.bf16.msra.mxu0 %v600
          %619 = vmatprep.subr.bf16.mxu0 0
          %620 = vmatpush1.bf16.msra.mxu0 0
          %621 = vmatprep.subr.bf16.mxu0 0
          %622 = vmatpush1.bf16.msra.mxu0 0
          %623 = vmatprep.subr.bf16.mxu0 0
          %624 = vmatpush1.bf16.msra.mxu0 0
          %625 = vmatprep.subr.bf16.mxu0 0
          %626 = vmatpush1.bf16.msra.mxu0 0
          %627 = vmatprep.subr.bf16.mxu0 0
          %628 = vmatpush1.bf16.msra.mxu0 0
          %629 = vmatprep.subr.bf16.mxu0 0
          %630 = vmatpush1.bf16.msra.mxu0 0
          %631 = vmatprep.subr.bf16.mxu0 0
          %632 = vmatpush1.bf16.msra.mxu0 0
          %633 = vmatprep.subr.bf16.mxu0 0
          %634 = vmatpush1.bf16.msra.mxu0 0
          %635 = vmatprep.subr.bf16.mxu0 0
          %636 = vmatpush1.bf16.msra.mxu0 0
          %637 = vmatprep.subr.bf16.mxu0 0
          %638 = vmatpush1.bf16.msra.mxu0 0
          %639 = vmatprep.subr.bf16.mxu0 0
          %640 = vmatpush1.bf16.msra.mxu0 0
          %641 = vmatprep.subr.bf16.mxu0 0
          %642 = vmatpush1.bf16.msra.mxu0 0
          %643 = vmatprep.subr.bf16.mxu0 0
          %644 = vmatpush1.bf16.msra.mxu0 0
          %645 = vmatprep.subr.bf16.mxu0 0
          %646 = vmatpush1.bf16.msra.mxu0 0
          %647 = vmatprep.mubr.bf16.mxu0 0
          %648 = vmatmul.mubr.bf16.gmra.mrb[0].mxu0 %v613
          %v649 = vpop.f32.mrb[0].mxu0
          %v650 = vadd.f32 %v555, %v649
          %v651 = vpop.f32.mrb[0].mxu0
          %v652 = vadd.f32 %v559, %v651
          %v653 = vpop.f32.mrb[0].mxu0
          %v654 = vpop.f32.mrb[0].mxu0
          %655 = vdwg.mxu0
          %656 = vmatprep.subr.bf16.mxu0 %v599
          %657 = vmatpush1.bf16.msra.mxu0 %v598
          %658 = vmatprep.subr.bf16.mxu0 %v603
          %659 = vmatpush1.bf16.msra.mxu0 %v602
          %660 = vmatprep.subr.bf16.mxu0 0
          %661 = vmatpush1.bf16.msra.mxu0 0
          %662 = vmatprep.subr.bf16.mxu0 0
          %663 = vmatpush1.bf16.msra.mxu0 0
          %664 = vmatprep.subr.bf16.mxu0 0
          %665 = vmatpush1.bf16.msra.mxu0 0
          %666 = vmatprep.subr.bf16.mxu0 0
          %667 = vmatpush1.bf16.msra.mxu0 0
          %668 = vmatprep.subr.bf16.mxu0 0
          %669 = vmatpush1.bf16.msra.mxu0 0
          %670 = vmatprep.subr.bf16.mxu0 0
          %671 = vmatpush1.bf16.msra.mxu0 0
          %672 = vmatprep.subr.bf16.mxu0 0
          %673 = vmatpush1.bf16.msra.mxu0 0
          %674 = vmatprep.subr.bf16.mxu0 0
          %675 = vmatpush1.bf16.msra.mxu0 0
          %676 = vmatprep.subr.bf16.mxu0 0
          %677 = vmatpush1.bf16.msra.mxu0 0
          %678 = vmatprep.subr.bf16.mxu0 0
          %679 = vmatpush1.bf16.msra.mxu0 0
          %680 = vmatprep.subr.bf16.mxu0 0
          %681 = vmatpush1.bf16.msra.mxu0 0
          %682 = vmatprep.subr.bf16.mxu0 0
          %683 = vmatpush1.bf16.msra.mxu0 0
          %684 = vmatprep.subr.bf16.mxu0 0
          %685 = vmatpush1.bf16.msra.mxu0 0
          %686 = vmatprep.subr.bf16.mxu0 0
          %687 = vmatpush1.bf16.msra.mxu0 0
          %688 = vmatprep.mubr.bf16.mxu0 0
          %689 = vmatmul.mubr.bf16.gmra.mrb[0].mxu0 %v613
          %v690 = vpop.f32.mrb[0].mxu0
          %v691 = vadd.f32 %v563, %v690
          %v692 = vpop.f32.mrb[0].mxu0
          %v693 = vadd.f32 %v567, %v692
          %v694 = vpop.f32.mrb[0].mxu0
          %v695 = vpop.f32.mrb[0].mxu0
          %696 = vdwg.mxu0
          %v697 = vpack.c.bf16 %v493, %v493
          %v698 = vpack.c.bf16 %v495, %v495
          %v699 = vpack.c.bf16 %v534, %v534
          %v700 = vpack.c.bf16 %v536, %v536
          %v705 = vunpack.c.l.b16 %v697
          %v706 = vunpack.c.l.b16 %v698
          %v707 = vunpack.c.l.b16 %v699
          %v708 = vunpack.c.l.b16 %v700
          %v709 = vpack.c.b16 %v706, %v705
          %v710 = vpack.c.b16 %v708, %v707
          %713 = vst [vmem:[#allocation2] sm:$0xff] %v709
          %714 = vst [vmem:[#allocation2 + $0x8] sm:$0xff] %v710
          %v715 = vpack.c.bf16 %v650, %v650
          %v716 = vpack.c.bf16 %v652, %v652
          %v717 = vpack.c.bf16 %v691, %v691
          %v718 = vpack.c.bf16 %v693, %v693
          %v723 = vunpack.c.l.b16 %v715
          %v724 = vunpack.c.l.b16 %v716
          %v725 = vunpack.c.l.b16 %v717
          %v726 = vunpack.c.l.b16 %v718
          %v727 = vpack.c.b16 %v724, %v723
          %v728 = vpack.c.b16 %v726, %v725
          %731 = vst [vmem:[#allocation3] sm:$0xff] %v727
          %732 = vst [vmem:[#allocation3 + $0x8] sm:$0xff] %v728
        $region52: #{tpu_custom_call.1} parent=47 // pred_fallthru
          _
        %v733 = vld [vmem:[%s364] sm:$0xff]
        %v734 = vpack.c.bf16 %v733, %v733
        %v735 = vld [vmem:[%s3] sm:$0xff]
        %v736 = vld [vmem:[%s3 + $0x8] sm:$0xff]
        %v737 = vld [vmem:[%s3 + $0x10] sm:$0xff]
        %v738 = vld [vmem:[%s3 + $0x18] sm:$0xff]
        %v739 = vld [vmem:[%s3 + $0x20] sm:$0xff]
        %v740 = vld [vmem:[%s3 + $0x28] sm:$0xff]
        %v741 = vld [vmem:[%s3 + $0x30] sm:$0xff]
        %v742 = vld [vmem:[%s3 + $0x38] sm:$0xff]
        %v743 = vld [vmem:[%s4] ss:$4 sm:$0xf]
        %v745 = vlaneseq
        %v746 = vshrl.u32 %v745, 7
        %v747 = vsub.s32 0, %v746
        %v748 = vrot.slane %v743, %v747
        %v749 = vlaneseq
        %v750 = vshrl.u32 %v749, 7
        %v751 = vsub.s32 1, %v750
        %v752 = vrot.slane %v743, %v751
        %v753 = vlaneseq
        %v754 = vshrl.u32 %v753, 7
        %v755 = vsub.s32 2, %v754
        %v756 = vrot.slane %v743, %v755
        %v757 = vlaneseq
        %v758 = vshrl.u32 %v757, 7
        %v759 = vsub.s32 3, %v758
        %v760 = vrot.slane %v743, %v759
        %v773 = vunpack.c.l.b16 %v735
        %v774 = vunpack.c.h.b16 %v735
        %v775 = vunpack.c.l.b16 %v736
        %v776 = vunpack.c.h.b16 %v736
        %v777 = vunpack.c.l.b16 %v737
        %v778 = vunpack.c.h.b16 %v737
        %v779 = vunpack.c.l.b16 %v738
        %v780 = vunpack.c.h.b16 %v738
        %v781 = vunpack.c.l.b16 %v739
        %v782 = vunpack.c.h.b16 %v739
        %v783 = vunpack.c.l.b16 %v740
        %v784 = vunpack.c.h.b16 %v740
        %v785 = vunpack.c.l.b16 %v741
        %v786 = vunpack.c.h.b16 %v741
        %v787 = vunpack.c.l.b16 %v742
        %v788 = vunpack.c.h.b16 %v742
        %v789 = vpack.c.b16 %v777, %v773
        %v790 = vpack.c.b16 %v778, %v774
        %v791 = vpack.c.b16 %v779, %v775
        %v792 = vpack.c.b16 %v780, %v776
        %v793 = vpack.c.b16 %v785, %v781
        %v794 = vpack.c.b16 %v786, %v782
        %v795 = vpack.c.b16 %v787, %v783
        %v796 = vpack.c.b16 %v788, %v784
        %vm805 = vcmask 261120
        %v807 = vsel %vm805, %v734, 0
        %809 = vmatprep.subr.bf16.mxu0 %v790
        %810 = vmatpush1.bf16.msra.mxu0 %v789
        %811 = vmatprep.subr.bf16.mxu0 %v794
        %812 = vmatpush1.bf16.msra.mxu0 %v793
        %813 = vmatprep.subr.bf16.mxu0 0
        %814 = vmatpush1.bf16.msra.mxu0 0
        %815 = vmatprep.subr.bf16.mxu0 0
        %816 = vmatpush1.bf16.msra.mxu0 0
        %817 = vmatprep.subr.bf16.mxu0 0
        %818 = vmatpush1.bf16.msra.mxu0 0
        %819 = vmatprep.subr.bf16.mxu0 0
        %820 = vmatpush1.bf16.msra.mxu0 0
        %821 = vmatprep.subr.bf16.mxu0 0
        %822 = vmatpush1.bf16.msra.mxu0 0
        %823 = vmatprep.subr.bf16.mxu0 0
        %824 = vmatpush1.bf16.msra.mxu0 0
        %825 = vmatprep.subr.bf16.mxu0 0
        %826 = vmatpush1.bf16.msra.mxu0 0
        %827 = vmatprep.subr.bf16.mxu0 0
        %828 = vmatpush1.bf16.msra.mxu0 0
        %829 = vmatprep.subr.bf16.mxu0 0
        %830 = vmatpush1.bf16.msra.mxu0 0
        %831 = vmatprep.subr.bf16.mxu0 0
        %832 = vmatpush1.bf16.msra.mxu0 0
        %833 = vmatprep.subr.bf16.mxu0 0
        %834 = vmatpush1.bf16.msra.mxu0 0
        %835 = vmatprep.subr.bf16.mxu0 0
        %836 = vmatpush1.bf16.msra.mxu0 0
        %837 = vmatprep.subr.bf16.mxu0 0
        %838 = vmatpush1.bf16.msra.mxu0 0
        %839 = vmatprep.subr.bf16.mxu0 0
        %840 = vmatpush1.bf16.msra.mxu0 0
        %841 = vmatprep.mubr.bf16.mxu0 0
        %842 = vmatmul.mubr.bf16.gmra.mrb[0].mxu0 %v807
        %v843 = vpop.f32.mrb[0].mxu0
        %v844 = vadd.f32 %v748, %v843
        %v845 = vpop.f32.mrb[0].mxu0
        %v846 = vadd.f32 %v752, %v845
        %v847 = vpop.f32.mrb[0].mxu0
        %v848 = vpop.f32.mrb[0].mxu0
        %849 = vdwg.mxu0
        %850 = vmatprep.subr.bf16.mxu0 %v792
        %851 = vmatpush1.bf16.msra.mxu0 %v791
        %852 = vmatprep.subr.bf16.mxu0 %v796
        %853 = vmatpush1.bf16.msra.mxu0 %v795
        %854 = vmatprep.subr.bf16.mxu0 0
        %855 = vmatpush1.bf16.msra.mxu0 0
        %856 = vmatprep.subr.bf16.mxu0 0
        %857 = vmatpush1.bf16.msra.mxu0 0
        %858 = vmatprep.subr.bf16.mxu0 0
        %859 = vmatpush1.bf16.msra.mxu0 0
        %860 = vmatprep.subr.bf16.mxu0 0
        %861 = vmatpush1.bf16.msra.mxu0 0
        %862 = vmatprep.subr.bf16.mxu0 0
        %863 = vmatpush1.bf16.msra.mxu0 0
        %864 = vmatprep.subr.bf16.mxu0 0
        %865 = vmatpush1.bf16.msra.mxu0 0
        %866 = vmatprep.subr.bf16.mxu0 0
        %867 = vmatpush1.bf16.msra.mxu0 0
        %868 = vmatprep.subr.bf16.mxu0 0
        %869 = vmatpush1.bf16.msra.mxu0 0
        %870 = vmatprep.subr.bf16.mxu0 0
        %871 = vmatpush1.bf16.msra.mxu0 0
        %872 = vmatprep.subr.bf16.mxu0 0
        %873 = vmatpush1.bf16.msra.mxu0 0
        %874 = vmatprep.subr.bf16.mxu0 0
        %875 = vmatpush1.bf16.msra.mxu0 0
        %876 = vmatprep.subr.bf16.mxu0 0
        %877 = vmatpush1.bf16.msra.mxu0 0
        %878 = vmatprep.subr.bf16.mxu0 0
        %879 = vmatpush1.bf16.msra.mxu0 0
        %880 = vmatprep.subr.bf16.mxu0 0
        %881 = vmatpush1.bf16.msra.mxu0 0
        %882 = vmatprep.mubr.bf16.mxu0 0
        %883 = vmatmul.mubr.bf16.gmra.mrb[0].mxu0 %v807
        %v884 = vpop.f32.mrb[0].mxu0
        %v885 = vadd.f32 %v756, %v884
        %v886 = vpop.f32.mrb[0].mxu0
        %v887 = vadd.f32 %v760, %v886
        %v888 = vpop.f32.mrb[0].mxu0
        %v889 = vpop.f32.mrb[0].mxu0
        %890 = vdwg.mxu0
        %v891 = vpack.c.bf16 %v844, %v844
        %v892 = vpack.c.bf16 %v846, %v846
        %v893 = vpack.c.bf16 %v885, %v885
        %v894 = vpack.c.bf16 %v887, %v887
        %v895 = vld [vmem:[#allocation2] sm:$0xf]
        %v896 = vld [vmem:[#allocation3] sm:$0xf]
        %897 = vmatprep.subr.bf16.mxu0 0
        %898 = vmatpush1.bf16.xpose.msra.mxu0 %v895
        %899 = vmatprep.subr.bf16.mxu0 0
        %900 = vmatpush1.bf16.xpose.msra.mxu0 0
        %901 = vmatprep.subr.bf16.mxu0 0
        %902 = vmatpush1.bf16.xpose.msra.mxu0 0
        %903 = vmatprep.subr.bf16.mxu0 0
        %904 = vmatpush1.bf16.xpose.msra.mxu0 0
        %905 = vmatprep.subr.bf16.mxu0 0
        %906 = vmatpush1.bf16.xpose.msra.mxu0 0
        %907 = vmatprep.subr.bf16.mxu0 0
        %908 = vmatpush1.bf16.xpose.msra.mxu0 0
        %909 = vmatprep.subr.bf16.mxu0 0
        %910 = vmatpush1.bf16.xpose.msra.mxu0 0
        %911 = vmatprep.subr.bf16.mxu0 0
        %912 = vmatpush1.bf16.xpose.msra.mxu0 0
        %913 = vmatprep.subr.bf16.mxu0 0
        %914 = vmatpush1.bf16.xpose.msra.mxu0 0
        %915 = vmatprep.subr.bf16.mxu0 0
        %916 = vmatpush1.bf16.xpose.msra.mxu0 0
        %917 = vmatprep.subr.bf16.mxu0 0
        %918 = vmatpush1.bf16.xpose.msra.mxu0 0
        %919 = vmatprep.subr.bf16.mxu0 0
        %920 = vmatpush1.bf16.xpose.msra.mxu0 0
        %921 = vmatprep.subr.bf16.mxu0 0
        %922 = vmatpush1.bf16.xpose.msra.mxu0 0
        %923 = vmatprep.subr.bf16.mxu0 0
        %924 = vmatpush1.bf16.xpose.msra.mxu0 0
        %925 = vmatprep.subr.bf16.mxu0 0
        %926 = vmatpush1.bf16.xpose.msra.mxu0 0
        %927 = vmatprep.subr.bf16.mxu0 0
        %928 = vmatpush1.bf16.xpose.msra.mxu0 0
        %929 = vmatprep.mubr.bf16.mxu0 0
        %930 = vmatmul.mubr.bf16.gmra.mrb[0].mxu0 %v891
        %v931 = vpop.f32.mrb[0].mxu0
        %v932 = vadd.f32 0.0, %v931
        %v933 = vpop.f32.mrb[0].mxu0
        %v934 = vpop.f32.mrb[0].mxu0
        %v935 = vpop.f32.mrb[0].mxu0
        %936 = vdwg.mxu0
        %vm937 = vcmask 64512
        %v938 = vsel %vm937, %v932, -inf
        %939 = vmax.xlane.f32.xlu0 %v938
        %v940 = vpop.xlane.xlu0 %939
        %v941 = vsub.f32 %v932, %v940
        %v942 = vmul.f32 %v941, 1.442695
        %v943 = vpow.pop %v942
        %v944 = vsel %vm937, %v943, 0.0
        %945 = vadd.xlane.f32.xlu0 %v944
        %v946 = vpop.xlane.xlu0 %945
        %v947 = vrcp.pop %v946
        %v948 = vmul.f32 %v943, %v947
        %949 = vst.msk [vmem:[%s357] sm:$0xff] %vm937, %v948
        %v950 = vpack.c.bf16 %v948, %v948
        %v952 = vsel %vm937, %v950, 0
        %vm954 = vcmask 1043456
        %v956 = vsel %vm954, %v896, 0
        %958 = vmatprep.subr.bf16.mxu0 0
        %959 = vmatpush1.bf16.msra.mxu0 %v956
        %960 = vmatprep.subr.bf16.mxu0 0
        %961 = vmatpush1.bf16.msra.mxu0 0
        %962 = vmatprep.subr.bf16.mxu0 0
        %963 = vmatpush1.bf16.msra.mxu0 0
        %964 = vmatprep.subr.bf16.mxu0 0
        %965 = vmatpush1.bf16.msra.mxu0 0
        %966 = vmatprep.subr.bf16.mxu0 0
        %967 = vmatpush1.bf16.msra.mxu0 0
        %968 = vmatprep.subr.bf16.mxu0 0
        %969 = vmatpush1.bf16.msra.mxu0 0
        %970 = vmatprep.subr.bf16.mxu0 0
        %971 = vmatpush1.bf16.msra.mxu0 0
        %972 = vmatprep.subr.bf16.mxu0 0
        %973 = vmatpush1.bf16.msra.mxu0 0
        %974 = vmatprep.subr.bf16.mxu0 0
        %975 = vmatpush1.bf16.msra.mxu0 0
        %976 = vmatprep.subr.bf16.mxu0 0
        %977 = vmatpush1.bf16.msra.mxu0 0
        %978 = vmatprep.subr.bf16.mxu0 0
        %979 = vmatpush1.bf16.msra.mxu0 0
        %980 = vmatprep.subr.bf16.mxu0 0
        %981 = vmatpush1.bf16.msra.mxu0 0
        %982 = vmatprep.subr.bf16.mxu0 0
        %983 = vmatpush1.bf16.msra.mxu0 0
        %984 = vmatprep.subr.bf16.mxu0 0
        %985 = vmatpush1.bf16.msra.mxu0 0
        %986 = vmatprep.subr.bf16.mxu0 0
        %987 = vmatpush1.bf16.msra.mxu0 0
        %988 = vmatprep.subr.bf16.mxu0 0
        %989 = vmatpush1.bf16.msra.mxu0 0
        %990 = vmatprep.mubr.bf16.mxu0 0
        %991 = vmatmul.mubr.bf16.gmra.mrb[0].mxu0 %v952
        %v992 = vpop.f32.mrb[0].mxu0
        %v993 = vadd.f32 0.0, %v992
        %v994 = vpop.f32.mrb[0].mxu0
        %v995 = vpop.f32.mrb[0].mxu0
        %v996 = vpop.f32.mrb[0].mxu0
        %997 = vdwg.mxu0
        %v998 = vpack.c.bf16 %v993, %v993
        %999 = vst [vmem:[#allocation4] sm:$0xf] %v998
        %v1000 = vld [vmem:[#allocation2 + $0x4] sm:$0xf]
        %v1001 = vld [vmem:[#allocation3 + $0x4] sm:$0xf]
        %1002 = vmatprep.subr.bf16.mxu0 0
        %1003 = vmatpush1.bf16.xpose.msra.mxu0 %v1000
        %1004 = vmatprep.subr.bf16.mxu0 0
        %1005 = vmatpush1.bf16.xpose.msra.mxu0 0
        %1006 = vmatprep.subr.bf16.mxu0 0
        %1007 = vmatpush1.bf16.xpose.msra.mxu0 0
        %1008 = vmatprep.subr.bf16.mxu0 0
        %1009 = vmatpush1.bf16.xpose.msra.mxu0 0
        %1010 = vmatprep.subr.bf16.mxu0 0
        %1011 = vmatpush1.bf16.xpose.msra.mxu0 0
        %1012 = vmatprep.subr.bf16.mxu0 0
        %1013 = vmatpush1.bf16.xpose.msra.mxu0 0
        %1014 = vmatprep.subr.bf16.mxu0 0
        %1015 = vmatpush1.bf16.xpose.msra.mxu0 0
        %1016 = vmatprep.subr.bf16.mxu0 0
        %1017 = vmatpush1.bf16.xpose.msra.mxu0 0
        %1018 = vmatprep.subr.bf16.mxu0 0
        %1019 = vmatpush1.bf16.xpose.msra.mxu0 0
        %1020 = vmatprep.subr.bf16.mxu0 0
        %1021 = vmatpush1.bf16.xpose.msra.mxu0 0
        %1022 = vmatprep.subr.bf16.mxu0 0
        %1023 = vmatpush1.bf16.xpose.msra.mxu0 0
        %1024 = vmatprep.subr.bf16.mxu0 0
        %1025 = vmatpush1.bf16.xpose.msra.mxu0 0
        %1026 = vmatprep.subr.bf16.mxu0 0
        %1027 = vmatpush1.bf16.xpose.msra.mxu0 0
        %1028 = vmatprep.subr.bf16.mxu0 0
        %1029 = vmatpush1.bf16.xpose.msra.mxu0 0
        %1030 = vmatprep.subr.bf16.mxu0 0
        %1031 = vmatpush1.bf16.xpose.msra.mxu0 0
        %1032 = vmatprep.subr.bf16.mxu0 0
        %1033 = vmatpush1.bf16.xpose.msra.mxu0 0
        %1034 = vmatprep.mubr.bf16.mxu0 0
        %1035 = vmatmul.mubr.bf16.gmra.mrb[0].mxu0 %v892
        %v1036 = vpop.f32.mrb[0].mxu0
        %v1037 = vadd.f32 0.0, %v1036
        %v1038 = vpop.f32.mrb[0].mxu0
        %v1039 = vpop.f32.mrb[0].mxu0
        %v1040 = vpop.f32.mrb[0].mxu0
        %1041 = vdwg.mxu0
        %v1042 = vsel %vm937, %v1037, -inf
        %1043 = vmax.xlane.f32.xlu0 %v1042
        %v1044 = vpop.xlane.xlu0 %1043
        %v1045 = vsub.f32 %v1037, %v1044
        %v1046 = vmul.f32 %v1045, 1.442695
        %v1047 = vpow.pop %v1046
        %v1048 = vsel %vm937, %v1047, 0.0
        %1049 = vadd.xlane.f32.xlu0 %v1048
        %v1050 = vpop.xlane.xlu0 %1049
        %v1051 = vrcp.pop %v1050
        %v1052 = vmul.f32 %v1047, %v1051
        %1054 = vrot.lane.b32.xlu0 %v1052, 8
        %v1055 = vpop.permute.xlu0 %1054
        %vm1057 = vcmask 130112
        %1058 = vst.msk [vmem:[%s357] sm:$0xff] %vm1057, %v1055
        %v1059 = vpack.c.bf16 %v1052, %v1052
        %v1061 = vsel %vm937, %v1059, 0
        %v1064 = vsel %vm954, %v1001, 0
        %1066 = vmatprep.subr.bf16.mxu0 0
        %1067 = vmatpush1.bf16.msra.mxu0 %v1064
        %1068 = vmatprep.subr.bf16.mxu0 0
        %1069 = vmatpush1.bf16.msra.mxu0 0
        %1070 = vmatprep.subr.bf16.mxu0 0
        %1071 = vmatpush1.bf16.msra.mxu0 0
        %1072 = vmatprep.subr.bf16.mxu0 0
        %1073 = vmatpush1.bf16.msra.mxu0 0
        %1074 = vmatprep.subr.bf16.mxu0 0
        %1075 = vmatpush1.bf16.msra.mxu0 0
        %1076 = vmatprep.subr.bf16.mxu0 0
        %1077 = vmatpush1.bf16.msra.mxu0 0
        %1078 = vmatprep.subr.bf16.mxu0 0
        %1079 = vmatpush1.bf16.msra.mxu0 0
        %1080 = vmatprep.subr.bf16.mxu0 0
        %1081 = vmatpush1.bf16.msra.mxu0 0
        %1082 = vmatprep.subr.bf16.mxu0 0
        %1083 = vmatpush1.bf16.msra.mxu0 0
        %1084 = vmatprep.subr.bf16.mxu0 0
        %1085 = vmatpush1.bf16.msra.mxu0 0
        %1086 = vmatprep.subr.bf16.mxu0 0
        %1087 = vmatpush1.bf16.msra.mxu0 0
        %1088 = vmatprep.subr.bf16.mxu0 0
        %1089 = vmatpush1.bf16.msra.mxu0 0
        %1090 = vmatprep.subr.bf16.mxu0 0
        %1091 = vmatpush1.bf16.msra.mxu0 0
        %1092 = vmatprep.subr.bf16.mxu0 0
        %1093 = vmatpush1.bf16.msra.mxu0 0
        %1094 = vmatprep.subr.bf16.mxu0 0
        %1095 = vmatpush1.bf16.msra.mxu0 0
        %1096 = vmatprep.subr.bf16.mxu0 0
        %1097 = vmatpush1.bf16.msra.mxu0 0
        %1098 = vmatprep.mubr.bf16.mxu0 0
        %1099 = vmatmul.mubr.bf16.gmra.mrb[0].mxu0 %v1061
        %v1100 = vpop.f32.mrb[0].mxu0
        %v1101 = vadd.f32 0.0, %v1100
        %v1102 = vpop.f32.mrb[0].mxu0
        %v1103 = vpop.f32.mrb[0].mxu0
        %v1104 = vpop.f32.mrb[0].mxu0
        %1105 = vdwg.mxu0
        %v1106 = vpack.c.bf16 %v1101, %v1101
        %1107 = vst [vmem:[#allocation4 + $0x4] sm:$0xf] %v1106
        %v1108 = vld [vmem:[#allocation2 + $0x8] sm:$0xf]
        %v1109 = vld [vmem:[#allocation3 + $0x8] sm:$0xf]
        %1110 = vmatprep.subr.bf16.mxu0 0
        %1111 = vmatpush1.bf16.xpose.msra.mxu0 %v1108
        %1112 = vmatprep.subr.bf16.mxu0 0
        %1113 = vmatpush1.bf16.xpose.msra.mxu0 0
        %1114 = vmatprep.subr.bf16.mxu0 0
        %1115 = vmatpush1.bf16.xpose.msra.mxu0 0
        %1116 = vmatprep.subr.bf16.mxu0 0
        %1117 = vmatpush1.bf16.xpose.msra.mxu0 0
        %1118 = vmatprep.subr.bf16.mxu0 0
        %1119 = vmatpush1.bf16.xpose.msra.mxu0 0
        %1120 = vmatprep.subr.bf16.mxu0 0
        %1121 = vmatpush1.bf16.xpose.msra.mxu0 0
        %1122 = vmatprep.subr.bf16.mxu0 0
        %1123 = vmatpush1.bf16.xpose.msra.mxu0 0
        %1124 = vmatprep.subr.bf16.mxu0 0
        %1125 = vmatpush1.bf16.xpose.msra.mxu0 0
        %1126 = vmatprep.subr.bf16.mxu0 0
        %1127 = vmatpush1.bf16.xpose.msra.mxu0 0
        %1128 = vmatprep.subr.bf16.mxu0 0
        %1129 = vmatpush1.bf16.xpose.msra.mxu0 0
        %1130 = vmatprep.subr.bf16.mxu0 0
        %1131 = vmatpush1.bf16.xpose.msra.mxu0 0
        %1132 = vmatprep.subr.bf16.mxu0 0
        %1133 = vmatpush1.bf16.xpose.msra.mxu0 0
        %1134 = vmatprep.subr.bf16.mxu0 0
        %1135 = vmatpush1.bf16.xpose.msra.mxu0 0
        %1136 = vmatprep.subr.bf16.mxu0 0
        %1137 = vmatpush1.bf16.xpose.msra.mxu0 0
        %1138 = vmatprep.subr.bf16.mxu0 0
        %1139 = vmatpush1.bf16.xpose.msra.mxu0 0
        %1140 = vmatprep.subr.bf16.mxu0 0
        %1141 = vmatpush1.bf16.xpose.msra.mxu0 0
        %1142 = vmatprep.mubr.bf16.mxu0 0
        %1143 = vmatmul.mubr.bf16.gmra.mrb[0].mxu0 %v893
        %v1144 = vpop.f32.mrb[0].mxu0
        %v1145 = vadd.f32 0.0, %v1144
        %v1146 = vpop.f32.mrb[0].mxu0
        %v1147 = vpop.f32.mrb[0].mxu0
        %v1148 = vpop.f32.mrb[0].mxu0
        %1149 = vdwg.mxu0
        %v1150 = vsel %vm937, %v1145, -inf
        %1151 = vmax.xlane.f32.xlu0 %v1150
        %v1152 = vpop.xlane.xlu0 %1151
        %v1153 = vsub.f32 %v1145, %v1152
        %v1154 = vmul.f32 %v1153, 1.442695
        %v1155 = vpow.pop %v1154
        %v1156 = vsel %vm937, %v1155, 0.0
        %1157 = vadd.xlane.f32.xlu0 %v1156
        %v1158 = vpop.xlane.xlu0 %1157
        %v1159 = vrcp.pop %v1158
        %v1160 = vmul.f32 %v1155, %v1159
        %1162 = vrot.lane.b32.xlu0 %v1160, 16
        %v1163 = vpop.permute.xlu0 %1162
        %vm1165 = vcmask 195712
        %1166 = vst.msk [vmem:[%s357] sm:$0xff] %vm1165, %v1163
        %v1167 = vpack.c.bf16 %v1160, %v1160
        %v1169 = vsel %vm937, %v1167, 0
        %v1172 = vsel %vm954, %v1109, 0
        %1174 = vmatprep.subr.bf16.mxu0 0
        %1175 = vmatpush1.bf16.msra.mxu0 %v1172
        %1176 = vmatprep.subr.bf16.mxu0 0
        %1177 = vmatpush1.bf16.msra.mxu0 0
        %1178 = vmatprep.subr.bf16.mxu0 0
        %1179 = vmatpush1.bf16.msra.mxu0 0
        %1180 = vmatprep.subr.bf16.mxu0 0
        %1181 = vmatpush1.bf16.msra.mxu0 0
        %1182 = vmatprep.subr.bf16.mxu0 0
        %1183 = vmatpush1.bf16.msra.mxu0 0
        %1184 = vmatprep.subr.bf16.mxu0 0
        %1185 = vmatpush1.bf16.msra.mxu0 0
        %1186 = vmatprep.subr.bf16.mxu0 0
        %1187 = vmatpush1.bf16.msra.mxu0 0
        %1188 = vmatprep.subr.bf16.mxu0 0
        %1189 = vmatpush1.bf16.msra.mxu0 0
        %1190 = vmatprep.subr.bf16.mxu0 0
        %1191 = vmatpush1.bf16.msra.mxu0 0
        %1192 = vmatprep.subr.bf16.mxu0 0
        %1193 = vmatpush1.bf16.msra.mxu0 0
        %1194 = vmatprep.subr.bf16.mxu0 0
        %1195 = vmatpush1.bf16.msra.mxu0 0
        %1196 = vmatprep.subr.bf16.mxu0 0
        %1197 = vmatpush1.bf16.msra.mxu0 0
        %1198 = vmatprep.subr.bf16.mxu0 0
        %1199 = vmatpush1.bf16.msra.mxu0 0
        %1200 = vmatprep.subr.bf16.mxu0 0
        %1201 = vmatpush1.bf16.msra.mxu0 0
        %1202 = vmatprep.subr.bf16.mxu0 0
        %1203 = vmatpush1.bf16.msra.mxu0 0
        %1204 = vmatprep.subr.bf16.mxu0 0
        %1205 = vmatpush1.bf16.msra.mxu0 0
        %1206 = vmatprep.mubr.bf16.mxu0 0
        %1207 = vmatmul.mubr.bf16.gmra.mrb[0].mxu0 %v1169
        %v1208 = vpop.f32.mrb[0].mxu0
        %v1209 = vadd.f32 0.0, %v1208
        %v1210 = vpop.f32.mrb[0].mxu0
        %v1211 = vpop.f32.mrb[0].mxu0
        %v1212 = vpop.f32.mrb[0].mxu0
        %1213 = vdwg.mxu0
        %v1214 = vpack.c.bf16 %v1209, %v1209
        %1215 = vst [vmem:[#allocation4 + $0x8] sm:$0xf] %v1214
        %v1216 = vld [vmem:[#allocation2 + $0xc] sm:$0xf]
        %v1217 = vld [vmem:[#allocation3 + $0xc] sm:$0xf]
        %1218 = vmatprep.subr.bf16.mxu0 0
        %1219 = vmatpush1.bf16.xpose.msra.mxu0 %v1216
        %1220 = vmatprep.subr.bf16.mxu0 0
        %1221 = vmatpush1.bf16.xpose.msra.mxu0 0
        %1222 = vmatprep.subr.bf16.mxu0 0
        %1223 = vmatpush1.bf16.xpose.msra.mxu0 0
        %1224 = vmatprep.subr.bf16.mxu0 0
        %1225 = vmatpush1.bf16.xpose.msra.mxu0 0
        %1226 = vmatprep.subr.bf16.mxu0 0
        %1227 = vmatpush1.bf16.xpose.msra.mxu0 0
        %1228 = vmatprep.subr.bf16.mxu0 0
        %1229 = vmatpush1.bf16.xpose.msra.mxu0 0
        %1230 = vmatprep.subr.bf16.mxu0 0
        %1231 = vmatpush1.bf16.xpose.msra.mxu0 0
        %1232 = vmatprep.subr.bf16.mxu0 0
        %1233 = vmatpush1.bf16.xpose.msra.mxu0 0
        %1234 = vmatprep.subr.bf16.mxu0 0
        %1235 = vmatpush1.bf16.xpose.msra.mxu0 0
        %1236 = vmatprep.subr.bf16.mxu0 0
        %1237 = vmatpush1.bf16.xpose.msra.mxu0 0
        %1238 = vmatprep.subr.bf16.mxu0 0
        %1239 = vmatpush1.bf16.xpose.msra.mxu0 0
        %1240 = vmatprep.subr.bf16.mxu0 0
        %1241 = vmatpush1.bf16.xpose.msra.mxu0 0
        %1242 = vmatprep.subr.bf16.mxu0 0
        %1243 = vmatpush1.bf16.xpose.msra.mxu0 0
        %1244 = vmatprep.subr.bf16.mxu0 0
        %1245 = vmatpush1.bf16.xpose.msra.mxu0 0
        %1246 = vmatprep.subr.bf16.mxu0 0
        %1247 = vmatpush1.bf16.xpose.msra.mxu0 0
        %1248 = vmatprep.subr.bf16.mxu0 0
        %1249 = vmatpush1.bf16.xpose.msra.mxu0 0
        %1250 = vmatprep.mubr.bf16.mxu0 0
        %1251 = vmatmul.mubr.bf16.gmra.mrb[0].mxu0 %v894
        %v1252 = vpop.f32.mrb[0].mxu0
        %v1253 = vadd.f32 0.0, %v1252
        %v1254 = vpop.f32.mrb[0].mxu0
        %v1255 = vpop.f32.mrb[0].mxu0
        %v1256 = vpop.f32.mrb[0].mxu0
        %1257 = vdwg.mxu0
        %v1258 = vsel %vm937, %v1253, -inf
        %1259 = vmax.xlane.f32.xlu0 %v1258
        %v1260 = vpop.xlane.xlu0 %1259
        %v1261 = vsub.f32 %v1253, %v1260
        %v1262 = vmul.f32 %v1261, 1.442695
        %v1263 = vpow.pop %v1262
        %v1264 = vsel %vm937, %v1263, 0.0
        %1265 = vadd.xlane.f32.xlu0 %v1264
        %v1266 = vpop.xlane.xlu0 %1265
        %v1267 = vrcp.pop %v1266
        %v1268 = vmul.f32 %v1263, %v1267
        %1270 = vrot.lane.b32.xlu0 %v1268, 24
        %v1271 = vpop.permute.xlu0 %1270
        %vm1273 = vcmask 261312
        %1274 = vst.msk [vmem:[%s357] sm:$0xff] %vm1273, %v1271
        %v1275 = vpack.c.bf16 %v1268, %v1268
        %v1277 = vsel %vm937, %v1275, 0
        %v1280 = vsel %vm954, %v1217, 0
        %1282 = vmatprep.subr.bf16.mxu0 0
        %1283 = vmatpush1.bf16.msra.mxu0 %v1280
        %1284 = vmatprep.subr.bf16.mxu0 0
        %1285 = vmatpush1.bf16.msra.mxu0 0
        %1286 = vmatprep.subr.bf16.mxu0 0
        %1287 = vmatpush1.bf16.msra.mxu0 0
        %1288 = vmatprep.subr.bf16.mxu0 0
        %1289 = vmatpush1.bf16.msra.mxu0 0
        %1290 = vmatprep.subr.bf16.mxu0 0
        %1291 = vmatpush1.bf16.msra.mxu0 0
        %1292 = vmatprep.subr.bf16.mxu0 0
        %1293 = vmatpush1.bf16.msra.mxu0 0
        %1294 = vmatprep.subr.bf16.mxu0 0
        %1295 = vmatpush1.bf16.msra.mxu0 0
        %1296 = vmatprep.subr.bf16.mxu0 0
        %1297 = vmatpush1.bf16.msra.mxu0 0
        %1298 = vmatprep.subr.bf16.mxu0 0
        %1299 = vmatpush1.bf16.msra.mxu0 0
        %1300 = vmatprep.subr.bf16.mxu0 0
        %1301 = vmatpush1.bf16.msra.mxu0 0
        %1302 = vmatprep.subr.bf16.mxu0 0
        %1303 = vmatpush1.bf16.msra.mxu0 0
        %1304 = vmatprep.subr.bf16.mxu0 0
        %1305 = vmatpush1.bf16.msra.mxu0 0
        %1306 = vmatprep.subr.bf16.mxu0 0
        %1307 = vmatpush1.bf16.msra.mxu0 0
        %1308 = vmatprep.subr.bf16.mxu0 0
        %1309 = vmatpush1.bf16.msra.mxu0 0
        %1310 = vmatprep.subr.bf16.mxu0 0
        %1311 = vmatpush1.bf16.msra.mxu0 0
        %1312 = vmatprep.subr.bf16.mxu0 0
        %1313 = vmatpush1.bf16.msra.mxu0 0
        %1314 = vmatprep.mubr.bf16.mxu0 0
        %1315 = vmatmul.mubr.bf16.gmra.mrb[0].mxu0 %v1277
        %v1316 = vpop.f32.mrb[0].mxu0
        %v1317 = vadd.f32 0.0, %v1316
        %v1318 = vpop.f32.mrb[0].mxu0
        %v1319 = vpop.f32.mrb[0].mxu0
        %v1320 = vpop.f32.mrb[0].mxu0
        %1321 = vdwg.mxu0
        %v1322 = vpack.c.bf16 %v1317, %v1317
        %1323 = vst [vmem:[#allocation4 + $0xc] sm:$0xf] %v1322
        %v1324 = vld [vmem:[#allocation4] sm:$0xff]
        %v1325 = vld [vmem:[#allocation4 + $0x8] sm:$0xff]
        %v1326 = vld [vmem:[%s5] sm:$0xf]
        %v1327 = vld [vmem:[%s5 + $0x4] sm:$0xf]
        %v1328 = vld [vmem:[%s5 + $0x8] sm:$0xf]
        %v1329 = vld [vmem:[%s5 + $0xc] sm:$0xf]
        %v1330 = vld [vmem:[%s5 + $0x10] sm:$0xf]
        %v1331 = vld [vmem:[%s5 + $0x14] sm:$0xf]
        %v1332 = vld [vmem:[%s5 + $0x18] sm:$0xf]
        %v1333 = vld [vmem:[%s5 + $0x1c] sm:$0xf]
        %v1334 = vld [vmem:[%s5 + $0x20] sm:$0xf]
        %v1335 = vld [vmem:[%s5 + $0x24] sm:$0xf]
        %v1336 = vld [vmem:[%s5 + $0x28] sm:$0xf]
        %v1337 = vld [vmem:[%s5 + $0x2c] sm:$0xf]
        %v1338 = vld [vmem:[%s5 + $0x30] sm:$0xf]
        %v1339 = vld [vmem:[%s5 + $0x34] sm:$0xf]
        %v1340 = vld [vmem:[%s5 + $0x38] sm:$0xf]
        %v1341 = vld [vmem:[%s5 + $0x3c] sm:$0xf]
        %v1342 = vld [vmem:[%s5 + $0x40] sm:$0xf]
        %v1343 = vld [vmem:[%s5 + $0x44] sm:$0xf]
        %v1344 = vld [vmem:[%s5 + $0x48] sm:$0xf]
        %v1345 = vld [vmem:[%s5 + $0x4c] sm:$0xf]
        %v1346 = vld [vmem:[%s5 + $0x50] sm:$0xf]
        %v1347 = vld [vmem:[%s5 + $0x54] sm:$0xf]
        %v1348 = vld [vmem:[%s5 + $0x58] sm:$0xf]
        %v1349 = vld [vmem:[%s5 + $0x5c] sm:$0xf]
        %v1350 = vld [vmem:[%s5 + $0x60] sm:$0xf]
        %v1351 = vld [vmem:[%s5 + $0x64] sm:$0xf]
        %v1352 = vld [vmem:[%s5 + $0x68] sm:$0xf]
        %v1353 = vld [vmem:[%s5 + $0x6c] sm:$0xf]
        %v1354 = vld [vmem:[%s5 + $0x70] sm:$0xf]
        %v1355 = vld [vmem:[%s5 + $0x74] sm:$0xf]
        %v1356 = vld [vmem:[%s5 + $0x78] sm:$0xf]
        %v1357 = vld [vmem:[%s5 + $0x7c] sm:$0xf]
        %v1358 = vld [vmem:[%s5 + $0x80] sm:$0xf]
        %v1359 = vld [vmem:[%s5 + $0x84] sm:$0xf]
        %v1360 = vld [vmem:[%s5 + $0x88] sm:$0xf]
        %v1361 = vld [vmem:[%s5 + $0x8c] sm:$0xf]
        %v1362 = vld [vmem:[%s5 + $0x90] sm:$0xf]
        %v1363 = vld [vmem:[%s5 + $0x94] sm:$0xf]
        %v1364 = vld [vmem:[%s5 + $0x98] sm:$0xf]
        %v1365 = vld [vmem:[%s5 + $0x9c] sm:$0xf]
        %v1366 = vld [vmem:[%s5 + $0xa0] sm:$0xf]
        %v1367 = vld [vmem:[%s5 + $0xa4] sm:$0xf]
        %v1368 = vld [vmem:[%s5 + $0xa8] sm:$0xf]
        %v1369 = vld [vmem:[%s5 + $0xac] sm:$0xf]
        %v1370 = vld [vmem:[%s5 + $0xb0] sm:$0xf]
        %v1371 = vld [vmem:[%s5 + $0xb4] sm:$0xf]
        %v1372 = vld [vmem:[%s5 + $0xb8] sm:$0xf]
        %v1373 = vld [vmem:[%s5 + $0xbc] sm:$0xf]
        %v1374 = vld [vmem:[%s5 + $0xc0] sm:$0xf]
        %v1375 = vld [vmem:[%s5 + $0xc4] sm:$0xf]
        %v1376 = vld [vmem:[%s5 + $0xc8] sm:$0xf]
        %v1377 = vld [vmem:[%s5 + $0xcc] sm:$0xf]
        %v1378 = vld [vmem:[%s5 + $0xd0] sm:$0xf]
        %v1379 = vld [vmem:[%s5 + $0xd4] sm:$0xf]
        %v1380 = vld [vmem:[%s5 + $0xd8] sm:$0xf]
        %v1381 = vld [vmem:[%s5 + $0xdc] sm:$0xf]
        %v1382 = vld [vmem:[%s5 + $0xe0] sm:$0xf]
        %v1383 = vld [vmem:[%s5 + $0xe4] sm:$0xf]
        %v1384 = vld [vmem:[%s5 + $0xe8] sm:$0xf]
        %v1385 = vld [vmem:[%s5 + $0xec] sm:$0xf]
        %v1386 = vld [vmem:[%s5 + $0xf0] sm:$0xf]
        %v1387 = vld [vmem:[%s5 + $0xf4] sm:$0xf]
        %v1388 = vld [vmem:[%s5 + $0xf8] sm:$0xf]
        %v1389 = vld [vmem:[%s5 + $0xfc] sm:$0xf]
        %v1390 = vld [vmem:[%s6] sm:$0x1]
        %v1392 = vlaneseq
        %v1393 = vshrl.u32 %v1392, 7
        %v1394 = vsub.s32 0, %v1393
        %v1395 = vrot.slane %v1390, %v1394
        %v1399 = vunpack.c.l.b16 %v1324
        %v1400 = vunpack.c.h.b16 %v1324
        %v1401 = vunpack.c.l.b16 %v1325
        %v1402 = vunpack.c.h.b16 %v1325
        %v1403 = vpack.c.b16 %v1399, %v1399
        %v1404 = vpack.c.b16 %v1400, %v1400
        %v1405 = vpack.c.b16 %v1401, %v1401
        %v1406 = vpack.c.b16 %v1402, %v1402
        %v1475 = vunpack.c.l.b16 %v1326
        %v1476 = vunpack.c.l.b16 %v1327
        %v1477 = vunpack.c.l.b16 %v1328
        %v1478 = vunpack.c.l.b16 %v1329
        %v1479 = vunpack.c.l.b16 %v1330
        %v1480 = vunpack.c.l.b16 %v1331
        %v1481 = vunpack.c.l.b16 %v1332
        %v1482 = vunpack.c.l.b16 %v1333
        %v1483 = vunpack.c.l.b16 %v1334
        %v1484 = vunpack.c.l.b16 %v1335
        %v1485 = vunpack.c.l.b16 %v1336
        %v1486 = vunpack.c.l.b16 %v1337
        %v1487 = vunpack.c.l.b16 %v1338
        %v1488 = vunpack.c.l.b16 %v1339
        %v1489 = vunpack.c.l.b16 %v1340
        %v1490 = vunpack.c.l.b16 %v1341
        %v1491 = vunpack.c.l.b16 %v1342
        %v1492 = vunpack.c.l.b16 %v1343
        %v1493 = vunpack.c.l.b16 %v1344
        %v1494 = vunpack.c.l.b16 %v1345
        %v1495 = vunpack.c.l.b16 %v1346
        %v1496 = vunpack.c.l.b16 %v1347
        %v1497 = vunpack.c.l.b16 %v1348
        %v1498 = vunpack.c.l.b16 %v1349
        %v1499 = vunpack.c.l.b16 %v1350
        %v1500 = vunpack.c.l.b16 %v1351
        %v1501 = vunpack.c.l.b16 %v1352
        %v1502 = vunpack.c.l.b16 %v1353
        %v1503 = vunpack.c.l.b16 %v1354
        %v1504 = vunpack.c.l.b16 %v1355
        %v1505 = vunpack.c.l.b16 %v1356
        %v1506 = vunpack.c.l.b16 %v1357
        %v1507 = vunpack.c.l.b16 %v1358
        %v1508 = vunpack.c.l.b16 %v1359
        %v1509 = vunpack.c.l.b16 %v1360
        %v1510 = vunpack.c.l.b16 %v1361
        %v1511 = vunpack.c.l.b16 %v1362
        %v1512 = vunpack.c.l.b16 %v1363
        %v1513 = vunpack.c.l.b16 %v1364
        %v1514 = vunpack.c.l.b16 %v1365
        %v1515 = vunpack.c.l.b16 %v1366
        %v1516 = vunpack.c.l.b16 %v1367
        %v1517 = vunpack.c.l.b16 %v1368
        %v1518 = vunpack.c.l.b16 %v1369
        %v1519 = vunpack.c.l.b16 %v1370
        %v1520 = vunpack.c.l.b16 %v1371
        %v1521 = vunpack.c.l.b16 %v1372
        %v1522 = vunpack.c.l.b16 %v1373
        %v1523 = vunpack.c.l.b16 %v1374
        %v1524 = vunpack.c.l.b16 %v1375
        %v1525 = vunpack.c.l.b16 %v1376
        %v1526 = vunpack.c.l.b16 %v1377
        %v1527 = vunpack.c.l.b16 %v1378
        %v1528 = vunpack.c.l.b16 %v1379
        %v1529 = vunpack.c.l.b16 %v1380
        %v1530 = vunpack.c.l.b16 %v1381
        %v1531 = vunpack.c.l.b16 %v1382
        %v1532 = vunpack.c.l.b16 %v1383
        %v1533 = vunpack.c.l.b16 %v1384
        %v1534 = vunpack.c.l.b16 %v1385
        %v1535 = vunpack.c.l.b16 %v1386
        %v1536 = vunpack.c.l.b16 %v1387
        %v1537 = vunpack.c.l.b16 %v1388
        %v1538 = vunpack.c.l.b16 %v1389
        %v1539 = vpack.c.b16 %v1476, %v1475
        %v1540 = vpack.c.b16 %v1478, %v1477
        %v1541 = vpack.c.b16 %v1480, %v1479
        %v1542 = vpack.c.b16 %v1482, %v1481
        %v1543 = vpack.c.b16 %v1484, %v1483
        %v1544 = vpack.c.b16 %v1486, %v1485
        %v1545 = vpack.c.b16 %v1488, %v1487
        %v1546 = vpack.c.b16 %v1490, %v1489
        %v1547 = vpack.c.b16 %v1492, %v1491
        %v1548 = vpack.c.b16 %v1494, %v1493
        %v1549 = vpack.c.b16 %v1496, %v1495
        %v1550 = vpack.c.b16 %v1498, %v1497
        %v1551 = vpack.c.b16 %v1500, %v1499
        %v1552 = vpack.c.b16 %v1502, %v1501
        %v1553 = vpack.c.b16 %v1504, %v1503
        %v1554 = vpack.c.b16 %v1506, %v1505
        %v1555 = vpack.c.b16 %v1508, %v1507
        %v1556 = vpack.c.b16 %v1510, %v1509
        %v1557 = vpack.c.b16 %v1512, %v1511
        %v1558 = vpack.c.b16 %v1514, %v1513
        %v1559 = vpack.c.b16 %v1516, %v1515
        %v1560 = vpack.c.b16 %v1518, %v1517
        %v1561 = vpack.c.b16 %v1520, %v1519
        %v1562 = vpack.c.b16 %v1522, %v1521
        %v1563 = vpack.c.b16 %v1524, %v1523
        %v1564 = vpack.c.b16 %v1526, %v1525
        %v1565 = vpack.c.b16 %v1528, %v1527
        %v1566 = vpack.c.b16 %v1530, %v1529
        %v1567 = vpack.c.b16 %v1532, %v1531
        %v1568 = vpack.c.b16 %v1534, %v1533
        %v1569 = vpack.c.b16 %v1536, %v1535
        %v1570 = vpack.c.b16 %v1538, %v1537
        %1603 = vmatprep.subr.bf16.mxu0 0
        %1604 = vmatpush1.bf16.msra.mxu0 %v1539
        %1605 = vmatprep.subr.bf16.mxu0 0
        %1606 = vmatpush1.bf16.msra.mxu0 %v1540
        %1607 = vmatprep.subr.bf16.mxu0 0
        %1608 = vmatpush1.bf16.msra.mxu0 %v1541
        %1609 = vmatprep.subr.bf16.mxu0 0
        %1610 = vmatpush1.bf16.msra.mxu0 %v1542
        %1611 = vmatprep.subr.bf16.mxu0 0
        %1612 = vmatpush1.bf16.msra.mxu0 %v1543
        %1613 = vmatprep.subr.bf16.mxu0 0
        %1614 = vmatpush1.bf16.msra.mxu0 %v1544
        %1615 = vmatprep.subr.bf16.mxu0 0
        %1616 = vmatpush1.bf16.msra.mxu0 %v1545
        %1617 = vmatprep.subr.bf16.mxu0 0
        %1618 = vmatpush1.bf16.msra.mxu0 %v1546
        %1619 = vmatprep.subr.bf16.mxu0 0
        %1620 = vmatpush1.bf16.msra.mxu0 %v1547
        %1621 = vmatprep.subr.bf16.mxu0 0
        %1622 = vmatpush1.bf16.msra.mxu0 %v1548
        %1623 = vmatprep.subr.bf16.mxu0 0
        %1624 = vmatpush1.bf16.msra.mxu0 %v1549
        %1625 = vmatprep.subr.bf16.mxu0 0
        %1626 = vmatpush1.bf16.msra.mxu0 %v1550
        %1627 = vmatprep.subr.bf16.mxu0 0
        %1628 = vmatpush1.bf16.msra.mxu0 %v1551
        %1629 = vmatprep.subr.bf16.mxu0 0
        %1630 = vmatpush1.bf16.msra.mxu0 %v1552
        %1631 = vmatprep.subr.bf16.mxu0 0
        %1632 = vmatpush1.bf16.msra.mxu0 %v1553
        %1633 = vmatprep.subr.bf16.mxu0 0
        %1634 = vmatpush1.bf16.msra.mxu0 %v1554
        %1635 = vmatprep.mubr.bf16.mxu0 %v1404
        %1636 = vmatmul.mubr.bf16.gmra.mrb[0].mxu0 %v1403
        %v1637 = vpop.f32.mrb[0].mxu0
        %v1638 = vadd.f32 %v1395, %v1637
        %v1639 = vpop.f32.mrb[0].mxu0
        %v1640 = vpop.f32.mrb[0].mxu0
        %v1641 = vpop.f32.mrb[0].mxu0
        %1642 = vdwg.mxu0
        %1643 = vmatprep.subr.bf16.mxu0 0
        %1644 = vmatpush1.bf16.msra.mxu0 %v1555
        %1645 = vmatprep.subr.bf16.mxu0 0
        %1646 = vmatpush1.bf16.msra.mxu0 %v1556
        %1647 = vmatprep.subr.bf16.mxu0 0
        %1648 = vmatpush1.bf16.msra.mxu0 %v1557
        %1649 = vmatprep.subr.bf16.mxu0 0
        %1650 = vmatpush1.bf16.msra.mxu0 %v1558
        %1651 = vmatprep.subr.bf16.mxu0 0
        %1652 = vmatpush1.bf16.msra.mxu0 %v1559
        %1653 = vmatprep.subr.bf16.mxu0 0
        %1654 = vmatpush1.bf16.msra.mxu0 %v1560
        %1655 = vmatprep.subr.bf16.mxu0 0
        %1656 = vmatpush1.bf16.msra.mxu0 %v1561
        %1657 = vmatprep.subr.bf16.mxu0 0
        %1658 = vmatpush1.bf16.msra.mxu0 %v1562
        %1659 = vmatprep.subr.bf16.mxu0 0
        %1660 = vmatpush1.bf16.msra.mxu0 %v1563
        %1661 = vmatprep.subr.bf16.mxu0 0
        %1662 = vmatpush1.bf16.msra.mxu0 %v1564
        %1663 = vmatprep.subr.bf16.mxu0 0
        %1664 = vmatpush1.bf16.msra.mxu0 %v1565
        %1665 = vmatprep.subr.bf16.mxu0 0
        %1666 = vmatpush1.bf16.msra.mxu0 %v1566
        %1667 = vmatprep.subr.bf16.mxu0 0
        %1668 = vmatpush1.bf16.msra.mxu0 %v1567
        %1669 = vmatprep.subr.bf16.mxu0 0
        %1670 = vmatpush1.bf16.msra.mxu0 %v1568
        %1671 = vmatprep.subr.bf16.mxu0 0
        %1672 = vmatpush1.bf16.msra.mxu0 %v1569
        %1673 = vmatprep.subr.bf16.mxu0 0
        %1674 = vmatpush1.bf16.msra.mxu0 %v1570
        %1675 = vmatprep.mubr.bf16.mxu0 %v1406
        %1676 = vmatmul.mubr.bf16.gmra.mrb[0].mxu0 %v1405
        %v1677 = vpop.f32.mrb[0].mxu0
        %v1678 = vadd.f32 %v1638, %v1677
        %v1679 = vpop.f32.mrb[0].mxu0
        %v1680 = vpop.f32.mrb[0].mxu0
        %v1681 = vpop.f32.mrb[0].mxu0
        %1682 = vdwg.mxu0
        %1683 = vst.msk [vmem:[%s350] sm:$0xff] %vm805, %v1678
        %s1684 = sand.u32 %s212, 1
        %s1685 = scalar_lea.sflag [#allocation6], %s1684
        %s1686 = sand.u32 %s212, 1
        %s1687 = smul.addr %s1686, 8
        %s1688 = scalar_lea.vmem [#allocation5], %s1687
        %s1689 = sand.u32 %s240, 1
        %s1690 = scalar_lea.sflag [#allocation8], %s1689
        %s1691 = sand.u32 %s240, 1
        %s1692 = smul.addr %s1691, 8
        %s1693 = scalar_lea.vmem [#allocation7], %s1692
        // Predicated region
        $region53: #{tpu_custom_call.1} parent=47 // pred_check
          %p1694 = pneg %p222
        $region54: #{tpu_custom_call.1} parent=47 // pred_check_branch
          %1696 = sbr.rel (%p1694) target = $region56
        $region55: #{tpu_custom_call.1} parent=47 // pred_region
          %s1698 = ssub.s32 128, 128
          %1699 = vsyncadd %s1685, %s1698
          %s1700 = sadd.s32 %s31, %s30
          %s1701 = smul.addr %s1700, 128
          %s1702 = scalar_lea.hbm %s7, %s1701
          %s1704 = sshll.u32 %s1688, 4
          %s1705 = int_to_ptr.vmem [resolvable:$true] %s1704
          %1707 = dma.vmem_to_hbm [thread:$0]  %s1705, 128, %s1702, %s1685
        $region56: #{tpu_custom_call.1} parent=47 // pred_fallthru
          _
        // Predicated region
        $region57: #{tpu_custom_call.1} parent=47 // pred_check
          %p1708 = pneg %p250
        $region58: #{tpu_custom_call.1} parent=47 // pred_check_branch
          %1710 = sbr.rel (%p1708) target = $region60
        $region59: #{tpu_custom_call.1} parent=47 // pred_region
          %s1712 = ssub.s32 128, 128
          %1713 = vsyncadd %s1690, %s1712
          %s1714 = sadd.s32 %s31, %s30
          %s1715 = smul.addr %s1714, 128
          %s1716 = scalar_lea.hbm %s8, %s1715
          %s1718 = sshll.u32 %s1693, 4
          %s1719 = int_to_ptr.vmem [resolvable:$true] %s1718
          %1721 = dma.vmem_to_hbm [thread:$0]  %s1719, 128, %s1716, %s1690
        $region60: #{tpu_custom_call.1} parent=47 // pred_fallthru
          _
      $region48: #{tpu_custom_call.1} parent=5 // pred_fallthru
        _
      %p1722 = scmp.le.s32.totalorder 2, %s21
      // Predicated region
      $region61: #{tpu_custom_call.1} parent=5 // pred_check
        %p1723 = pneg %p1722
      $region62: #{tpu_custom_call.1} parent=5 // pred_check_branch
        %1725 = sbr.rel (%p1723) target = $region64
      $region63: #{tpu_custom_call.1} parent=5 // pred_region
        %s1726 = ssub.s32 %s21, 2
        // Predicated region
        $region65: #{tpu_custom_call.1} parent=63 // pred_check
          %p1727 = pneg %p228
        $region66: #{tpu_custom_call.1} parent=63 // pred_check_branch
          %1729 = sbr.rel (%p1727) target = $region68
        $region67: #{tpu_custom_call.1} parent=63 // pred_region
          %s1730 = sand.u32 %s213, 1
          %s1731 = scalar_lea.sflag [#allocation6], %s1730
          %s1732 = sand.u32 %s213, 1
          %s1733 = smul.addr %s1732, 8
          %s1734 = scalar_lea.vmem [#allocation5], %s1733
          %1735 = dma.done %s1731, 128
        $region68: #{tpu_custom_call.1} parent=63 // pred_fallthru
          _
        // Predicated region
        $region69: #{tpu_custom_call.1} parent=63 // pred_check
          %p1736 = pneg %p256
        $region70: #{tpu_custom_call.1} parent=63 // pred_check_branch
          %1738 = sbr.rel (%p1736) target = $region72
        $region71: #{tpu_custom_call.1} parent=63 // pred_region
          %s1739 = sand.u32 %s241, 1
          %s1740 = scalar_lea.sflag [#allocation8], %s1739
          %s1741 = sand.u32 %s241, 1
          %s1742 = smul.addr %s1741, 8
          %s1743 = scalar_lea.vmem [#allocation7], %s1742
          %1744 = dma.done %s1740, 128
        $region72: #{tpu_custom_call.1} parent=63 // pred_fallthru
          _
      $region64: #{tpu_custom_call.1} parent=5 // pred_fallthru
        _
    $region6: #{tpu_custom_call.1} parent=1 // loop_footer
      %s25 = sadd.s32 1, %s21
    $region7: #{tpu_custom_call.1} parent=1 // loop_footer_branch
      %20 = sbr.rel target = $region3
    $region8: #{tpu_custom_call.1} parent=1 // loop_exit
      _
    %1745 = vsyncpa [#allocation6], 1
    %s1746 = scalar_lea.sflag [#allocation6], 1
    %1747 = vsyncpa %s1746, 1
    %1748 = vsyncpa [#allocation8], 1
    %s1749 = scalar_lea.sflag [#allocation8], 1
    %1750 = vsyncpa %s1749, 1

// kernel: tpu_custom_call.1
$region0: #{tpu_custom_call.1}
  #allocation0 [shape = 'u32[]', space=smem, size = 0x4, offset = 0x4, fixed_abs, tag = 'smem constant byte address 0x4 - core index']
  #allocation1 [shape = 'u32[144,128]{1,0:T(1,128)}', space=vmem, size = 0x12000, scoped, tag = 'internal scratch']
  #allocation2 [shape = 'bf16[8,512]{1,0:T(8,128)(2,1)}', space=vmem, size = 0x2000, scoped, tag = 'scratch operand']
  #allocation3 [shape = 'bf16[8,512]{1,0:T(8,128)(2,1)}', space=vmem, size = 0x2000, scoped, tag = 'scratch operand']
  #allocation4 [shape = 'bf16[8,512]{1,0:T(8,128)(2,1)}', space=vmem, size = 0x2000, scoped, tag = 'scratch operand']
  %s0 = inlined_call_operand.vmem [shape: f32[2,8,32], index: 0, kind: input, shape index: {}]
  %s1 = inlined_call_operand.vmem [shape: f32[2,8,32], index: 1, kind: input, shape index: {}]
  %s2 = inlined_call_operand.vmem [shape: f32[2,8,32], index: 2, kind: input, shape index: {}]
  %s3 = inlined_call_operand.vmem [shape: bf16[3,32,512], index: 3, kind: input, shape index: {}]
  %s4 = inlined_call_operand.vmem [shape: f32[3,512], index: 4, kind: input, shape index: {}]
  %s5 = inlined_call_operand.vmem [shape: bf16[512,32], index: 5, kind: input, shape index: {}]
  %s6 = inlined_call_operand.vmem [shape: f32[1,32], index: 6, kind: input, shape index: {}]
  %s7 = inlined_call_operand.hbm [shape: f32[2,8,32], index: 7, kind: output, shape index: {0}]
  %s8 = inlined_call_operand.hbm [shape: f32[2,8,32], index: 8, kind: output, shape index: {1}]
  %9 = xla_tuple %s7, %s8
  %s10 = sld [smem:[#allocation0]]
  $region73: #{tpu_custom_call.1} parent=0
    _
  %s12 = ssub.s32 1, %s10
  %s13 = scalar_select 0, %s12, %s10
  $region1: #{tpu_custom_call.1} parent=0
    #allocation5 [shape = 'u8[8192]{0}', space=vmem, size = 0x2000, scoped, tag = 'output window, operand 0']
    #allocation6 [shape = 's32[2]{0}', space=sflag, size = 0x8, scoped, tag = 'scoped memory for tpu_custom_call.1']
    #allocation7 [shape = 'u8[8192]{0}', space=vmem, size = 0x2000, scoped, tag = 'output window, operand 1']
    #allocation8 [shape = 's32[2]{0}', space=sflag, size = 0x8, scoped, tag = 'scoped memory for tpu_custom_call.1']
    %14 = vsyncpa [#allocation6], 0
    %s15 = scalar_lea.sflag [#allocation6], 1
    %16 = vsyncpa %s15, 0
    %17 = vsyncpa [#allocation8], 0
    %s18 = scalar_lea.sflag [#allocation8], 1
    %19 = vsyncpa %s18, 0
    loop: start=0, step=1, limit=4
    $region2: #{tpu_custom_call.1} parent=1 // loop_pre_header
      _
    $region3: #{tpu_custom_call.1} parent=1 // loop_header
      %s21 = sphi 0, %s25
      %p22 = scmp.ge.s32.totalorder %s21, 4
      %s28 = sphi 0, %s40
      %s29 = sphi 0, %s36
      %s30 = sphi 0, %s28
      %s31 = sphi 0, %s29
      %s32 = sphi 0, %s30
      %s33 = sphi 0, %s31
      %s45 = sphi 0, %s47
      %s48 = sphi 0, %s45
      %s49 = sphi 0, %s48
      %s65 = sphi 0, %s49
      %s71 = sphi 0, %s73
      %s74 = sphi 0, %s71
      %s75 = sphi 0, %s74
      %s91 = sphi 0, %s75
      %s97 = sphi 0, %s99
      %s100 = sphi 0, %s97
      %s101 = sphi 0, %s100
      %s117 = sphi 0, %s101
      %s121 = sphi 0, %s121
      %s123 = sphi 0, %s121
      %s124 = sphi 0, %s123
      %s138 = sphi 0, %s124
      %s142 = sphi 0, %s142
      %s144 = sphi 0, %s142
      %s145 = sphi 0, %s144
      %s159 = sphi 0, %s145
      %s163 = sphi 0, %s163
      %s165 = sphi 0, %s163
      %s166 = sphi 0, %s165
      %s180 = sphi 0, %s166
      %s184 = sphi 0, %s184
      %s186 = sphi 0, %s184
      %s187 = sphi 0, %s186
      %s201 = sphi 0, %s187
      %s209 = sphi 0, %s211
      %s212 = sphi 0, %s209
      %s213 = sphi 0, %s212
      %s229 = sphi 0, %s213
      %s237 = sphi 0, %s239
      %s240 = sphi 0, %s237
      %s241 = sphi 0, %s240
      %s257 = sphi 0, %s241
    $region4: #{tpu_custom_call.1} parent=1 // loop_header_branch
      %24 = sbr.rel (%p22) target = $region8
    $region5: #{tpu_custom_call.1} parent=1 // loop_body
      %s26 = ssub.s32 %s21, 1
      %s27 = ssub.s32 %s21, 2
      %s34 = sadd.s32 1, %s29
      %p35 = scmp.ge.s32.totalorder %s34, 1
      %s36 = scalar_select %p35, 0, %s34
      %s37 = sadd.s32 1, %s28
      %s38 = scalar_select %p35, %s37, %s28
      %p39 = scmp.ge.s32.totalorder %s38, 2
      %s40 = scalar_select %p39, 0, %s38
      %s41 = ssub.s32 %s28, %s40
      %s42 = ssub.s32 %s29, %s36
      %s43 = sor.u32 %s41, %s42
      %p44 = scmp.eq.s32.totalorder %s43, 0
      %s46 = sadd.s32 %s45, 1
      %s47 = scalar_select %p44, %s45, %s46
      %p50 = pneg %p44
      %p51 = scmp.eq.s32.totalorder %s21, 1
      %p52 = por %p50, %p51
      %p53 = scmp.ne.s32.totalorder %s45, %s48
      %p54 = scmp.eq.s32.totalorder %s21, 0
      %p55 = por %p53, %p54
      %p56 = scmp.ne.s32.totalorder %s45, %s48
      %p57 = scmp.eq.s32.totalorder %s26, 1
      %p58 = por %p56, %p57
      %p59 = scmp.ne.s32.totalorder %s48, %s49
      %p60 = scmp.eq.s32.totalorder %s26, 0
      %p61 = por %p59, %p60
      %p62 = scmp.ne.s32.totalorder %s48, %s49
      %p63 = scmp.eq.s32.totalorder %s27, 1
      %p64 = por %p62, %p63
      %p66 = scmp.ne.s32.totalorder %s49, %s65
      %p67 = scmp.eq.s32.totalorder %s27, 0
      %p68 = por %p66, %p67
      %s69 = ssub.s32 %s28, %s40
      %p70 = scmp.eq.s32.totalorder %s69, 0
      %s72 = sadd.s32 %s71, 1
      %s73 = scalar_select %p70, %s71, %s72
      %p76 = pneg %p70
      %p77 = scmp.eq.s32.totalorder %s21, 1
      %p78 = por %p76, %p77
      %p79 = scmp.ne.s32.totalorder %s71, %s74
      %p80 = scmp.eq.s32.totalorder %s21, 0
      %p81 = por %p79, %p80
      %p82 = scmp.ne.s32.totalorder %s71, %s74
      %p83 = scmp.eq.s32.totalorder %s26, 1
      %p84 = por %p82, %p83
      %p85 = scmp.ne.s32.totalorder %s74, %s75
      %p86 = scmp.eq.s32.totalorder %s26, 0
      %p87 = por %p85, %p86
      %p88 = scmp.ne.s32.totalorder %s74, %s75
      %p89 = scmp.eq.s32.totalorder %s27, 1
      %p90 = por %p88, %p89
      %p92 = scmp.ne.s32.totalorder %s75, %s91
      %p93 = scmp.eq.s32.totalorder %s27, 0
      %p94 = por %p92, %p93
      %s95 = ssub.s32 %s28, %s40
      %p96 = scmp.eq.s32.totalorder %s95, 0
      %s98 = sadd.s32 %s97, 1
      %s99 = scalar_select %p96, %s97, %s98
      %p102 = pneg %p96
      %p103 = scmp.eq.s32.totalorder %s21, 1
      %p104 = por %p102, %p103
      %p105 = scmp.ne.s32.totalorder %s97, %s100
      %p106 = scmp.eq.s32.totalorder %s21, 0
      %p107 = por %p105, %p106
      %p108 = scmp.ne.s32.totalorder %s97, %s100
      %p109 = scmp.eq.s32.totalorder %s26, 1
      %p110 = por %p108, %p109
      %p111 = scmp.ne.s32.totalorder %s100, %s101
      %p112 = scmp.eq.s32.totalorder %s26, 0
      %p113 = por %p111, %p112
      %p114 = scmp.ne.s32.totalorder %s100, %s101
      %p115 = scmp.eq.s32.totalorder %s27, 1
      %p116 = por %p114, %p115
      %p118 = scmp.ne.s32.totalorder %s101, %s117
      %p119 = scmp.eq.s32.totalorder %s27, 0
      %p120 = por %p118, %p119
      %s122 = sadd.s32 %s121, 1
      %p125 = scmp.eq.s32.totalorder %s21, 1
      %p126 = scmp.ne.s32.totalorder %s121, %s123
      %p127 = scmp.eq.s32.totalorder %s21, 0
      %p128 = por %p126, %p127
      %p129 = scmp.ne.s32.totalorder %s121, %s123
      %p130 = scmp.eq.s32.totalorder %s26, 1
      %p131 = por %p129, %p130
      %p132 = scmp.ne.s32.totalorder %s123, %s124
      %p133 = scmp.eq.s32.totalorder %s26, 0
      %p134 = por %p132, %p133
      %p135 = scmp.ne.s32.totalorder %s123, %s124
      %p136 = scmp.eq.s32.totalorder %s27, 1
      %p137 = por %p135, %p136
      %p139 = scmp.ne.s32.totalorder %s124, %s138
      %p140 = scmp.eq.s32.totalorder %s27, 0
      %p141 = por %p139, %p140
      %s143 = sadd.s32 %s142, 1
      %p146 = scmp.eq.s32.totalorder %s21, 1
      %p147 = scmp.ne.s32.totalorder %s142, %s144
      %p148 = scmp.eq.s32.totalorder %s21, 0
      %p149 = por %p147, %p148
      %p150 = scmp.ne.s32.totalorder %s142, %s144
      %p151 = scmp.eq.s32.totalorder %s26, 1
      %p152 = por %p150, %p151
      %p153 = scmp.ne.s32.totalorder %s144, %s145
      %p154 = scmp.eq.s32.totalorder %s26, 0
      %p155 = por %p153, %p154
      %p156 = scmp.ne.s32.totalorder %s144, %s145
      %p157 = scmp.eq.s32.totalorder %s27, 1
      %p158 = por %p156, %p157
      %p160 = scmp.ne.s32.totalorder %s145, %s159
      %p161 = scmp.eq.s32.totalorder %s27, 0
      %p162 = por %p160, %p161
      %s164 = sadd.s32 %s163, 1
      %p167 = scmp.eq.s32.totalorder %s21, 1
      %p168 = scmp.ne.s32.totalorder %s163, %s165
      %p169 = scmp.eq.s32.totalorder %s21, 0
      %p170 = por %p168, %p169
      %p171 = scmp.ne.s32.totalorder %s163, %s165
      %p172 = scmp.eq.s32.totalorder %s26, 1
      %p173 = por %p171, %p172
      %p174 = scmp.ne.s32.totalorder %s165, %s166
      %p175 = scmp.eq.s32.totalorder %s26, 0
      %p176 = por %p174, %p175
      %p177 = scmp.ne.s32.totalorder %s165, %s166
      %p178 = scmp.eq.s32.totalorder %s27, 1
      %p179 = por %p177, %p178
      %p181 = scmp.ne.s32.totalorder %s166, %s180
      %p182 = scmp.eq.s32.totalorder %s27, 0
      %p183 = por %p181, %p182
      %s185 = sadd.s32 %s184, 1
      %p188 = scmp.eq.s32.totalorder %s21, 1
      %p189 = scmp.ne.s32.totalorder %s184, %s186
      %p190 = scmp.eq.s32.totalorder %s21, 0
      %p191 = por %p189, %p190
      %p192 = scmp.ne.s32.totalorder %s184, %s186
      %p193 = scmp.eq.s32.totalorder %s26, 1
      %p194 = por %p192, %p193
      %p195 = scmp.ne.s32.totalorder %s186, %s187
      %p196 = scmp.eq.s32.totalorder %s26, 0
      %p197 = por %p195, %p196
      %p198 = scmp.ne.s32.totalorder %s186, %s187
      %p199 = scmp.eq.s32.totalorder %s27, 1
      %p200 = por %p198, %p199
      %p202 = scmp.ne.s32.totalorder %s187, %s201
      %p203 = scmp.eq.s32.totalorder %s27, 0
      %p204 = por %p202, %p203
      %s205 = ssub.s32 %s28, %s40
      %s206 = ssub.s32 %s29, %s36
      %s207 = sor.u32 %s205, %s206
      %p208 = scmp.eq.s32.totalorder %s207, 0
      %s210 = sadd.s32 %s209, 1
      %s211 = scalar_select %p208, %s209, %s210
      %p214 = pneg %p208
      %p215 = scmp.eq.s32.totalorder %s21, 1
      %p216 = por %p214, %p215
      %p217 = scmp.ne.s32.totalorder %s209, %s212
      %p218 = scmp.eq.s32.totalorder %s21, 0
      %p219 = por %p217, %p218
      %p220 = scmp.ne.s32.totalorder %s209, %s212
      %p221 = scmp.eq.s32.totalorder %s26, 1
      %p222 = por %p220, %p221
      %p223 = scmp.ne.s32.totalorder %s212, %s213
      %p224 = scmp.eq.s32.totalorder %s26, 0
      %p225 = por %p223, %p224
      %p226 = scmp.ne.s32.totalorder %s212, %s213
      %p227 = scmp.eq.s32.totalorder %s27, 1
      %p228 = por %p226, %p227
      %p230 = scmp.ne.s32.totalorder %s213, %s229
      %p231 = scmp.eq.s32.totalorder %s27, 0
      %p232 = por %p230, %p231
      %s233 = ssub.s32 %s28, %s40
      %s234 = ssub.s32 %s29, %s36
      %s235 = sor.u32 %s233, %s234
      %p236 = scmp.eq.s32.totalorder %s235, 0
      %s238 = sadd.s32 %s237, 1
      %s239 = scalar_select %p236, %s237, %s238
      %p242 = pneg %p236
      %p243 = scmp.eq.s32.totalorder %s21, 1
      %p244 = por %p242, %p243
      %p245 = scmp.ne.s32.totalorder %s237, %s240
      %p246 = scmp.eq.s32.totalorder %s21, 0
      %p247 = por %p245, %p246
      %p248 = scmp.ne.s32.totalorder %s237, %s240
      %p249 = scmp.eq.s32.totalorder %s26, 1
      %p250 = por %p248, %p249
      %p251 = scmp.ne.s32.totalorder %s240, %s241
      %p252 = scmp.eq.s32.totalorder %s26, 0
      %p253 = por %p251, %p252
      %p254 = scmp.ne.s32.totalorder %s240, %s241
      %p255 = scmp.eq.s32.totalorder %s27, 1
      %p256 = por %p254, %p255
      %p258 = scmp.ne.s32.totalorder %s241, %s257
      %p259 = scmp.eq.s32.totalorder %s27, 0
      %p260 = por %p258, %p259
      %p261 = scmp.le.s32.totalorder 1, %s21
      %p262 = scmp.lt.s32.totalorder %s21, 3
      %p263 = pnand %p261, %p262
      %p264 = pneg %p263
      // Predicated region
      $region9: #{tpu_custom_call.1} parent=5 // pred_check
        _
      $region10: #{tpu_custom_call.1} parent=5 // pred_check_branch
        %266 = sbr.rel (%p263) target = $region12
      $region11: #{tpu_custom_call.1} parent=5 // pred_region
        %s267 = ssub.s32 %s21, 1
        // Predicated region
        $region13: #{tpu_custom_call.1} parent=11 // pred_check
          %p268 = pneg %p134
        $region14: #{tpu_custom_call.1} parent=11 // pred_check_branch
          %270 = sbr.rel (%p268) target = $region16
        $region15: #{tpu_custom_call.1} parent=11 // pred_region
          _
        $region16: #{tpu_custom_call.1} parent=11 // pred_fallthru
          _
        // Predicated region
        $region17: #{tpu_custom_call.1} parent=11 // pred_check
          %p271 = pneg %p155
        $region18: #{tpu_custom_call.1} parent=11 // pred_check_branch
          %273 = sbr.rel (%p271) target = $region20
        $region19: #{tpu_custom_call.1} parent=11 // pred_region
          _
        $region20: #{tpu_custom_call.1} parent=11 // pred_fallthru
          _
        // Predicated region
        $region21: #{tpu_custom_call.1} parent=11 // pred_check
          %p274 = pneg %p176
        $region22: #{tpu_custom_call.1} parent=11 // pred_check_branch
          %276 = sbr.rel (%p274) target = $region24
        $region23: #{tpu_custom_call.1} parent=11 // pred_region
          _
        $region24: #{tpu_custom_call.1} parent=11 // pred_fallthru
          _
        // Predicated region
        $region25: #{tpu_custom_call.1} parent=11 // pred_check
          %p277 = pneg %p197
        $region26: #{tpu_custom_call.1} parent=11 // pred_check_branch
          %279 = sbr.rel (%p277) target = $region28
        $region27: #{tpu_custom_call.1} parent=11 // pred_region
          _
        $region28: #{tpu_custom_call.1} parent=11 // pred_fallthru
          _
      $region12: #{tpu_custom_call.1} parent=5 // pred_fallthru
        _
      %p280 = scmp.lt.s32.totalorder %s21, 2
      // Predicated region
      $region29: #{tpu_custom_call.1} parent=5 // pred_check
        %p281 = pneg %p280
      $region30: #{tpu_custom_call.1} parent=5 // pred_check_branch
        %283 = sbr.rel (%p281) target = $region32
      $region31: #{tpu_custom_call.1} parent=5 // pred_region
        // Predicated region
        $region33: #{tpu_custom_call.1} parent=31 // pred_check
          %p284 = pneg %p55
        $region34: #{tpu_custom_call.1} parent=31 // pred_check_branch
          %286 = sbr.rel (%p284) target = $region36
        $region35: #{tpu_custom_call.1} parent=31 // pred_region
          %p287 = scmp.lt.s32.totalorder %s28, 1
          %s288 = scalar_select %p287, %s28, 1
          %p289 = scmp.lt.s32.totalorder %s29, 0
          %s290 = scalar_select %p289, %s29, 0
          %s291 = sadd.s32 %s290, %s288
          %s292 = smul.addr %s291, 8
          %s293 = scalar_lea.vmem %s0, %s292
        $region36: #{tpu_custom_call.1} parent=31 // pred_fallthru
          _
        // Predicated region
        $region37: #{tpu_custom_call.1} parent=31 // pred_check
          %p294 = pneg %p81
        $region38: #{tpu_custom_call.1} parent=31 // pred_check_branch
          %296 = sbr.rel (%p294) target = $region40
        $region39: #{tpu_custom_call.1} parent=31 // pred_region
          %p297 = scmp.lt.s32.totalorder %s28, 1
          %s298 = scalar_select %p297, %s28, 1
          %s299 = smul.addr %s298, 8
          %s300 = scalar_lea.vmem %s1, %s299
        $region40: #{tpu_custom_call.1} parent=31 // pred_fallthru
          _
        // Predicated region
        $region41: #{tpu_custom_call.1} parent=31 // pred_check
          %p301 = pneg %p107
        $region42: #{tpu_custom_call.1} parent=31 // pred_check_branch
          %303 = sbr.rel (%p301) target = $region44
        $region43: #{tpu_custom_call.1} parent=31 // pred_region
          %p304 = scmp.lt.s32.totalorder %s28, 1
          %s305 = scalar_select %p304, %s28, 1
          %s306 = smul.addr %s305, 8
          %s307 = scalar_lea.vmem %s2, %s306
        $region44: #{tpu_custom_call.1} parent=31 // pred_fallthru
          _
      $region32: #{tpu_custom_call.1} parent=5 // pred_fallthru
        _
      %p308 = scmp.le.s32.totalorder 1, %s21
      %p309 = scmp.lt.s32.totalorder %s21, 3
      %p310 = pnand %p308, %p309
      %p311 = pneg %p310
      // Predicated region
      $region45: #{tpu_custom_call.1} parent=5 // pred_check
        _
      $region46: #{tpu_custom_call.1} parent=5 // pred_check_branch
        %313 = sbr.rel (%p310) target = $region48
      $region47: #{tpu_custom_call.1} parent=5 // pred_region
        %s314 = ssub.s32 %s21, 1
        %p315 = scmp.lt.s32.totalorder %s30, 1
        %s316 = scalar_select %p315, %s30, 1
        %p317 = scmp.lt.s32.totalorder %s31, 0
        %s318 = scalar_select %p317, %s31, 0
        %s319 = sadd.s32 %s318, %s316
        %s320 = smul.addr %s319, 8
        %s321 = scalar_lea.vmem %s0, %s320
        %p322 = pneg %p61
        %p323 = pneg %p58
        %p324 = scmp.lt.s32.totalorder %s30, 1
        %s325 = scalar_select %p324, %s30, 1
        %s326 = smul.addr %s325, 8
        %s327 = scalar_lea.vmem %s1, %s326
        %p328 = pneg %p87
        %p329 = pneg %p84
        %p330 = scmp.lt.s32.totalorder %s30, 1
        %s331 = scalar_select %p330, %s30, 1
        %s332 = smul.addr %s331, 8
        %s333 = scalar_lea.vmem %s2, %s332
        %p334 = pneg %p113
        %p335 = pneg %p110
        %p336 = pneg %p134
        %p337 = pneg %p131
        %p338 = pneg %p155
        %p339 = pneg %p152
        %p340 = pneg %p176
        %p341 = pneg %p173
        %p342 = pneg %p197
        %p343 = pneg %p194
        %p344 = pneg %p225
        %p345 = pneg %p222
        %s346 = sand.u32 %s212, 1
        %s347 = scalar_lea.sflag [#allocation6], %s346
        %s348 = sand.u32 %s212, 1
        %s349 = smul.addr %s348, 8
        %s350 = scalar_lea.vmem [#allocation5], %s349
        %p351 = pneg %p253
        %p352 = pneg %p250
        %s353 = sand.u32 %s240, 1
        %s354 = scalar_lea.sflag [#allocation8], %s353
        %s355 = sand.u32 %s240, 1
        %s356 = smul.addr %s355, 8
        %s357 = scalar_lea.vmem [#allocation7], %s356
        %p358 = scmp.lt.s32.totalorder %s30, 1
        %s359 = scalar_select %p358, %s30, 1
        %p360 = scmp.lt.s32.totalorder %s31, 0
        %s361 = scalar_select %p360, %s31, 0
        %s362 = sadd.s32 %s361, %s359
        %s363 = smul.addr %s362, 8
        %s364 = scalar_lea.vmem %s0, %s363
        %p365 = scmp.lt.s32.totalorder %s30, 1
        %s366 = scalar_select %p365, %s30, 1
        %s367 = smul.addr %s366, 8
        %s368 = scalar_lea.vmem %s1, %s367
        %p369 = scmp.lt.s32.totalorder %s30, 1
        %s370 = scalar_select %p369, %s30, 1
        %s371 = smul.addr %s370, 8
        %s372 = scalar_lea.vmem %s2, %s371
        %p374 = scmp.eq.s32.totalorder %s31, 0
        // Predicated region
        $region49: #{tpu_custom_call.1} parent=47 // pred_check
          %p375 = pneg %p374
        $region50: #{tpu_custom_call.1} parent=47 // pred_check_branch
          %377 = sbr.rel (%p375) target = $region52
        $region51: #{tpu_custom_call.1} parent=47 // pred_region
          %v378 = vld [vmem:[%s368] sm:$0xff]
          %v379 = vpack.c.bf16 %v378, %v378
          %v380 = vld [vmem:[%s372] sm:$0xff]
          %v381 = vpack.c.bf16 %v380, %v380
          %s382 = scalar_lea.vmem %s3, 64
          %v383 = vld [vmem:[%s382] sm:$0xff]
          %v384 = vld [vmem:[%s382 + $0x8] sm:$0xff]
          %v385 = vld [vmem:[%s382 + $0x10] sm:$0xff]
          %v386 = vld [vmem:[%s382 + $0x18] sm:$0xff]
          %v387 = vld [vmem:[%s382 + $0x20] sm:$0xff]
          %v388 = vld [vmem:[%s382 + $0x28] sm:$0xff]
          %v389 = vld [vmem:[%s382 + $0x30] sm:$0xff]
          %v390 = vld [vmem:[%s382 + $0x38] sm:$0xff]
          %s391 = scalar_lea.vmem %s4, 1
          %v392 = vld [vmem:[%s391] ss:$4 sm:$0xf]
          %v394 = vlaneseq
          %v395 = vshrl.u32 %v394, 7
          %v396 = vsub.s32 0, %v395
          %v397 = vrot.slane %v392, %v396
          %v398 = vlaneseq
          %v399 = vshrl.u32 %v398, 7
          %v400 = vsub.s32 1, %v399
          %v401 = vrot.slane %v392, %v400
          %v402 = vlaneseq
          %v403 = vshrl.u32 %v402, 7
          %v404 = vsub.s32 2, %v403
          %v405 = vrot.slane %v392, %v404
          %v406 = vlaneseq
          %v407 = vshrl.u32 %v406, 7
          %v408 = vsub.s32 3, %v407
          %v409 = vrot.slane %v392, %v408
          %v422 = vunpack.c.l.b16 %v383
          %v423 = vunpack.c.h.b16 %v383
          %v424 = vunpack.c.l.b16 %v384
          %v425 = vunpack.c.h.b16 %v384
          %v426 = vunpack.c.l.b16 %v385
          %v427 = vunpack.c.h.b16 %v385
          %v428 = vunpack.c.l.b16 %v386
          %v429 = vunpack.c.h.b16 %v386
          %v430 = vunpack.c.l.b16 %v387
          %v431 = vunpack.c.h.b16 %v387
          %v432 = vunpack.c.l.b16 %v388
          %v433 = vunpack.c.h.b16 %v388
          %v434 = vunpack.c.l.b16 %v389
          %v435 = vunpack.c.h.b16 %v389
          %v436 = vunpack.c.l.b16 %v390
          %v437 = vunpack.c.h.b16 %v390
          %v438 = vpack.c.b16 %v426, %v422
          %v439 = vpack.c.b16 %v427, %v423
          %v440 = vpack.c.b16 %v428, %v424
          %v441 = vpack.c.b16 %v429, %v425
          %v442 = vpack.c.b16 %v434, %v430
          %v443 = vpack.c.b16 %v435, %v431
          %v444 = vpack.c.b16 %v436, %v432
          %v445 = vpack.c.b16 %v437, %v433
          %vm454 = vcmask 261120
          %v456 = vsel %vm454, %v379, 0
          %458 = vmatprep.subr.bf16.mxu0 %v439
          %459 = vmatpush1.bf16.msra.mxu0 %v438
          %460 = vmatprep.subr.bf16.mxu0 %v443
          %461 = vmatpush1.bf16.msra.mxu0 %v442
          %462 = vmatprep.subr.bf16.mxu0 0
          %463 = vmatpush1.bf16.msra.mxu0 0
          %464 = vmatprep.subr.bf16.mxu0 0
          %465 = vmatpush1.bf16.msra.mxu0 0
          %466 = vmatprep.subr.bf16.mxu0 0
          %467 = vmatpush1.bf16.msra.mxu0 0
          %468 = vmatprep.subr.bf16.mxu0 0
          %469 = vmatpush1.bf16.msra.mxu0 0
          %470 = vmatprep.subr.bf16.mxu0 0
          %471 = vmatpush1.bf16.msra.mxu0 0
          %472 = vmatprep.subr.bf16.mxu0 0
          %473 = vmatpush1.bf16.msra.mxu0 0
          %474 = vmatprep.subr.bf16.mxu0 0
          %475 = vmatpush1.bf16.msra.mxu0 0
          %476 = vmatprep.subr.bf16.mxu0 0
          %477 = vmatpush1.bf16.msra.mxu0 0
          %478 = vmatprep.subr.bf16.mxu0 0
          %479 = vmatpush1.bf16.msra.mxu0 0
          %480 = vmatprep.subr.bf16.mxu0 0
          %481 = vmatpush1.bf16.msra.mxu0 0
          %482 = vmatprep.subr.bf16.mxu0 0
          %483 = vmatpush1.bf16.msra.mxu0 0
          %484 = vmatprep.subr.bf16.mxu0 0
          %485 = vmatpush1.bf16.msra.mxu0 0
          %486 = vmatprep.subr.bf16.mxu0 0
          %487 = vmatpush1.bf16.msra.mxu0 0
          %488 = vmatprep.subr.bf16.mxu0 0
          %489 = vmatpush1.bf16.msra.mxu0 0
          %490 = vmatprep.mubr.bf16.mxu0 0
          %491 = vmatmul.mubr.bf16.gmra.mrb[0].mxu0 %v456
          %v492 = vpop.f32.mrb[0].mxu0
          %v493 = vadd.f32 %v397, %v492
          %v494 = vpop.f32.mrb[0].mxu0
          %v495 = vadd.f32 %v401, %v494
          %v496 = vpop.f32.mrb[0].mxu0
          %v497 = vpop.f32.mrb[0].mxu0
          %498 = vdwg.mxu0
          %499 = vmatprep.subr.bf16.mxu0 %v441
          %500 = vmatpush1.bf16.msra.mxu0 %v440
          %501 = vmatprep.subr.bf16.mxu0 %v445
          %502 = vmatpush1.bf16.msra.mxu0 %v444
          %503 = vmatprep.subr.bf16.mxu0 0
          %504 = vmatpush1.bf16.msra.mxu0 0
          %505 = vmatprep.subr.bf16.mxu0 0
          %506 = vmatpush1.bf16.msra.mxu0 0
          %507 = vmatprep.subr.bf16.mxu0 0
          %508 = vmatpush1.bf16.msra.mxu0 0
          %509 = vmatprep.subr.bf16.mxu0 0
          %510 = vmatpush1.bf16.msra.mxu0 0
          %511 = vmatprep.subr.bf16.mxu0 0
          %512 = vmatpush1.bf16.msra.mxu0 0
          %513 = vmatprep.subr.bf16.mxu0 0
          %514 = vmatpush1.bf16.msra.mxu0 0
          %515 = vmatprep.subr.bf16.mxu0 0
          %516 = vmatpush1.bf16.msra.mxu0 0
          %517 = vmatprep.subr.bf16.mxu0 0
          %518 = vmatpush1.bf16.msra.mxu0 0
          %519 = vmatprep.subr.bf16.mxu0 0
          %520 = vmatpush1.bf16.msra.mxu0 0
          %521 = vmatprep.subr.bf16.mxu0 0
          %522 = vmatpush1.bf16.msra.mxu0 0
          %523 = vmatprep.subr.bf16.mxu0 0
          %524 = vmatpush1.bf16.msra.mxu0 0
          %525 = vmatprep.subr.bf16.mxu0 0
          %526 = vmatpush1.bf16.msra.mxu0 0
          %527 = vmatprep.subr.bf16.mxu0 0
          %528 = vmatpush1.bf16.msra.mxu0 0
          %529 = vmatprep.subr.bf16.mxu0 0
          %530 = vmatpush1.bf16.msra.mxu0 0
          %531 = vmatprep.mubr.bf16.mxu0 0
          %532 = vmatmul.mubr.bf16.gmra.mrb[0].mxu0 %v456
          %v533 = vpop.f32.mrb[0].mxu0
          %v534 = vadd.f32 %v405, %v533
          %v535 = vpop.f32.mrb[0].mxu0
          %v536 = vadd.f32 %v409, %v535
          %v537 = vpop.f32.mrb[0].mxu0
          %v538 = vpop.f32.mrb[0].mxu0
          %539 = vdwg.mxu0
          %s540 = scalar_lea.vmem %s3, 128
          %v541 = vld [vmem:[%s540] sm:$0xff]
          %v542 = vld [vmem:[%s540 + $0x8] sm:$0xff]
          %v543 = vld [vmem:[%s540 + $0x10] sm:$0xff]
          %v544 = vld [vmem:[%s540 + $0x18] sm:$0xff]
          %v545 = vld [vmem:[%s540 + $0x20] sm:$0xff]
          %v546 = vld [vmem:[%s540 + $0x28] sm:$0xff]
          %v547 = vld [vmem:[%s540 + $0x30] sm:$0xff]
          %v548 = vld [vmem:[%s540 + $0x38] sm:$0xff]
          %s549 = scalar_lea.vmem %s4, 2
          %v550 = vld [vmem:[%s549] ss:$4 sm:$0xf]
          %v552 = vlaneseq
          %v553 = vshrl.u32 %v552, 7
          %v554 = vsub.s32 0, %v553
          %v555 = vrot.slane %v550, %v554
          %v556 = vlaneseq
          %v557 = vshrl.u32 %v556, 7
          %v558 = vsub.s32 1, %v557
          %v559 = vrot.slane %v550, %v558
          %v560 = vlaneseq
          %v561 = vshrl.u32 %v560, 7
          %v562 = vsub.s32 2, %v561
          %v563 = vrot.slane %v550, %v562
          %v564 = vlaneseq
          %v565 = vshrl.u32 %v564, 7
          %v566 = vsub.s32 3, %v565
          %v567 = vrot.slane %v550, %v566
          %v580 = vunpack.c.l.b16 %v541
          %v581 = vunpack.c.h.b16 %v541
          %v582 = vunpack.c.l.b16 %v542
          %v583 = vunpack.c.h.b16 %v542
          %v584 = vunpack.c.l.b16 %v543
          %v585 = vunpack.c.h.b16 %v543
          %v586 = vunpack.c.l.b16 %v544
          %v587 = vunpack.c.h.b16 %v544
          %v588 = vunpack.c.l.b16 %v545
          %v589 = vunpack.c.h.b16 %v545
          %v590 = vunpack.c.l.b16 %v546
          %v591 = vunpack.c.h.b16 %v546
          %v592 = vunpack.c.l.b16 %v547
          %v593 = vunpack.c.h.b16 %v547
          %v594 = vunpack.c.l.b16 %v548
          %v595 = vunpack.c.h.b16 %v548
          %v596 = vpack.c.b16 %v584, %v580
          %v597 = vpack.c.b16 %v585, %v581
          %v598 = vpack.c.b16 %v586, %v582
          %v599 = vpack.c.b16 %v587, %v583
          %v600 = vpack.c.b16 %v592, %v588
          %v601 = vpack.c.b16 %v593, %v589
          %v602 = vpack.c.b16 %v594, %v590
          %v603 = vpack.c.b16 %v595, %v591
          %v613 = vsel %vm454, %v381, 0
          %615 = vmatprep.subr.bf16.mxu0 %v597
          %616 = vmatpush1.bf16.msra.mxu0 %v596
          %617 = vmatprep.subr.bf16.mxu0 %v601
          %618 = vmatpush1.bf16.msra.mxu0 %v600
          %619 = vmatprep.subr.bf16.mxu0 0
          %620 = vmatpush1.bf16.msra.mxu0 0
          %621 = vmatprep.subr.bf16.mxu0 0
          %622 = vmatpush1.bf16.msra.mxu0 0
          %623 = vmatprep.subr.bf16.mxu0 0
          %624 = vmatpush1.bf16.msra.mxu0 0
          %625 = vmatprep.subr.bf16.mxu0 0
          %626 = vmatpush1.bf16.msra.mxu0 0
          %627 = vmatprep.subr.bf16.mxu0 0
          %628 = vmatpush1.bf16.msra.mxu0 0
          %629 = vmatprep.subr.bf16.mxu0 0
          %630 = vmatpush1.bf16.msra.mxu0 0
          %631 = vmatprep.subr.bf16.mxu0 0
          %632 = vmatpush1.bf16.msra.mxu0 0
          %633 = vmatprep.subr.bf16.mxu0 0
          %634 = vmatpush1.bf16.msra.mxu0 0
          %635 = vmatprep.subr.bf16.mxu0 0
          %636 = vmatpush1.bf16.msra.mxu0 0
          %637 = vmatprep.subr.bf16.mxu0 0
          %638 = vmatpush1.bf16.msra.mxu0 0
          %639 = vmatprep.subr.bf16.mxu0 0
          %640 = vmatpush1.bf16.msra.mxu0 0
          %641 = vmatprep.subr.bf16.mxu0 0
          %642 = vmatpush1.bf16.msra.mxu0 0
          %643 = vmatprep.subr.bf16.mxu0 0
          %644 = vmatpush1.bf16.msra.mxu0 0
          %645 = vmatprep.subr.bf16.mxu0 0
          %646 = vmatpush1.bf16.msra.mxu0 0
          %647 = vmatprep.mubr.bf16.mxu0 0
          %648 = vmatmul.mubr.bf16.gmra.mrb[0].mxu0 %v613
          %v649 = vpop.f32.mrb[0].mxu0
          %v650 = vadd.f32 %v555, %v649
          %v651 = vpop.f32.mrb[0].mxu0
          %v652 = vadd.f32 %v559, %v651
          %v653 = vpop.f32.mrb[0].mxu0
          %v654 = vpop.f32.mrb[0].mxu0
          %655 = vdwg.mxu0
          %656 = vmatprep.subr.bf16.mxu0 %v599
          %657 = vmatpush1.bf16.msra.mxu0 %v598
          %658 = vmatprep.subr.bf16.mxu0 %v603
          %659 = vmatpush1.bf16.msra.mxu0 %v602
          %660 = vmatprep.subr.bf16.mxu0 0
          %661 = vmatpush1.bf16.msra.mxu0 0
          %662 = vmatprep.subr.bf16.mxu0 0
          %663 = vmatpush1.bf16.msra.mxu0 0
          %664 = vmatprep.subr.bf16.mxu0 0
          %665 = vmatpush1.bf16.msra.mxu0 0
          %666 = vmatprep.subr.bf16.mxu0 0
          %667 = vmatpush1.bf16.msra.mxu0 0
          %668 = vmatprep.subr.bf16.mxu0 0
          %669 = vmatpush1.bf16.msra.mxu0 0
          %670 = vmatprep.subr.bf16.mxu0 0
          %671 = vmatpush1.bf16.msra.mxu0 0
          %672 = vmatprep.subr.bf16.mxu0 0
          %673 = vmatpush1.bf16.msra.mxu0 0
          %674 = vmatprep.subr.bf16.mxu0 0
          %675 = vmatpush1.bf16.msra.mxu0 0
          %676 = vmatprep.subr.bf16.mxu0 0
          %677 = vmatpush1.bf16.msra.mxu0 0
          %678 = vmatprep.subr.bf16.mxu0 0
          %679 = vmatpush1.bf16.msra.mxu0 0
          %680 = vmatprep.subr.bf16.mxu0 0
          %681 = vmatpush1.bf16.msra.mxu0 0
          %682 = vmatprep.subr.bf16.mxu0 0
          %683 = vmatpush1.bf16.msra.mxu0 0
          %684 = vmatprep.subr.bf16.mxu0 0
          %685 = vmatpush1.bf16.msra.mxu0 0
          %686 = vmatprep.subr.bf16.mxu0 0
          %687 = vmatpush1.bf16.msra.mxu0 0
          %688 = vmatprep.mubr.bf16.mxu0 0
          %689 = vmatmul.mubr.bf16.gmra.mrb[0].mxu0 %v613
          %v690 = vpop.f32.mrb[0].mxu0
          %v691 = vadd.f32 %v563, %v690
          %v692 = vpop.f32.mrb[0].mxu0
          %v693 = vadd.f32 %v567, %v692
          %v694 = vpop.f32.mrb[0].mxu0
          %v695 = vpop.f32.mrb[0].mxu0
          %696 = vdwg.mxu0
          %v697 = vpack.c.bf16 %v493, %v493
          %v698 = vpack.c.bf16 %v495, %v495
          %v699 = vpack.c.bf16 %v534, %v534
          %v700 = vpack.c.bf16 %v536, %v536
          %v705 = vunpack.c.l.b16 %v697
          %v706 = vunpack.c.l.b16 %v698
          %v707 = vunpack.c.l.b16 %v699
          %v708 = vunpack.c.l.b16 %v700
          %v709 = vpack.c.b16 %v706, %v705
          %v710 = vpack.c.b16 %v708, %v707
          %713 = vst [vmem:[#allocation2] sm:$0xff] %v709
          %714 = vst [vmem:[#allocation2 + $0x8] sm:$0xff] %v710
          %v715 = vpack.c.bf16 %v650, %v650
          %v716 = vpack.c.bf16 %v652, %v652
          %v717 = vpack.c.bf16 %v691, %v691
          %v718 = vpack.c.bf16 %v693, %v693
          %v723 = vunpack.c.l.b16 %v715
          %v724 = vunpack.c.l.b16 %v716
          %v725 = vunpack.c.l.b16 %v717
          %v726 = vunpack.c.l.b16 %v718
          %v727 = vpack.c.b16 %v724, %v723
          %v728 = vpack.c.b16 %v726, %v725
          %731 = vst [vmem:[#allocation3] sm:$0xff] %v727
          %732 = vst [vmem:[#allocation3 + $0x8] sm:$0xff] %v728
        $region52: #{tpu_custom_call.1} parent=47 // pred_fallthru
          _
        %v733 = vld [vmem:[%s364] sm:$0xff]
        %v734 = vpack.c.bf16 %v733, %v733
        %v735 = vld [vmem:[%s3] sm:$0xff]
        %v736 = vld [vmem:[%s3 + $0x8] sm:$0xff]
        %v737 = vld [vmem:[%s3 + $0x10] sm:$0xff]
        %v738 = vld [vmem:[%s3 + $0x18] sm:$0xff]
        %v739 = vld [vmem:[%s3 + $0x20] sm:$0xff]
        %v740 = vld [vmem:[%s3 + $0x28] sm:$0xff]
        %v741 = vld [vmem:[%s3 + $0x30] sm:$0xff]
        %v742 = vld [vmem:[%s3 + $0x38] sm:$0xff]
        %v743 = vld [vmem:[%s4] ss:$4 sm:$0xf]
        %v745 = vlaneseq
        %v746 = vshrl.u32 %v745, 7
        %v747 = vsub.s32 0, %v746
        %v748 = vrot.slane %v743, %v747
        %v749 = vlaneseq
        %v750 = vshrl.u32 %v749, 7
        %v751 = vsub.s32 1, %v750
        %v752 = vrot.slane %v743, %v751
        %v753 = vlaneseq
        %v754 = vshrl.u32 %v753, 7
        %v755 = vsub.s32 2, %v754
        %v756 = vrot.slane %v743, %v755
        %v757 = vlaneseq
        %v758 = vshrl.u32 %v757, 7
        %v759 = vsub.s32 3, %v758
        %v760 = vrot.slane %v743, %v759
        %v773 = vunpack.c.l.b16 %v735
        %v774 = vunpack.c.h.b16 %v735
        %v775 = vunpack.c.l.b16 %v736
        %v776 = vunpack.c.h.b16 %v736
        %v777 = vunpack.c.l.b16 %v737
        %v778 = vunpack.c.h.b16 %v737
        %v779 = vunpack.c.l.b16 %v738
        %v780 = vunpack.c.h.b16 %v738
        %v781 = vunpack.c.l.b16 %v739
        %v782 = vunpack.c.h.b16 %v739
        %v783 = vunpack.c.l.b16 %v740
        %v784 = vunpack.c.h.b16 %v740
        %v785 = vunpack.c.l.b16 %v741
        %v786 = vunpack.c.h.b16 %v741
        %v787 = vunpack.c.l.b16 %v742
        %v788 = vunpack.c.h.b16 %v742
        %v789 = vpack.c.b16 %v777, %v773
        %v790 = vpack.c.b16 %v778, %v774
        %v791 = vpack.c.b16 %v779, %v775
        %v792 = vpack.c.b16 %v780, %v776
        %v793 = vpack.c.b16 %v785, %v781
        %v794 = vpack.c.b16 %v786, %v782
        %v795 = vpack.c.b16 %v787, %v783
        %v796 = vpack.c.b16 %v788, %v784
        %vm805 = vcmask 261120
        %v807 = vsel %vm805, %v734, 0
        %809 = vmatprep.subr.bf16.mxu0 %v790
        %810 = vmatpush1.bf16.msra.mxu0 %v789
        %811 = vmatprep.subr.bf16.mxu0 %v794
        %812 = vmatpush1.bf16.msra.mxu0 %v793
        %813 = vmatprep.subr.bf16.mxu0 0
        %814 = vmatpush1.bf16.msra.mxu0 0
        %815 = vmatprep.subr.bf16.mxu0 0
        %816 = vmatpush1.bf16.msra.mxu0 0
        %817 = vmatprep.subr.bf16.mxu0 0
        %818 = vmatpush1.bf16.msra.mxu0 0
        %819 = vmatprep.subr.bf16.mxu0 0
        %820 = vmatpush1.bf16.msra.mxu0 0
        %821 = vmatprep.subr.bf16.mxu0 0
        %822 = vmatpush1.bf16.msra.mxu0 0
        %823 = vmatprep.subr.bf16.mxu0 0
        %824 = vmatpush1.bf16.msra.mxu0 0
        %825 = vmatprep.subr.bf16.mxu0 0
        %826 = vmatpush1.bf16.msra.mxu0 0
        %827 = vmatprep.subr.bf16.mxu0 0
        %828 = vmatpush1.bf16.msra.mxu0 0
        %829 = vmatprep.subr.bf16.mxu0 0
        %830 = vmatpush1.bf16.msra.mxu0 0
        %831 = vmatprep.subr.bf16.mxu0 0
        %832 = vmatpush1.bf16.msra.mxu0 0
        %833 = vmatprep.subr.bf16.mxu0 0
        %834 = vmatpush1.bf16.msra.mxu0 0
        %835 = vmatprep.subr.bf16.mxu0 0
        %836 = vmatpush1.bf16.msra.mxu0 0
        %837 = vmatprep.subr.bf16.mxu0 0
        %838 = vmatpush1.bf16.msra.mxu0 0
        %839 = vmatprep.subr.bf16.mxu0 0
        %840 = vmatpush1.bf16.msra.mxu0 0
        %841 = vmatprep.mubr.bf16.mxu0 0
        %842 = vmatmul.mubr.bf16.gmra.mrb[0].mxu0 %v807
        %v843 = vpop.f32.mrb[0].mxu0
        %v844 = vadd.f32 %v748, %v843
        %v845 = vpop.f32.mrb[0].mxu0
        %v846 = vadd.f32 %v752, %v845
        %v847 = vpop.f32.mrb[0].mxu0
        %v848 = vpop.f32.mrb[0].mxu0
        %849 = vdwg.mxu0
        %850 = vmatprep.subr.bf16.mxu0 %v792
        %851 = vmatpush1.bf16.msra.mxu0 %v791
        %852 = vmatprep.subr.bf16.mxu0 %v796
        %853 = vmatpush1.bf16.msra.mxu0 %v795
        %854 = vmatprep.subr.bf16.mxu0 0
        %855 = vmatpush1.bf16.msra.mxu0 0
        %856 = vmatprep.subr.bf16.mxu0 0
        %857 = vmatpush1.bf16.msra.mxu0 0
        %858 = vmatprep.subr.bf16.mxu0 0
        %859 = vmatpush1.bf16.msra.mxu0 0
        %860 = vmatprep.subr.bf16.mxu0 0
        %861 = vmatpush1.bf16.msra.mxu0 0
        %862 = vmatprep.subr.bf16.mxu0 0
        %863 = vmatpush1.bf16.msra.mxu0 0
        %864 = vmatprep.subr.bf16.mxu0 0
        %865 = vmatpush1.bf16.msra.mxu0 0
        %866 = vmatprep.subr.bf16.mxu0 0
        %867 = vmatpush1.bf16.msra.mxu0 0
        %868 = vmatprep.subr.bf16.mxu0 0
        %869 = vmatpush1.bf16.msra.mxu0 0
        %870 = vmatprep.subr.bf16.mxu0 0
        %871 = vmatpush1.bf16.msra.mxu0 0
        %872 = vmatprep.subr.bf16.mxu0 0
        %873 = vmatpush1.bf16.msra.mxu0 0
        %874 = vmatprep.subr.bf16.mxu0 0
        %875 = vmatpush1.bf16.msra.mxu0 0
        %876 = vmatprep.subr.bf16.mxu0 0
        %877 = vmatpush1.bf16.msra.mxu0 0
        %878 = vmatprep.subr.bf16.mxu0 0
        %879 = vmatpush1.bf16.msra.mxu0 0
        %880 = vmatprep.subr.bf16.mxu0 0
        %881 = vmatpush1.bf16.msra.mxu0 0
        %882 = vmatprep.mubr.bf16.mxu0 0
        %883 = vmatmul.mubr.bf16.gmra.mrb[0].mxu0 %v807
        %v884 = vpop.f32.mrb[0].mxu0
        %v885 = vadd.f32 %v756, %v884
        %v886 = vpop.f32.mrb[0].mxu0
        %v887 = vadd.f32 %v760, %v886
        %v888 = vpop.f32.mrb[0].mxu0
        %v889 = vpop.f32.mrb[0].mxu0
        %890 = vdwg.mxu0
        %v891 = vpack.c.bf16 %v844, %v844
        %v892 = vpack.c.bf16 %v846, %v846
        %v893 = vpack.c.bf16 %v885, %v885
        %v894 = vpack.c.bf16 %v887, %v887
        %v895 = vld [vmem:[#allocation2] sm:$0xf]
        %v896 = vld [vmem:[#allocation3] sm:$0xf]
        %897 = vmatprep.subr.bf16.mxu0 0
        %898 = vmatpush1.bf16.xpose.msra.mxu0 %v895
        %899 = vmatprep.subr.bf16.mxu0 0
        %900 = vmatpush1.bf16.xpose.msra.mxu0 0
        %901 = vmatprep.subr.bf16.mxu0 0
        %902 = vmatpush1.bf16.xpose.msra.mxu0 0
        %903 = vmatprep.subr.bf16.mxu0 0
        %904 = vmatpush1.bf16.xpose.msra.mxu0 0
        %905 = vmatprep.subr.bf16.mxu0 0
        %906 = vmatpush1.bf16.xpose.msra.mxu0 0
        %907 = vmatprep.subr.bf16.mxu0 0
        %908 = vmatpush1.bf16.xpose.msra.mxu0 0
        %909 = vmatprep.subr.bf16.mxu0 0
        %910 = vmatpush1.bf16.xpose.msra.mxu0 0
        %911 = vmatprep.subr.bf16.mxu0 0
        %912 = vmatpush1.bf16.xpose.msra.mxu0 0
        %913 = vmatprep.subr.bf16.mxu0 0
        %914 = vmatpush1.bf16.xpose.msra.mxu0 0
        %915 = vmatprep.subr.bf16.mxu0 0
        %916 = vmatpush1.bf16.xpose.msra.mxu0 0
        %917 = vmatprep.subr.bf16.mxu0 0
        %918 = vmatpush1.bf16.xpose.msra.mxu0 0
        %919 = vmatprep.subr.bf16.mxu0 0
        %920 = vmatpush1.bf16.xpose.msra.mxu0 0
        %921 = vmatprep.subr.bf16.mxu0 0
        %922 = vmatpush1.bf16.xpose.msra.mxu0 0
        %923 = vmatprep.subr.bf16.mxu0 0
        %924 = vmatpush1.bf16.xpose.msra.mxu0 0
        %925 = vmatprep.subr.bf16.mxu0 0
        %926 = vmatpush1.bf16.xpose.msra.mxu0 0
        %927 = vmatprep.subr.bf16.mxu0 0
        %928 = vmatpush1.bf16.xpose.msra.mxu0 0
        %929 = vmatprep.mubr.bf16.mxu0 0
        %930 = vmatmul.mubr.bf16.gmra.mrb[0].mxu0 %v891
        %v931 = vpop.f32.mrb[0].mxu0
        %v932 = vadd.f32 0.0, %v931
        %v933 = vpop.f32.mrb[0].mxu0
        %v934 = vpop.f32.mrb[0].mxu0
        %v935 = vpop.f32.mrb[0].mxu0
        %936 = vdwg.mxu0
        %vm937 = vcmask 64512
        %v938 = vsel %vm937, %v932, -inf
        %939 = vmax.xlane.f32.xlu0 %v938
        %v940 = vpop.xlane.xlu0 %939
        %v941 = vsub.f32 %v932, %v940
        %v942 = vmul.f32 %v941, 1.442695
        %v943 = vpow.pop %v942
        %v944 = vsel %vm937, %v943, 0.0
        %945 = vadd.xlane.f32.xlu0 %v944
        %v946 = vpop.xlane.xlu0 %945
        %v947 = vrcp.pop %v946
        %v948 = vmul.f32 %v943, %v947
        %949 = vst.msk [vmem:[%s357] sm:$0xff] %vm937, %v948
        %v950 = vpack.c.bf16 %v948, %v948
        %v952 = vsel %vm937, %v950, 0
        %vm954 = vcmask 1043456
        %v956 = vsel %vm954, %v896, 0
        %958 = vmatprep.subr.bf16.mxu0 0
        %959 = vmatpush1.bf16.msra.mxu0 %v956
        %960 = vmatprep.subr.bf16.mxu0 0
        %961 = vmatpush1.bf16.msra.mxu0 0
        %962 = vmatprep.subr.bf16.mxu0 0
        %963 = vmatpush1.bf16.msra.mxu0 0
        %964 = vmatprep.subr.bf16.mxu0 0
        %965 = vmatpush1.bf16.msra.mxu0 0
        %966 = vmatprep.subr.bf16.mxu0 0
        %967 = vmatpush1.bf16.msra.mxu0 0
        %968 = vmatprep.subr.bf16.mxu0 0
        %969 = vmatpush1.bf16.msra.mxu0 0
        %970 = vmatprep.subr.bf16.mxu0 0
        %971 = vmatpush1.bf16.msra.mxu0 0
        %972 = vmatprep.subr.bf16.mxu0 0
        %973 = vmatpush1.bf16.msra.mxu0 0
        %974 = vmatprep.subr.bf16.mxu0 0
        %975 = vmatpush1.bf16.msra.mxu0 0
        %976 = vmatprep.subr.bf16.mxu0 0
        %977 = vmatpush1.bf16.msra.mxu0 0
        %978 = vmatprep.subr.bf16.mxu0 0
        %979 = vmatpush1.bf16.msra.mxu0 0
        %980 = vmatprep.subr.bf16.mxu0 0
        %981 = vmatpush1.bf16.msra.mxu0 0
        %982 = vmatprep.subr.bf16.mxu0 0
        %983 = vmatpush1.bf16.msra.mxu0 0
        %984 = vmatprep.subr.bf16.mxu0 0
        %985 = vmatpush1.bf16.msra.mxu0 0
        %986 = vmatprep.subr.bf16.mxu0 0
        %987 = vmatpush1.bf16.msra.mxu0 0
        %988 = vmatprep.subr.bf16.mxu0 0
        %989 = vmatpush1.bf16.msra.mxu0 0
        %990 = vmatprep.mubr.bf16.mxu0 0
        %991 = vmatmul.mubr.bf16.gmra.mrb[0].mxu0 %v952
        %v992 = vpop.f32.mrb[0].mxu0
        %v993 = vadd.f32 0.0, %v992
        %v994 = vpop.f32.mrb[0].mxu0
        %v995 = vpop.f32.mrb[0].mxu0
        %v996 = vpop.f32.mrb[0].mxu0
        %997 = vdwg.mxu0
        %v998 = vpack.c.bf16 %v993, %v993
        %999 = vst [vmem:[#allocation4] sm:$0xf] %v998
        %v1000 = vld [vmem:[#allocation2 + $0x4] sm:$0xf]
        %v1001 = vld [vmem:[#allocation3 + $0x4] sm:$0xf]
        %1002 = vmatprep.subr.bf16.mxu0 0
        %1003 = vmatpush1.bf16.xpose.msra.mxu0 %v1000
        %1004 = vmatprep.subr.bf16.mxu0 0
        %1005 = vmatpush1.bf16.xpose.msra.mxu0 0
        %1006 = vmatprep.subr.bf16.mxu0 0
        %1007 = vmatpush1.bf16.xpose.msra.mxu0 0
        %1008 = vmatprep.subr.bf16.mxu0 0
        %1009 = vmatpush1.bf16.xpose.msra.mxu0 0
        %1010 = vmatprep.subr.bf16.mxu0 0
        %1011 = vmatpush1.bf16.xpose.msra.mxu0 0
        %1012 = vmatprep.subr.bf16.mxu0 0
        %1013 = vmatpush1.bf16.xpose.msra.mxu0 0
        %1014 = vmatprep.subr.bf16.mxu0 0
        %1015 = vmatpush1.bf16.xpose.msra.mxu0 0
        %1016 = vmatprep.subr.bf16.mxu0 0
        %1017 = vmatpush1.bf16.xpose.msra.mxu0 0
        %1018 = vmatprep.subr.bf16.mxu0 0
        %1019 = vmatpush1.bf16.xpose.msra.mxu0 0
        %1020 = vmatprep.subr.bf16.mxu0 0
        %1021 = vmatpush1.bf16.xpose.msra.mxu0 0
        %1022 = vmatprep.subr.bf16.mxu0 0
        %1023 = vmatpush1.bf16.xpose.msra.mxu0 0
        %1024 = vmatprep.subr.bf16.mxu0 0
        %1025 = vmatpush1.bf16.xpose.msra.mxu0 0
        %1026 = vmatprep.subr.bf16.mxu0 0
        %1027 = vmatpush1.bf16.xpose.msra.mxu0 0
        %1028 = vmatprep.subr.bf16.mxu0 0
        %1029 = vmatpush1.bf16.xpose.msra.mxu0 0
        %1030 = vmatprep.subr.bf16.mxu0 0
        %1031 = vmatpush1.bf16.xpose.msra.mxu0 0
        %1032 = vmatprep.subr.bf16.mxu0 0
        %1033 = vmatpush1.bf16.xpose.msra.mxu0 0
        %1034 = vmatprep.mubr.bf16.mxu0 0
        %1035 = vmatmul.mubr.bf16.gmra.mrb[0].mxu0 %v892
        %v1036 = vpop.f32.mrb[0].mxu0
        %v1037 = vadd.f32 0.0, %v1036
        %v1038 = vpop.f32.mrb[0].mxu0
        %v1039 = vpop.f32.mrb[0].mxu0
        %v1040 = vpop.f32.mrb[0].mxu0
        %1041 = vdwg.mxu0
        %v1042 = vsel %vm937, %v1037, -inf
        %1043 = vmax.xlane.f32.xlu0 %v1042
        %v1044 = vpop.xlane.xlu0 %1043
        %v1045 = vsub.f32 %v1037, %v1044
        %v1046 = vmul.f32 %v1045, 1.442695
        %v1047 = vpow.pop %v1046
        %v1048 = vsel %vm937, %v1047, 0.0
        %1049 = vadd.xlane.f32.xlu0 %v1048
        %v1050 = vpop.xlane.xlu0 %1049
        %v1051 = vrcp.pop %v1050
        %v1052 = vmul.f32 %v1047, %v1051
        %1054 = vrot.lane.b32.xlu0 %v1052, 8
        %v1055 = vpop.permute.xlu0 %1054
        %vm1057 = vcmask 130112
        %1058 = vst.msk [vmem:[%s357] sm:$0xff] %vm1057, %v1055
        %v1059 = vpack.c.bf16 %v1052, %v1052
        %v1061 = vsel %vm937, %v1059, 0
        %v1064 = vsel %vm954, %v1001, 0
        %1066 = vmatprep.subr.bf16.mxu0 0
        %1067 = vmatpush1.bf16.msra.mxu0 %v1064
        %1068 = vmatprep.subr.bf16.mxu0 0
        %1069 = vmatpush1.bf16.msra.mxu0 0
        %1070 = vmatprep.subr.bf16.mxu0 0
        %1071 = vmatpush1.bf16.msra.mxu0 0
        %1072 = vmatprep.subr.bf16.mxu0 0
        %1073 = vmatpush1.bf16.msra.mxu0 0
        %1074 = vmatprep.subr.bf16.mxu0 0
        %1075 = vmatpush1.bf16.msra.mxu0 0
        %1076 = vmatprep.subr.bf16.mxu0 0
        %1077 = vmatpush1.bf16.msra.mxu0 0
        %1078 = vmatprep.subr.bf16.mxu0 0
        %1079 = vmatpush1.bf16.msra.mxu0 0
        %1080 = vmatprep.subr.bf16.mxu0 0
        %1081 = vmatpush1.bf16.msra.mxu0 0
        %1082 = vmatprep.subr.bf16.mxu0 0
        %1083 = vmatpush1.bf16.msra.mxu0 0
        %1084 = vmatprep.subr.bf16.mxu0 0
        %1085 = vmatpush1.bf16.msra.mxu0 0
        %1086 = vmatprep.subr.bf16.mxu0 0
        %1087 = vmatpush1.bf16.msra.mxu0 0
        %1088 = vmatprep.subr.bf16.mxu0 0
        %1089 = vmatpush1.bf16.msra.mxu0 0
        %1090 = vmatprep.subr.bf16.mxu0 0
        %1091 = vmatpush1.bf16.msra.mxu0 0
        %1092 = vmatprep.subr.bf16.mxu0 0
        %1093 = vmatpush1.bf16.msra.mxu0 0
        %1094 = vmatprep.subr.bf16.mxu0 0
        %1095 = vmatpush1.bf16.msra.mxu0 0
        %1096 = vmatprep.subr.bf16.mxu0 0
        %1097 = vmatpush1.bf16.msra.mxu0 0
        %1098 = vmatprep.mubr.bf16.mxu0 0
        %1099 = vmatmul.mubr.bf16.gmra.mrb[0].mxu0 %v1061
        %v1100 = vpop.f32.mrb[0].mxu0
        %v1101 = vadd.f32 0.0, %v1100
        %v1102 = vpop.f32.mrb[0].mxu0
        %v1103 = vpop.f32.mrb[0].mxu0
        %v1104 = vpop.f32.mrb[0].mxu0
        %1105 = vdwg.mxu0
        %v1106 = vpack.c.bf16 %v1101, %v1101
        %1107 = vst [vmem:[#allocation4 + $0x4] sm:$0xf] %v1106
        %v1108 = vld [vmem:[#allocation2 + $0x8] sm:$0xf]
        %v1109 = vld [vmem:[#allocation3 + $0x8] sm:$0xf]
        %1110 = vmatprep.subr.bf16.mxu0 0
        %1111 = vmatpush1.bf16.xpose.msra.mxu0 %v1108
        %1112 = vmatprep.subr.bf16.mxu0 0
        %1113 = vmatpush1.bf16.xpose.msra.mxu0 0
        %1114 = vmatprep.subr.bf16.mxu0 0
        %1115 = vmatpush1.bf16.xpose.msra.mxu0 0
        %1116 = vmatprep.subr.bf16.mxu0 0
        %1117 = vmatpush1.bf16.xpose.msra.mxu0 0
        %1118 = vmatprep.subr.bf16.mxu0 0
        %1119 = vmatpush1.bf16.xpose.msra.mxu0 0
        %1120 = vmatprep.subr.bf16.mxu0 0
        %1121 = vmatpush1.bf16.xpose.msra.mxu0 0
        %1122 = vmatprep.subr.bf16.mxu0 0
        %1123 = vmatpush1.bf16.xpose.msra.mxu0 0
        %1124 = vmatprep.subr.bf16.mxu0 0
        %1125 = vmatpush1.bf16.xpose.msra.mxu0 0
        %1126 = vmatprep.subr.bf16.mxu0 0
        %1127 = vmatpush1.bf16.xpose.msra.mxu0 0
        %1128 = vmatprep.subr.bf16.mxu0 0
        %1129 = vmatpush1.bf16.xpose.msra.mxu0 0
        %1130 = vmatprep.subr.bf16.mxu0 0
        %1131 = vmatpush1.bf16.xpose.msra.mxu0 0
        %1132 = vmatprep.subr.bf16.mxu0 0
        %1133 = vmatpush1.bf16.xpose.msra.mxu0 0
        %1134 = vmatprep.subr.bf16.mxu0 0
        %1135 = vmatpush1.bf16.xpose.msra.mxu0 0
        %1136 = vmatprep.subr.bf16.mxu0 0
        %1137 = vmatpush1.bf16.xpose.msra.mxu0 0
        %1138 = vmatprep.subr.bf16.mxu0 0
        %1139 = vmatpush1.bf16.xpose.msra.mxu0 0
        %1140 = vmatprep.subr.bf16.mxu0 0
        %1141 = vmatpush1.bf16.xpose.msra.mxu0 0
        %1142 = vmatprep.mubr.bf16.mxu0 0
        %1143 = vmatmul.mubr.bf16.gmra.mrb[0].mxu0 %v893
        %v1144 = vpop.f32.mrb[0].mxu0
        %v1145 = vadd.f32 0.0, %v1144
        %v1146 = vpop.f32.mrb[0].mxu0
        %v1147 = vpop.f32.mrb[0].mxu0
        %v1148 = vpop.f32.mrb[0].mxu0
        %1149 = vdwg.mxu0
        %v1150 = vsel %vm937, %v1145, -inf
        %1151 = vmax.xlane.f32.xlu0 %v1150
        %v1152 = vpop.xlane.xlu0 %1151
        %v1153 = vsub.f32 %v1145, %v1152
        %v1154 = vmul.f32 %v1153, 1.442695
        %v1155 = vpow.pop %v1154
        %v1156 = vsel %vm937, %v1155, 0.0
        %1157 = vadd.xlane.f32.xlu0 %v1156
        %v1158 = vpop.xlane.xlu0 %1157
        %v1159 = vrcp.pop %v1158
        %v1160 = vmul.f32 %v1155, %v1159
        %1162 = vrot.lane.b32.xlu0 %v1160, 16
        %v1163 = vpop.permute.xlu0 %1162
        %vm1165 = vcmask 195712
        %1166 = vst.msk [vmem:[%s357] sm:$0xff] %vm1165, %v1163
        %v1167 = vpack.c.bf16 %v1160, %v1160
        %v1169 = vsel %vm937, %v1167, 0
        %v1172 = vsel %vm954, %v1109, 0
        %1174 = vmatprep.subr.bf16.mxu0 0
        %1175 = vmatpush1.bf16.msra.mxu0 %v1172
        %1176 = vmatprep.subr.bf16.mxu0 0
        %1177 = vmatpush1.bf16.msra.mxu0 0
        %1178 = vmatprep.subr.bf16.mxu0 0
        %1179 = vmatpush1.bf16.msra.mxu0 0
        %1180 = vmatprep.subr.bf16.mxu0 0
        %1181 = vmatpush1.bf16.msra.mxu0 0
        %1182 = vmatprep.subr.bf16.mxu0 0
        %1183 = vmatpush1.bf16.msra.mxu0 0
        %1184 = vmatprep.subr.bf16.mxu0 0
        %1185 = vmatpush1.bf16.msra.mxu0 0
        %1186 = vmatprep.subr.bf16.mxu0 0
        %1187 = vmatpush1.bf16.msra.mxu0 0
        %1188 = vmatprep.subr.bf16.mxu0 0
        %1189 = vmatpush1.bf16.msra.mxu0 0
        %1190 = vmatprep.subr.bf16.mxu0 0
        %1191 = vmatpush1.bf16.msra.mxu0 0
        %1192 = vmatprep.subr.bf16.mxu0 0
        %1193 = vmatpush1.bf16.msra.mxu0 0
        %1194 = vmatprep.subr.bf16.mxu0 0
        %1195 = vmatpush1.bf16.msra.mxu0 0
        %1196 = vmatprep.subr.bf16.mxu0 0
        %1197 = vmatpush1.bf16.msra.mxu0 0
        %1198 = vmatprep.subr.bf16.mxu0 0
        %1199 = vmatpush1.bf16.msra.mxu0 0
        %1200 = vmatprep.subr.bf16.mxu0 0
        %1201 = vmatpush1.bf16.msra.mxu0 0
        %1202 = vmatprep.subr.bf16.mxu0 0
        %1203 = vmatpush1.bf16.msra.mxu0 0
        %1204 = vmatprep.subr.bf16.mxu0 0
        %1205 = vmatpush1.bf16.msra.mxu0 0
        %1206 = vmatprep.mubr.bf16.mxu0 0
        %1207 = vmatmul.mubr.bf16.gmra.mrb[0].mxu0 %v1169
        %v1208 = vpop.f32.mrb[0].mxu0
        %v1209 = vadd.f32 0.0, %v1208
        %v1210 = vpop.f32.mrb[0].mxu0
        %v1211 = vpop.f32.mrb[0].mxu0
        %v1212 = vpop.f32.mrb[0].mxu0
        %1213 = vdwg.mxu0
        %v1214 = vpack.c.bf16 %v1209, %v1209
        %1215 = vst [vmem:[#allocation4 + $0x8] sm:$0xf] %v1214
        %v1216 = vld [vmem:[#allocation2 + $0xc] sm:$0xf]
        %v1217 = vld [vmem:[#allocation3 + $0xc] sm:$0xf]
        %1218 = vmatprep.subr.bf16.mxu0 0
        %1219 = vmatpush1.bf16.xpose.msra.mxu0 %v1216
        %1220 = vmatprep.subr.bf16.mxu0 0
        %1221 = vmatpush1.bf16.xpose.msra.mxu0 0
        %1222 = vmatprep.subr.bf16.mxu0 0
        %1223 = vmatpush1.bf16.xpose.msra.mxu0 0
        %1224 = vmatprep.subr.bf16.mxu0 0
        %1225 = vmatpush1.bf16.xpose.msra.mxu0 0
        %1226 = vmatprep.subr.bf16.mxu0 0
        %1227 = vmatpush1.bf16.xpose.msra.mxu0 0
        %1228 = vmatprep.subr.bf16.mxu0 0
        %1229 = vmatpush1.bf16.xpose.msra.mxu0 0
        %1230 = vmatprep.subr.bf16.mxu0 0
        %1231 = vmatpush1.bf16.xpose.msra.mxu0 0
        %1232 = vmatprep.subr.bf16.mxu0 0
        %1233 = vmatpush1.bf16.xpose.msra.mxu0 0
        %1234 = vmatprep.subr.bf16.mxu0 0
        %1235 = vmatpush1.bf16.xpose.msra.mxu0 0
        %1236 = vmatprep.subr.bf16.mxu0 0
        %1237 = vmatpush1.bf16.xpose.msra.mxu0 0
        %1238 = vmatprep.subr.bf16.mxu0 0
        %1239 = vmatpush1.bf16.xpose.msra.mxu0 0
        %1240 = vmatprep.subr.bf16.mxu0 0
        %1241 = vmatpush1.bf16.xpose.msra.mxu0 0
        %1242 = vmatprep.subr.bf16.mxu0 0
        %1243 = vmatpush1.bf16.xpose.msra.mxu0 0
        %1244 = vmatprep.subr.bf16.mxu0 0
        %1245 = vmatpush1.bf16.xpose.msra.mxu0 0
        %1246 = vmatprep.subr.bf16.mxu0 0
        %1247 = vmatpush1.bf16.xpose.msra.mxu0 0
        %1248 = vmatprep.subr.bf16.mxu0 0
        %1249 = vmatpush1.bf16.xpose.msra.mxu0 0
        %1250 = vmatprep.mubr.bf16.mxu0 0
        %1251 = vmatmul.mubr.bf16.gmra.mrb[0].mxu0 %v894
        %v1252 = vpop.f32.mrb[0].mxu0
        %v1253 = vadd.f32 0.0, %v1252
        %v1254 = vpop.f32.mrb[0].mxu0
        %v1255 = vpop.f32.mrb[0].mxu0
        %v1256 = vpop.f32.mrb[0].mxu0
        %1257 = vdwg.mxu0
        %v1258 = vsel %vm937, %v1253, -inf
        %1259 = vmax.xlane.f32.xlu0 %v1258
        %v1260 = vpop.xlane.xlu0 %1259
        %v1261 = vsub.f32 %v1253, %v1260
        %v1262 = vmul.f32 %v1261, 1.442695
        %v1263 = vpow.pop %v1262
        %v1264 = vsel %vm937, %v1263, 0.0
        %1265 = vadd.xlane.f32.xlu0 %v1264
        %v1266 = vpop.xlane.xlu0 %1265
        %v1267 = vrcp.pop %v1266
        %v1268 = vmul.f32 %v1263, %v1267
        %1270 = vrot.lane.b32.xlu0 %v1268, 24
        %v1271 = vpop.permute.xlu0 %1270
        %vm1273 = vcmask 261312
        %1274 = vst.msk [vmem:[%s357] sm:$0xff] %vm1273, %v1271
        %v1275 = vpack.c.bf16 %v1268, %v1268
        %v1277 = vsel %vm937, %v1275, 0
        %v1280 = vsel %vm954, %v1217, 0
        %1282 = vmatprep.subr.bf16.mxu0 0
        %1283 = vmatpush1.bf16.msra.mxu0 %v1280
        %1284 = vmatprep.subr.bf16.mxu0 0
        %1285 = vmatpush1.bf16.msra.mxu0 0
        %1286 = vmatprep.subr.bf16.mxu0 0
        %1287 = vmatpush1.bf16.msra.mxu0 0
        %1288 = vmatprep.subr.bf16.mxu0 0
        %1289 = vmatpush1.bf16.msra.mxu0 0
        %1290 = vmatprep.subr.bf16.mxu0 0
        %1291 = vmatpush1.bf16.msra.mxu0 0
        %1292 = vmatprep.subr.bf16.mxu0 0
        %1293 = vmatpush1.bf16.msra.mxu0 0
        %1294 = vmatprep.subr.bf16.mxu0 0
        %1295 = vmatpush1.bf16.msra.mxu0 0
        %1296 = vmatprep.subr.bf16.mxu0 0
        %1297 = vmatpush1.bf16.msra.mxu0 0
        %1298 = vmatprep.subr.bf16.mxu0 0
        %1299 = vmatpush1.bf16.msra.mxu0 0
        %1300 = vmatprep.subr.bf16.mxu0 0
        %1301 = vmatpush1.bf16.msra.mxu0 0
        %1302 = vmatprep.subr.bf16.mxu0 0
        %1303 = vmatpush1.bf16.msra.mxu0 0
        %1304 = vmatprep.subr.bf16.mxu0 0
        %1305 = vmatpush1.bf16.msra.mxu0 0
        %1306 = vmatprep.subr.bf16.mxu0 0
        %1307 = vmatpush1.bf16.msra.mxu0 0
        %1308 = vmatprep.subr.bf16.mxu0 0
        %1309 = vmatpush1.bf16.msra.mxu0 0
        %1310 = vmatprep.subr.bf16.mxu0 0
        %1311 = vmatpush1.bf16.msra.mxu0 0
        %1312 = vmatprep.subr.bf16.mxu0 0
        %1313 = vmatpush1.bf16.msra.mxu0 0
        %1314 = vmatprep.mubr.bf16.mxu0 0
        %1315 = vmatmul.mubr.bf16.gmra.mrb[0].mxu0 %v1277
        %v1316 = vpop.f32.mrb[0].mxu0
        %v1317 = vadd.f32 0.0, %v1316
        %v1318 = vpop.f32.mrb[0].mxu0
        %v1319 = vpop.f32.mrb[0].mxu0
        %v1320 = vpop.f32.mrb[0].mxu0
        %1321 = vdwg.mxu0
        %v1322 = vpack.c.bf16 %v1317, %v1317
        %1323 = vst [vmem:[#allocation4 + $0xc] sm:$0xf] %v1322
        %v1324 = vld [vmem:[#allocation4] sm:$0xff]
        %v1325 = vld [vmem:[#allocation4 + $0x8] sm:$0xff]
        %v1326 = vld [vmem:[%s5] sm:$0xf]
        %v1327 = vld [vmem:[%s5 + $0x4] sm:$0xf]
        %v1328 = vld [vmem:[%s5 + $0x8] sm:$0xf]
        %v1329 = vld [vmem:[%s5 + $0xc] sm:$0xf]
        %v1330 = vld [vmem:[%s5 + $0x10] sm:$0xf]
        %v1331 = vld [vmem:[%s5 + $0x14] sm:$0xf]
        %v1332 = vld [vmem:[%s5 + $0x18] sm:$0xf]
        %v1333 = vld [vmem:[%s5 + $0x1c] sm:$0xf]
        %v1334 = vld [vmem:[%s5 + $0x20] sm:$0xf]
        %v1335 = vld [vmem:[%s5 + $0x24] sm:$0xf]
        %v1336 = vld [vmem:[%s5 + $0x28] sm:$0xf]
        %v1337 = vld [vmem:[%s5 + $0x2c] sm:$0xf]
        %v1338 = vld [vmem:[%s5 + $0x30] sm:$0xf]
        %v1339 = vld [vmem:[%s5 + $0x34] sm:$0xf]
        %v1340 = vld [vmem:[%s5 + $0x38] sm:$0xf]
        %v1341 = vld [vmem:[%s5 + $0x3c] sm:$0xf]
        %v1342 = vld [vmem:[%s5 + $0x40] sm:$0xf]
        %v1343 = vld [vmem:[%s5 + $0x44] sm:$0xf]
        %v1344 = vld [vmem:[%s5 + $0x48] sm:$0xf]
        %v1345 = vld [vmem:[%s5 + $0x4c] sm:$0xf]
        %v1346 = vld [vmem:[%s5 + $0x50] sm:$0xf]
        %v1347 = vld [vmem:[%s5 + $0x54] sm:$0xf]
        %v1348 = vld [vmem:[%s5 + $0x58] sm:$0xf]
        %v1349 = vld [vmem:[%s5 + $0x5c] sm:$0xf]
        %v1350 = vld [vmem:[%s5 + $0x60] sm:$0xf]
        %v1351 = vld [vmem:[%s5 + $0x64] sm:$0xf]
        %v1352 = vld [vmem:[%s5 + $0x68] sm:$0xf]
        %v1353 = vld [vmem:[%s5 + $0x6c] sm:$0xf]
        %v1354 = vld [vmem:[%s5 + $0x70] sm:$0xf]
        %v1355 = vld [vmem:[%s5 + $0x74] sm:$0xf]
        %v1356 = vld [vmem:[%s5 + $0x78] sm:$0xf]
        %v1357 = vld [vmem:[%s5 + $0x7c] sm:$0xf]
        %v1358 = vld [vmem:[%s5 + $0x80] sm:$0xf]
        %v1359 = vld [vmem:[%s5 + $0x84] sm:$0xf]
        %v1360 = vld [vmem:[%s5 + $0x88] sm:$0xf]
        %v1361 = vld [vmem:[%s5 + $0x8c] sm:$0xf]
        %v1362 = vld [vmem:[%s5 + $0x90] sm:$0xf]
        %v1363 = vld [vmem:[%s5 + $0x94] sm:$0xf]
        %v1364 = vld [vmem:[%s5 + $0x98] sm:$0xf]
        %v1365 = vld [vmem:[%s5 + $0x9c] sm:$0xf]
        %v1366 = vld [vmem:[%s5 + $0xa0] sm:$0xf]
        %v1367 = vld [vmem:[%s5 + $0xa4] sm:$0xf]
        %v1368 = vld [vmem:[%s5 + $0xa8] sm:$0xf]
        %v1369 = vld [vmem:[%s5 + $0xac] sm:$0xf]
        %v1370 = vld [vmem:[%s5 + $0xb0] sm:$0xf]
        %v1371 = vld [vmem:[%s5 + $0xb4] sm:$0xf]
        %v1372 = vld [vmem:[%s5 + $0xb8] sm:$0xf]
        %v1373 = vld [vmem:[%s5 + $0xbc] sm:$0xf]
        %v1374 = vld [vmem:[%s5 + $0xc0] sm:$0xf]
        %v1375 = vld [vmem:[%s5 + $0xc4] sm:$0xf]
        %v1376 = vld [vmem:[%s5 + $0xc8] sm:$0xf]
        %v1377 = vld [vmem:[%s5 + $0xcc] sm:$0xf]
        %v1378 = vld [vmem:[%s5 + $0xd0] sm:$0xf]
        %v1379 = vld [vmem:[%s5 + $0xd4] sm:$0xf]
        %v1380 = vld [vmem:[%s5 + $0xd8] sm:$0xf]
        %v1381 = vld [vmem:[%s5 + $0xdc] sm:$0xf]
        %v1382 = vld [vmem:[%s5 + $0xe0] sm:$0xf]
        %v1383 = vld [vmem:[%s5 + $0xe4] sm:$0xf]
        %v1384 = vld [vmem:[%s5 + $0xe8] sm:$0xf]
        %v1385 = vld [vmem:[%s5 + $0xec] sm:$0xf]
        %v1386 = vld [vmem:[%s5 + $0xf0] sm:$0xf]
        %v1387 = vld [vmem:[%s5 + $0xf4] sm:$0xf]
        %v1388 = vld [vmem:[%s5 + $0xf8] sm:$0xf]
        %v1389 = vld [vmem:[%s5 + $0xfc] sm:$0xf]
        %v1390 = vld [vmem:[%s6] sm:$0x1]
        %v1392 = vlaneseq
        %v1393 = vshrl.u32 %v1392, 7
        %v1394 = vsub.s32 0, %v1393
        %v1395 = vrot.slane %v1390, %v1394
        %v1399 = vunpack.c.l.b16 %v1324
        %v1400 = vunpack.c.h.b16 %v1324
        %v1401 = vunpack.c.l.b16 %v1325
        %v1402 = vunpack.c.h.b16 %v1325
        %v1403 = vpack.c.b16 %v1399, %v1399
        %v1404 = vpack.c.b16 %v1400, %v1400
        %v1405 = vpack.c.b16 %v1401, %v1401
        %v1406 = vpack.c.b16 %v1402, %v1402
        %v1475 = vunpack.c.l.b16 %v1326
        %v1476 = vunpack.c.l.b16 %v1327
        %v1477 = vunpack.c.l.b16 %v1328
        %v1478 = vunpack.c.l.b16 %v1329
        %v1479 = vunpack.c.l.b16 %v1330
        %v1480 = vunpack.c.l.b16 %v1331
        %v1481 = vunpack.c.l.b16 %v1332
        %v1482 = vunpack.c.l.b16 %v1333
        %v1483 = vunpack.c.l.b16 %v1334
        %v1484 = vunpack.c.l.b16 %v1335
        %v1485 = vunpack.c.l.b16 %v1336
        %v1486 = vunpack.c.l.b16 %v1337
        %v1487 = vunpack.c.l.b16 %v1338
        %v1488 = vunpack.c.l.b16 %v1339
        %v1489 = vunpack.c.l.b16 %v1340
        %v1490 = vunpack.c.l.b16 %v1341
        %v1491 = vunpack.c.l.b16 %v1342
        %v1492 = vunpack.c.l.b16 %v1343
        %v1493 = vunpack.c.l.b16 %v1344
        %v1494 = vunpack.c.l.b16 %v1345
        %v1495 = vunpack.c.l.b16 %v1346
        %v1496 = vunpack.c.l.b16 %v1347
        %v1497 = vunpack.c.l.b16 %v1348
        %v1498 = vunpack.c.l.b16 %v1349
        %v1499 = vunpack.c.l.b16 %v1350
        %v1500 = vunpack.c.l.b16 %v1351
        %v1501 = vunpack.c.l.b16 %v1352
        %v1502 = vunpack.c.l.b16 %v1353
        %v1503 = vunpack.c.l.b16 %v1354
        %v1504 = vunpack.c.l.b16 %v1355
        %v1505 = vunpack.c.l.b16 %v1356
        %v1506 = vunpack.c.l.b16 %v1357
        %v1507 = vunpack.c.l.b16 %v1358
        %v1508 = vunpack.c.l.b16 %v1359
        %v1509 = vunpack.c.l.b16 %v1360
        %v1510 = vunpack.c.l.b16 %v1361
        %v1511 = vunpack.c.l.b16 %v1362
        %v1512 = vunpack.c.l.b16 %v1363
        %v1513 = vunpack.c.l.b16 %v1364
        %v1514 = vunpack.c.l.b16 %v1365
        %v1515 = vunpack.c.l.b16 %v1366
        %v1516 = vunpack.c.l.b16 %v1367
        %v1517 = vunpack.c.l.b16 %v1368
        %v1518 = vunpack.c.l.b16 %v1369
        %v1519 = vunpack.c.l.b16 %v1370
        %v1520 = vunpack.c.l.b16 %v1371
        %v1521 = vunpack.c.l.b16 %v1372
        %v1522 = vunpack.c.l.b16 %v1373
        %v1523 = vunpack.c.l.b16 %v1374
        %v1524 = vunpack.c.l.b16 %v1375
        %v1525 = vunpack.c.l.b16 %v1376
        %v1526 = vunpack.c.l.b16 %v1377
        %v1527 = vunpack.c.l.b16 %v1378
        %v1528 = vunpack.c.l.b16 %v1379
        %v1529 = vunpack.c.l.b16 %v1380
        %v1530 = vunpack.c.l.b16 %v1381
        %v1531 = vunpack.c.l.b16 %v1382
        %v1532 = vunpack.c.l.b16 %v1383
        %v1533 = vunpack.c.l.b16 %v1384
        %v1534 = vunpack.c.l.b16 %v1385
        %v1535 = vunpack.c.l.b16 %v1386
        %v1536 = vunpack.c.l.b16 %v1387
        %v1537 = vunpack.c.l.b16 %v1388
        %v1538 = vunpack.c.l.b16 %v1389
        %v1539 = vpack.c.b16 %v1476, %v1475
        %v1540 = vpack.c.b16 %v1478, %v1477
        %v1541 = vpack.c.b16 %v1480, %v1479
        %v1542 = vpack.c.b16 %v1482, %v1481
        %v1543 = vpack.c.b16 %v1484, %v1483
        %v1544 = vpack.c.b16 %v1486, %v1485
        %v1545 = vpack.c.b16 %v1488, %v1487
        %v1546 = vpack.c.b16 %v1490, %v1489
        %v1547 = vpack.c.b16 %v1492, %v1491
        %v1548 = vpack.c.b16 %v1494, %v1493
        %v1549 = vpack.c.b16 %v1496, %v1495
        %v1550 = vpack.c.b16 %v1498, %v1497
        %v1551 = vpack.c.b16 %v1500, %v1499
        %v1552 = vpack.c.b16 %v1502, %v1501
        %v1553 = vpack.c.b16 %v1504, %v1503
        %v1554 = vpack.c.b16 %v1506, %v1505
        %v1555 = vpack.c.b16 %v1508, %v1507
        %v1556 = vpack.c.b16 %v1510, %v1509
        %v1557 = vpack.c.b16 %v1512, %v1511
        %v1558 = vpack.c.b16 %v1514, %v1513
        %v1559 = vpack.c.b16 %v1516, %v1515
        %v1560 = vpack.c.b16 %v1518, %v1517
        %v1561 = vpack.c.b16 %v1520, %v1519
        %v1562 = vpack.c.b16 %v1522, %v1521
        %v1563 = vpack.c.b16 %v1524, %v1523
        %v1564 = vpack.c.b16 %v1526, %v1525
        %v1565 = vpack.c.b16 %v1528, %v1527
        %v1566 = vpack.c.b16 %v1530, %v1529
        %v1567 = vpack.c.b16 %v1532, %v1531
        %v1568 = vpack.c.b16 %v1534, %v1533
        %v1569 = vpack.c.b16 %v1536, %v1535
        %v1570 = vpack.c.b16 %v1538, %v1537
        %1603 = vmatprep.subr.bf16.mxu0 0
        %1604 = vmatpush1.bf16.msra.mxu0 %v1539
        %1605 = vmatprep.subr.bf16.mxu0 0
        %1606 = vmatpush1.bf16.msra.mxu0 %v1540
        %1607 = vmatprep.subr.bf16.mxu0 0
        %1608 = vmatpush1.bf16.msra.mxu0 %v1541
        %1609 = vmatprep.subr.bf16.mxu0 0
        %1610 = vmatpush1.bf16.msra.mxu0 %v1542
        %1611 = vmatprep.subr.bf16.mxu0 0
        %1612 = vmatpush1.bf16.msra.mxu0 %v1543
        %1613 = vmatprep.subr.bf16.mxu0 0
        %1614 = vmatpush1.bf16.msra.mxu0 %v1544
        %1615 = vmatprep.subr.bf16.mxu0 0
        %1616 = vmatpush1.bf16.msra.mxu0 %v1545
        %1617 = vmatprep.subr.bf16.mxu0 0
        %1618 = vmatpush1.bf16.msra.mxu0 %v1546
        %1619 = vmatprep.subr.bf16.mxu0 0
        %1620 = vmatpush1.bf16.msra.mxu0 %v1547
        %1621 = vmatprep.subr.bf16.mxu0 0
        %1622 = vmatpush1.bf16.msra.mxu0 %v1548
        %1623 = vmatprep.subr.bf16.mxu0 0
        %1624 = vmatpush1.bf16.msra.mxu0 %v1549
        %1625 = vmatprep.subr.bf16.mxu0 0
        %1626 = vmatpush1.bf16.msra.mxu0 %v1550
        %1627 = vmatprep.subr.bf16.mxu0 0
        %1628 = vmatpush1.bf16.msra.mxu0 %v1551
        %1629 = vmatprep.subr.bf16.mxu0 0
        %1630 = vmatpush1.bf16.msra.mxu0 %v1552
        %1631 = vmatprep.subr.bf16.mxu0 0
        %1632 = vmatpush1.bf16.msra.mxu0 %v1553
        %1633 = vmatprep.subr.bf16.mxu0 0
        %1634 = vmatpush1.bf16.msra.mxu0 %v1554
        %1635 = vmatprep.mubr.bf16.mxu0 %v1404
        %1636 = vmatmul.mubr.bf16.gmra.mrb[0].mxu0 %v1403
        %v1637 = vpop.f32.mrb[0].mxu0
        %v1638 = vadd.f32 %v1395, %v1637
        %v1639 = vpop.f32.mrb[0].mxu0
        %v1640 = vpop.f32.mrb[0].mxu0
        %v1641 = vpop.f32.mrb[0].mxu0
        %1642 = vdwg.mxu0
        %1643 = vmatprep.subr.bf16.mxu0 0
        %1644 = vmatpush1.bf16.msra.mxu0 %v1555
        %1645 = vmatprep.subr.bf16.mxu0 0
        %1646 = vmatpush1.bf16.msra.mxu0 %v1556
        %1647 = vmatprep.subr.bf16.mxu0 0
        %1648 = vmatpush1.bf16.msra.mxu0 %v1557
        %1649 = vmatprep.subr.bf16.mxu0 0
        %1650 = vmatpush1.bf16.msra.mxu0 %v1558
        %1651 = vmatprep.subr.bf16.mxu0 0
        %1652 = vmatpush1.bf16.msra.mxu0 %v1559
        %1653 = vmatprep.subr.bf16.mxu0 0
        %1654 = vmatpush1.bf16.msra.mxu0 %v1560
        %1655 = vmatprep.subr.bf16.mxu0 0
        %1656 = vmatpush1.bf16.msra.mxu0 %v1561
        %1657 = vmatprep.subr.bf16.mxu0 0
        %1658 = vmatpush1.bf16.msra.mxu0 %v1562
        %1659 = vmatprep.subr.bf16.mxu0 0
        %1660 = vmatpush1.bf16.msra.mxu0 %v1563
        %1661 = vmatprep.subr.bf16.mxu0 0
        %1662 = vmatpush1.bf16.msra.mxu0 %v1564
        %1663 = vmatprep.subr.bf16.mxu0 0
        %1664 = vmatpush1.bf16.msra.mxu0 %v1565
        %1665 = vmatprep.subr.bf16.mxu0 0
        %1666 = vmatpush1.bf16.msra.mxu0 %v1566
        %1667 = vmatprep.subr.bf16.mxu0 0
        %1668 = vmatpush1.bf16.msra.mxu0 %v1567
        %1669 = vmatprep.subr.bf16.mxu0 0
        %1670 = vmatpush1.bf16.msra.mxu0 %v1568
        %1671 = vmatprep.subr.bf16.mxu0 0
        %1672 = vmatpush1.bf16.msra.mxu0 %v1569
        %1673 = vmatprep.subr.bf16.mxu0 0
        %1674 = vmatpush1.bf16.msra.mxu0 %v1570
        %1675 = vmatprep.mubr.bf16.mxu0 %v1406
        %1676 = vmatmul.mubr.bf16.gmra.mrb[0].mxu0 %v1405
        %v1677 = vpop.f32.mrb[0].mxu0
        %v1678 = vadd.f32 %v1638, %v1677
        %v1679 = vpop.f32.mrb[0].mxu0
        %v1680 = vpop.f32.mrb[0].mxu0
        %v1681 = vpop.f32.mrb[0].mxu0
        %1682 = vdwg.mxu0
        %1683 = vst.msk [vmem:[%s350] sm:$0xff] %vm805, %v1678
        %s1684 = sand.u32 %s212, 1
        %s1685 = scalar_lea.sflag [#allocation6], %s1684
        %s1686 = sand.u32 %s212, 1
        %s1687 = smul.addr %s1686, 8
        %s1688 = scalar_lea.vmem [#allocation5], %s1687
        %s1689 = sand.u32 %s240, 1
        %s1690 = scalar_lea.sflag [#allocation8], %s1689
        %s1691 = sand.u32 %s240, 1
        %s1692 = smul.addr %s1691, 8
        %s1693 = scalar_lea.vmem [#allocation7], %s1692
        // Predicated region
        $region53: #{tpu_custom_call.1} parent=47 // pred_check
          %p1694 = pneg %p222
        $region54: #{tpu_custom_call.1} parent=47 // pred_check_branch
          %1696 = sbr.rel (%p1694) target = $region56
        $region55: #{tpu_custom_call.1} parent=47 // pred_region
          %s1698 = ssub.s32 128, 128
          %1699 = vsyncadd %s1685, %s1698
          %s1700 = sadd.s32 %s31, %s30
          %s1701 = smul.addr %s1700, 128
          %s1702 = scalar_lea.hbm %s7, %s1701
          %s1704 = sshll.u32 %s1688, 4
          %s1705 = int_to_ptr.vmem [resolvable:$true] %s1704
          %1707 = dma.vmem_to_hbm [thread:$0]  %s1705, 128, %s1702, %s1685
        $region56: #{tpu_custom_call.1} parent=47 // pred_fallthru
          _
        // Predicated region
        $region57: #{tpu_custom_call.1} parent=47 // pred_check
          %p1708 = pneg %p250
        $region58: #{tpu_custom_call.1} parent=47 // pred_check_branch
          %1710 = sbr.rel (%p1708) target = $region60
        $region59: #{tpu_custom_call.1} parent=47 // pred_region
          %s1712 = ssub.s32 128, 128
          %1713 = vsyncadd %s1690, %s1712
          %s1714 = sadd.s32 %s31, %s30
          %s1715 = smul.addr %s1714, 128
          %s1716 = scalar_lea.hbm %s8, %s1715
          %s1718 = sshll.u32 %s1693, 4
          %s1719 = int_to_ptr.vmem [resolvable:$true] %s1718
          %1721 = dma.vmem_to_hbm [thread:$0]  %s1719, 128, %s1716, %s1690
        $region60: #{tpu_custom_call.1} parent=47 // pred_fallthru
          _
      $region48: #{tpu_custom_call.1} parent=5 // pred_fallthru
        _
      %p1722 = scmp.le.s32.totalorder 2, %s21
      // Predicated region
      $region61: #{tpu_custom_call.1} parent=5 // pred_check
        %p1723 = pneg %p1722
      $region62: #{tpu_custom_call.1} parent=5 // pred_check_branch
        %1725 = sbr.rel (%p1723) target = $region64
      $region63: #{tpu_custom_call.1} parent=5 // pred_region
        %s1726 = ssub.s32 %s21, 2
        // Predicated region
        $region65: #{tpu_custom_call.1} parent=63 // pred_check
          %p1727 = pneg %p228
        $region66: #{tpu_custom_call.1} parent=63 // pred_check_branch
          %1729 = sbr.rel (%p1727) target = $region68
        $region67: #{tpu_custom_call.1} parent=63 // pred_region
          %s1730 = sand.u32 %s213, 1
          %s1731 = scalar_lea.sflag [#allocation6], %s1730
          %s1732 = sand.u32 %s213, 1
          %s1733 = smul.addr %s1732, 8
          %s1734 = scalar_lea.vmem [#allocation5], %s1733
          %1735 = dma.done %s1731, 128
        $region68: #{tpu_custom_call.1} parent=63 // pred_fallthru
          _
        // Predicated region
        $region69: #{tpu_custom_call.1} parent=63 // pred_check
          %p1736 = pneg %p256
        $region70: #{tpu_custom_call.1} parent=63 // pred_check_branch
          %1738 = sbr.rel (%p1736) target = $region72
        $region71: #{tpu_custom_call.1} parent=63 // pred_region
          %s1739 = sand.u32 %s241, 1
          %s1740 = scalar_lea.sflag [#allocation8], %s1739
          %s1741 = sand.u32 %s241, 1
          %s1742 = smul.addr %s1741, 8
          %s1743 = scalar_lea.vmem [#allocation7], %s1742
          %1744 = dma.done %s1740, 128
        $region72: #{tpu_custom_call.1} parent=63 // pred_fallthru
          _
      $region64: #{tpu_custom_call.1} parent=5 // pred_fallthru
        _
    $region6: #{tpu_custom_call.1} parent=1 // loop_footer
      %s25 = sadd.s32 1, %s21
    $region7: #{tpu_custom_call.1} parent=1 // loop_footer_branch
      %20 = sbr.rel target = $region3
    $region8: #{tpu_custom_call.1} parent=1 // loop_exit
      _
    %1745 = vsyncpa [#allocation6], 1
    %s1746 = scalar_lea.sflag [#allocation6], 1
    %1747 = vsyncpa %s1746, 1
    %1748 = vsyncpa [#allocation8], 1
    %s1749 = scalar_lea.sflag [#allocation8], 1
    %1750 = vsyncpa %s1749, 1

</llo_original>
